<compile_context>
chip_gen: v5e
topology: v5e:2x2
jax: 0.10.0
libtpu: 0.0.40
codegen_flags: <defaults>
</compile_context>

<pallas_src>
import functools

import jax
import jax.numpy as jnp
from jax.experimental import pallas as pl
from jax.experimental.pallas import tpu as pltpu

EPS = 1e-5


# ---------------------------------------------------------------------------
# Kernel 1: layer7 = Linear(65536 -> 1024) + BatchNorm1d(1024) + ReLU
# grid = (N // tn, K // tk); K is the reduction axis (inner, "arbitrary"),
# N is split for dual-TensorCore chips (outer, "parallel").
# The output block is the accumulator (resident across the K axis).
# ---------------------------------------------------------------------------
def linear_bn_relu_kernel(x_ref, w_ref, b_ref, g_ref, beta_ref, o_ref, *, tk):
    k = pl.program_id(1)

    @pl.when(k == 0)
    def _():
        o_ref[...] = jnp.zeros_like(o_ref)

    start = pl.multiple_of(k * tk, tk)
    o_ref[...] += jnp.dot(x_ref[:, pl.ds(start, tk)], w_ref[...],
                          preferred_element_type=jnp.float32)

    @pl.when(k == pl.num_programs(1) - 1)
    def _():
        y = o_ref[...] + b_ref[...]                              # (B, tn)
        mean = jnp.mean(y, axis=0, keepdims=True)
        var = jnp.mean((y - mean) ** 2, axis=0, keepdims=True)   # biased variance
        yhat = (y - mean) * jax.lax.rsqrt(var + EPS)
        o_ref[...] = jnp.maximum(g_ref[...] * yhat + beta_ref[...], 0.0)


def linear_bn_relu(x, w, b, gamma, beta, *, tk=2048, tn=512):
    B, K = x.shape
    N = w.shape[1]
    assert K % tk == 0 and N % tn == 0
    grid = (N // tn, K // tk)
    kernel = functools.partial(linear_bn_relu_kernel, tk=tk)
    return pl.pallas_call(
        kernel,
        out_shape=jax.ShapeDtypeStruct((B, N), jnp.float32),
        grid_spec=pltpu.PrefetchScalarGridSpec(
            num_scalar_prefetch=0,
            grid=grid,
            in_specs=[
                # x loaded once (constant block index), sliced in-kernel along K.
                pl.BlockSpec((B, K), lambda j, k: (0, 0)),
                # weight stream: the only traffic that matters.
                pl.BlockSpec((tk, tn), lambda j, k: (k, j)),
                pl.BlockSpec((1, tn), lambda j, k: (0, j)),
                pl.BlockSpec((1, tn), lambda j, k: (0, j)),
                pl.BlockSpec((1, tn), lambda j, k: (0, j)),
            ],
            out_specs=pl.BlockSpec((B, tn), lambda j, k: (0, j)),
        ),
        compiler_params=pltpu.CompilerParams(
            dimension_semantics=("parallel", "arbitrary")),
    )(x, w, b, gamma, beta)


# ---------------------------------------------------------------------------
# Kernel 2: layer8 + layer9 fused =
#   Linear(1024 -> 64) + BatchNorm1d(64) + ReLU + Linear(64 -> 10)
# Everything fits in a single VMEM block; runtime is negligible vs. kernel 1.
# ---------------------------------------------------------------------------
def head_kernel(x_ref, w8_ref, b8_ref, g8_ref, be8_ref, w9_ref, b9_ref, o_ref):
    y = jnp.dot(x_ref[...], w8_ref[...],
                preferred_element_type=jnp.float32) + b8_ref[...]     # (B, 64)
    mean = jnp.mean(y, axis=0, keepdims=True)
    var = jnp.mean((y - mean) ** 2, axis=0, keepdims=True)
    h = jnp.maximum(g8_ref[...] * (y - mean) * jax.lax.rsqrt(var + EPS)
                    + be8_ref[...], 0.0)
    o_ref[...] = jnp.dot(h, w9_ref[...],
                         preferred_element_type=jnp.float32) + b9_ref[...]


def head(x, w8, b8, g8, be8, w9, b9):
    B = x.shape[0]
    H = w8.shape[1]          # 64
    O = w9.shape[1]          # 10
    K = x.shape[1]           # 1024
    return pl.pallas_call(
        head_kernel,
        out_shape=jax.ShapeDtypeStruct((B, O), jnp.float32),
        grid_spec=pltpu.PrefetchScalarGridSpec(
            num_scalar_prefetch=0,
            grid=(1,),
            in_specs=[
                pl.BlockSpec((B, K), lambda i: (0, 0)),
                pl.BlockSpec((K, H), lambda i: (0, 0)),
                pl.BlockSpec((1, H), lambda i: (0, 0)),
                pl.BlockSpec((1, H), lambda i: (0, 0)),
                pl.BlockSpec((1, H), lambda i: (0, 0)),
                pl.BlockSpec((H, O), lambda i: (0, 0)),
                pl.BlockSpec((1, O), lambda i: (0, 0)),
            ],
            out_specs=pl.BlockSpec((B, O), lambda i: (0, 0)),
        ),
        compiler_params=pltpu.CompilerParams(
            dimension_semantics=("arbitrary",)),
    )(x, w8, b8, g8, be8, w9, b9)


# ---------------------------------------------------------------------------
# Full forward (layers 6..9 of Cifar10_Classifier with num_step=5)
# ---------------------------------------------------------------------------
def cifar10_classifier_forward(x_nchw, params):
    B = x_nchw.shape[0]
    # layer6 = View(-1, 65536): row-major flatten (C, H, W fastest), i.e. torch .view
    x_flat = x_nchw.reshape(B, -1)
    h7 = linear_bn_relu(x_flat, params["w7"], params["b7"],
                        params["g7"], params["be7"])
    out = head(h7, params["w8"], params["b8"], params["g8"], params["be8"],
               params["w9"], params["b9"])
    return out


# ---------------------------------------------------------------------------
# Pure-JAX reference for validation
# ---------------------------------------------------------------------------
def reference_forward(x_nchw, p):
    B = x_nchw.shape[0]
    x = x_nchw.reshape(B, -1)

    def bn_relu(y, g, be):
        m = jnp.mean(y, axis=0, keepdims=True)
        v = jnp.mean((y - m) ** 2, axis=0, keepdims=True)
        return jnp.maximum(g * (y - m) / jnp.sqrt(v + EPS) + be, 0.0)

    y7 = x @ p["w7"] + p["b7"]
    h7 = bn_relu(y7, p["g7"], p["be7"])
    y8 = h7 @ p["w8"] + p["b8"]
    h8 = bn_relu(y8, p["g8"], p["be8"])
    return h8 @ p["w9"] + p["b9"]


def make_params(key):
    ks = jax.random.split(key, 10)
    D_in, D7, D8, D_out = 65536, 1024, 64, 10
    # Linear weights stored as (in_features, out_features) == torch W.T
    # TODO(synk): optional 2x HBM win on all generations: store/stream w7 as bfloat16
    # (f32 accumulate); skipped here to keep the 1e-3 tolerance against the f32 reference.
    params = {
        "w7": jax.random.normal(ks[0], (D_in, D7), jnp.float32) * 0.01,
        "b7": jax.random.normal(ks[1], (1, D7), jnp.float32) * 0.01,
        "g7": jnp.ones((1, D7), jnp.float32),    # BatchNorm1d(1024) weight init
        "be7": jnp.zeros((1, D7), jnp.float32),  # BatchNorm1d(1024) bias init
        "w8": jax.random.normal(ks[2], (D7, D8), jnp.float32) * 0.03,
        "b8": jax.random.normal(ks[3], (1, D8), jnp.float32) * 0.01,
        "g8": jnp.ones((1, D8), jnp.float32),
        "be8": jnp.zeros((1, D8), jnp.float32),
        "w9": jax.random.normal(ks[4], (D8, D_out), jnp.float32) * 0.1,
        "b9": jax.random.normal(ks[5], (1, D_out), jnp.float32) * 0.01,
    }
    return params


if __name__ == "__main__":
    key = jax.random.PRNGKey(0)
    k_x, k_p = jax.random.split(key)

    B = 2
    # Input in NCHW (what the conv stack at layer5 would have produced): (B, 64, 32, 32),
    # 64*32*32 = 65536 elements per sample -> View(-1, 65536).
    x = jax.random.normal(k_x, (B, 64, 32, 32), jnp.float32)
    params = make_params(k_p)

    out = cifar10_classifier_forward(x, params)
    out = jax.block_until_ready(out)

    ref = reference_forward(x, params)
    assert out.shape == (B, 10), out.shape
    assert jnp.allclose(out, ref, atol=1e-3, rtol=1e-3), (
        f"max abs err {jnp.max(jnp.abs(out - ref))}")

    print("KERNEL_OK")
</pallas_src>

<mosaic_0001>
module attributes {stable_mosaic.version = 11 : i64} {
  func.func @linear_bn_relu_kernel(%arg0: i32, %arg1: i32, %arg2: memref<2x65536xf32, #tpu.memory_space<vmem>>, %arg3: memref<2048x512xf32, #tpu.memory_space<vmem>>, %arg4: memref<1x512xf32, #tpu.memory_space<vmem>>, %arg5: memref<1x512xf32, #tpu.memory_space<vmem>>, %arg6: memref<1x512xf32, #tpu.memory_space<vmem>>, %arg7: memref<2x512xf32, #tpu.memory_space<vmem>>) attributes {dimension_semantics = [#tpu.dimension_semantics<parallel>, #tpu.dimension_semantics<arbitrary>], iteration_bounds = array<i64: 2, 32>, scalar_prefetch = 0 : i64, scratch_operands = 0 : i64, tpu.core_type = #tpu.core_type<tc>, window_params = [{pipeline_mode = #tpu.pipeline_mode<synchronous>, transform_indices = @transform_0, window_bounds = array<i64: 2, 65536>}, {transform_indices = @transform_1, window_bounds = array<i64: 2048, 512>}, {transform_indices = @transform_2, window_bounds = array<i64: 1, 512>}, {transform_indices = @transform_3, window_bounds = array<i64: 1, 512>}, {transform_indices = @transform_4, window_bounds = array<i64: 1, 512>}, {transform_indices = @transform_5, window_bounds = array<i64: 2, 512>}]} {
    %c0_i32 = arith.constant 0 : i32
    %0 = arith.cmpi eq, %arg1, %c0_i32 : i32
    %1 = arith.extui %0 : i1 to i32
    %c0_i32_0 = arith.constant 0 : i32
    %2 = arith.cmpi ne, %1, %c0_i32_0 : i32
    scf.if %2 {
      %cst_8 = arith.constant 0.000000e+00 : f32
      %15 = vector.broadcast %cst_8 : f32 to vector<2x512xf32>
      %c0_9 = arith.constant 0 : index
      %c0_10 = arith.constant 0 : index
      %16 = vector.load %arg7[%c0_9, %c0_10] : memref<2x512xf32, #tpu.memory_space<vmem>>, vector<2x512xf32>
      tpu.vector_store %arg7[%c0_9, %c0_10], %15 {strides = array<i32>} : memref<2x512xf32, #tpu.memory_space<vmem>>, vector<2x512xf32>,
    } else {
    }
    %c2048_i32 = arith.constant 2048 : i32
    %3 = arith.muli %arg1, %c2048_i32 : i32
    %4 = tpu.assume_multiple %3, 2048 : i32
    %c0 = arith.constant 0 : index
    %c0_1 = arith.constant 0 : index
    %5 = vector.load %arg7[%c0, %c0_1] : memref<2x512xf32, #tpu.memory_space<vmem>>, vector<2x512xf32>
    %c0_2 = arith.constant 0 : index
    %6 = arith.index_cast %4 : i32 to index
    %7 = vector.load %arg2[%c0_2, %6] : memref<2x65536xf32, #tpu.memory_space<vmem>>, vector<2x2048xf32>
    %c0_3 = arith.constant 0 : index
    %c0_4 = arith.constant 0 : index
    %8 = vector.load %arg3[%c0_3, %c0_4] : memref<2048x512xf32, #tpu.memory_space<vmem>>, vector<2048x512xf32>
    %cst = arith.constant dense<0.000000e+00> : vector<2x512xf32>
    %9 = tpu.matmul %7, %8, %cst {dimension_numbers = #tpu.dot_dimension_numbers<[1], [0], [0], [1], [0, 0, 1, 1], [], []>} : vector<2x2048xf32>, vector<2048x512xf32>, vector<2x512xf32> -> vector<2x512xf32>
    %10 = arith.addf %5, %9 : vector<2x512xf32>
    %c0_5 = arith.constant 0 : index
    %c0_6 = arith.constant 0 : index
    %11 = vector.load %arg7[%c0_5, %c0_6] : memref<2x512xf32, #tpu.memory_space<vmem>>, vector<2x512xf32>
    tpu.vector_store %arg7[%c0_5, %c0_6], %10 {strides = array<i32>} : memref<2x512xf32, #tpu.memory_space<vmem>>, vector<2x512xf32>,
    %c31_i32 = arith.constant 31 : i32
    %12 = arith.cmpi eq, %arg1, %c31_i32 : i32
    %13 = arith.extui %12 : i1 to i32
    %c0_i32_7 = arith.constant 0 : i32
    %14 = arith.cmpi ne, %13, %c0_i32_7 : i32
    scf.if %14 {
      %c0_8 = arith.constant 0 : index
      %c0_9 = arith.constant 0 : index
      %15 = vector.load %arg7[%c0_8, %c0_9] : memref<2x512xf32, #tpu.memory_space<vmem>>, vector<2x512xf32>
      %c0_10 = arith.constant 0 : index
      %c0_11 = arith.constant 0 : index
      %16 = vector.load %arg4[%c0_10, %c0_11] : memref<1x512xf32, #tpu.memory_space<vmem>>, vector<1x512xf32>
      %17 = vector.broadcast %16 : vector<1x512xf32> to vector<2x512xf32>
      %18 = arith.addf %15, %17 : vector<2x512xf32>
      %cst_12 = arith.constant dense<0.000000e+00> : vector<512xf32>
      %19 = vector.multi_reduction <add>, %18, %cst_12 [0] : vector<2x512xf32> to vector<512xf32>
      %20 = vector.shape_cast %19 : vector<512xf32> to vector<1x512xf32>
      %cst_13 = arith.constant 2.000000e+00 : f32
      %21 = vector.broadcast %cst_13 : f32 to vector<1x512xf32>
      %22 = arith.divf %20, %21 : vector<1x512xf32>
      %23 = vector.broadcast %22 : vector<1x512xf32> to vector<2x512xf32>
      %24 = arith.subf %18, %23 : vector<2x512xf32>
      %25 = arith.mulf %24, %24 : vector<2x512xf32>
      %cst_14 = arith.constant dense<0.000000e+00> : vector<512xf32>
      %26 = vector.multi_reduction <add>, %25, %cst_14 [0] : vector<2x512xf32> to vector<512xf32>
      %27 = vector.shape_cast %26 : vector<512xf32> to vector<1x512xf32>
      %cst_15 = arith.constant 2.000000e+00 : f32
      %28 = vector.broadcast %cst_15 : f32 to vector<1x512xf32>
      %29 = arith.divf %27, %28 : vector<1x512xf32>
      %30 = vector.broadcast %22 : vector<1x512xf32> to vector<2x512xf32>
      %31 = arith.subf %18, %30 : vector<2x512xf32>
      %cst_16 = arith.constant 9.99999974E-6 : f32
      %32 = vector.broadcast %cst_16 : f32 to vector<1x512xf32>
      %33 = arith.addf %29, %32 : vector<1x512xf32>
      %34 = math.rsqrt %33 : vector<1x512xf32>
      %35 = vector.broadcast %34 : vector<1x512xf32> to vector<2x512xf32>
      %36 = arith.mulf %31, %35 : vector<2x512xf32>
      %c0_17 = arith.constant 0 : index
      %c0_18 = arith.constant 0 : index
      %37 = vector.load %arg5[%c0_17, %c0_18] : memref<1x512xf32, #tpu.memory_space<vmem>>, vector<1x512xf32>
      %38 = vector.broadcast %37 : vector<1x512xf32> to vector<2x512xf32>
      %39 = arith.mulf %38, %36 : vector<2x512xf32>
      %c0_19 = arith.constant 0 : index
      %c0_20 = arith.constant 0 : index
      %40 = vector.load %arg6[%c0_19, %c0_20] : memref<1x512xf32, #tpu.memory_space<vmem>>, vector<1x512xf32>
      %41 = vector.broadcast %40 : vector<1x512xf32> to vector<2x512xf32>
      %42 = arith.addf %39, %41 : vector<2x512xf32>
      %cst_21 = arith.constant 0.000000e+00 : f32
      %43 = vector.broadcast %cst_21 : f32 to vector<2x512xf32>
      %44 = arith.maximumf %42, %43 : vector<2x512xf32>
      %c0_22 = arith.constant 0 : index
      %c0_23 = arith.constant 0 : index
      %45 = vector.load %arg7[%c0_22, %c0_23] : memref<2x512xf32, #tpu.memory_space<vmem>>, vector<2x512xf32>
      tpu.vector_store %arg7[%c0_22, %c0_23], %44 {strides = array<i32>} : memref<2x512xf32, #tpu.memory_space<vmem>>, vector<2x512xf32>,
    } else {
    }
    return
  }
  func.func @transform_0(%arg0: i32, %arg1: i32) -> (i32, i32) {
    %c0_i32 = arith.constant 0 : i32
    %c0_i32_0 = arith.constant 0 : i32
    %c0_i32_1 = arith.constant 0 : i32
    return %c0_i32, %c0_i32_0 : i32, i32
  }
  func.func @transform_1(%arg0: i32, %arg1: i32) -> (i32, i32) {
    %c0_i32 = arith.constant 0 : i32
    return %arg1, %arg0 : i32, i32
  }
  func.func @transform_2(%arg0: i32, %arg1: i32) -> (i32, i32) {
    %c0_i32 = arith.constant 0 : i32
    %c0_i32_0 = arith.constant 0 : i32
    return %c0_i32, %arg0 : i32, i32
  }
  func.func @transform_3(%arg0: i32, %arg1: i32) -> (i32, i32) {
    %c0_i32 = arith.constant 0 : i32
    %c0_i32_0 = arith.constant 0 : i32
    return %c0_i32, %arg0 : i32, i32
  }
  func.func @transform_4(%arg0: i32, %arg1: i32) -> (i32, i32) {
    %c0_i32 = arith.constant 0 : i32
    %c0_i32_0 = arith.constant 0 : i32
    return %c0_i32, %arg0 : i32, i32
  }
  func.func @transform_5(%arg0: i32, %arg1: i32) -> (i32, i32) {
    %c0_i32 = arith.constant 0 : i32
    %c0_i32_0 = arith.constant 0 : i32
    return %c0_i32, %arg0 : i32, i32
  }
}

</mosaic_0001>

<llo_original>
// kernel: tpu_custom_call.1
$region0: #{tpu_custom_call.1}
  #allocation0 [shape = 'u32[]', space=smem, size = 0x4, offset = 0x4, fixed_abs, tag = 'smem constant byte address 0x4 - core index']
  #allocation1 [shape = 'u32[72,128]{1,0:T(1,128)}', space=vmem, size = 0x9000, scoped, tag = 'internal scratch']
  %s0 = inlined_call_operand.hbm [shape: f32[2,65536], index: 0, kind: input, shape index: {}]
  %s1 = inlined_call_operand.hbm [shape: f32[65536,1024], index: 1, kind: input, shape index: {}]
  %s2 = inlined_call_operand.hbm [shape: f32[1,1024], index: 2, kind: input, shape index: {}]
  %s3 = inlined_call_operand.hbm [shape: f32[1,1024], index: 3, kind: input, shape index: {}]
  %s4 = inlined_call_operand.hbm [shape: f32[1,1024], index: 4, kind: input, shape index: {}]
  %s5 = inlined_call_operand.hbm [shape: f32[2,1024], index: 5, kind: output, shape index: {}]
  %s6 = sld [smem:[#allocation0]]
  $region81: #{tpu_custom_call.1} parent=0
    _
  %s8 = ssub.s32 1, %s6
  %s9 = scalar_select 0, %s8, %s6
  $region1: #{tpu_custom_call.1} parent=0
    #allocation2 [shape = 'u8[524288]{0}', space=vmem, size = 0x80000, scoped, tag = 'input window, operand 0, single buffered']
    #allocation3 [shape = 's32[2]{0}', space=sflag, size = 0x8, scoped, tag = 'scoped memory for tpu_custom_call.1']
    #allocation4 [shape = 's32[2]{0}', space=sflag, size = 0x8, scoped, tag = 'scoped memory for tpu_custom_call.1']
    #allocation5 [shape = 'u8[8388608]{0}', space=vmem, size = 0x800000, scoped, tag = 'input window, operand 1']
    #allocation6 [shape = 's32[2]{0}', space=sflag, size = 0x8, scoped, tag = 'scoped memory for tpu_custom_call.1']
    #allocation7 [shape = 'u8[4096]{0}', space=vmem, size = 0x1000, scoped, tag = 'input window, operand 2']
    #allocation8 [shape = 'u8[4096]{0}', space=vmem, size = 0x1000, scoped, tag = 'input window, operand 3']
    #allocation9 [shape = 's32[2]{0}', space=sflag, size = 0x8, scoped, tag = 'scoped memory for tpu_custom_call.1']
    #allocation10 [shape = 'u8[4096]{0}', space=vmem, size = 0x1000, scoped, tag = 'input window, operand 4']
    #allocation11 [shape = 'u8[8192]{0}', space=vmem, size = 0x2000, scoped, tag = 'output window, operand 0']
    %10 = vsyncpa [#allocation3], 0
    %11 = vsyncpa [#allocation6], 0
    %s12 = scalar_lea.sflag [#allocation6], 1
    %13 = vsyncpa %s12, 0
    %14 = vsyncpa [#allocation9], 0
    %s15 = scalar_lea.sflag [#allocation9], 1
    %16 = vsyncpa %s15, 0
    %17 = vsyncpa [#allocation4], 0
    %s18 = scalar_lea.sflag [#allocation4], 1
    %19 = vsyncpa %s18, 0
    loop: start=0, step=1, limit=66
    $region2: #{tpu_custom_call.1} parent=1 // loop_pre_header
      _
    $region3: #{tpu_custom_call.1} parent=1 // loop_header
      %s21 = sphi 0, %s25
      %p22 = scmp.ge.s32.totalorder %s21, 66
      %s28 = sphi 0, %s40
      %s29 = sphi 0, %s36
      %s30 = sphi 0, %s28
      %s31 = sphi 0, %s29
      %s32 = sphi 0, %s30
      %s33 = sphi 0, %s31
      %s41 = sphi 0, %s41
      %s43 = sphi 0, %s41
      %s44 = sphi 0, %s43
      %s58 = sphi 0, %s44
      %s66 = sphi 0, %s68
      %s69 = sphi 0, %s66
      %s70 = sphi 0, %s69
      %s86 = sphi 0, %s70
      %s92 = sphi 0, %s94
      %s95 = sphi 0, %s92
      %s96 = sphi 0, %s95
      %s112 = sphi 0, %s96
      %s118 = sphi 0, %s120
      %s121 = sphi 0, %s118
      %s122 = sphi 0, %s121
      %s138 = sphi 0, %s122
      %s144 = sphi 0, %s146
      %s147 = sphi 0, %s144
      %s148 = sphi 0, %s147
      %s164 = sphi 0, %s148
      %s170 = sphi 0, %s172
      %s173 = sphi 0, %s170
      %s174 = sphi 0, %s173
      %s190 = sphi 0, %s174
    $region4: #{tpu_custom_call.1} parent=1 // loop_header_branch
      %24 = sbr.rel (%p22) target = $region8
    $region5: #{tpu_custom_call.1} parent=1 // loop_body
      %s26 = ssub.s32 %s21, 1
      %s27 = ssub.s32 %s21, 2
      %s34 = sadd.s32 1, %s29
      %p35 = scmp.ge.s32.totalorder %s34, 32
      %s36 = scalar_select %p35, 0, %s34
      %s37 = sadd.s32 1, %s28
      %s38 = scalar_select %p35, %s37, %s28
      %p39 = scmp.ge.s32.totalorder %s38, 2
      %s40 = scalar_select %p39, 0, %s38
      %s42 = sadd.s32 %s41, 1
      %p45 = scmp.eq.s32.totalorder %s21, 63
      %p46 = scmp.ne.s32.totalorder %s41, %s43
      %p47 = scmp.eq.s32.totalorder %s21, 0
      %p48 = por %p46, %p47
      %p49 = scmp.ne.s32.totalorder %s41, %s43
      %p50 = scmp.eq.s32.totalorder %s26, 63
      %p51 = por %p49, %p50
      %p52 = scmp.ne.s32.totalorder %s43, %s44
      %p53 = scmp.eq.s32.totalorder %s26, 0
      %p54 = por %p52, %p53
      %p55 = scmp.ne.s32.totalorder %s43, %s44
      %p56 = scmp.eq.s32.totalorder %s27, 63
      %p57 = por %p55, %p56
      %p59 = scmp.ne.s32.totalorder %s44, %s58
      %p60 = scmp.eq.s32.totalorder %s27, 0
      %p61 = por %p59, %p60
      %s62 = ssub.s32 %s29, %s36
      %s63 = ssub.s32 %s28, %s40
      %s64 = sor.u32 %s62, %s63
      %p65 = scmp.eq.s32.totalorder %s64, 0
      %s67 = sadd.s32 %s66, 1
      %s68 = scalar_select %p65, %s66, %s67
      %p71 = pneg %p65
      %p72 = scmp.eq.s32.totalorder %s21, 63
      %p73 = por %p71, %p72
      %p74 = scmp.ne.s32.totalorder %s66, %s69
      %p75 = scmp.eq.s32.totalorder %s21, 0
      %p76 = por %p74, %p75
      %p77 = scmp.ne.s32.totalorder %s66, %s69
      %p78 = scmp.eq.s32.totalorder %s26, 63
      %p79 = por %p77, %p78
      %p80 = scmp.ne.s32.totalorder %s69, %s70
      %p81 = scmp.eq.s32.totalorder %s26, 0
      %p82 = por %p80, %p81
      %p83 = scmp.ne.s32.totalorder %s69, %s70
      %p84 = scmp.eq.s32.totalorder %s27, 63
      %p85 = por %p83, %p84
      %p87 = scmp.ne.s32.totalorder %s70, %s86
      %p88 = scmp.eq.s32.totalorder %s27, 0
      %p89 = por %p87, %p88
      %s90 = ssub.s32 %s28, %s40
      %p91 = scmp.eq.s32.totalorder %s90, 0
      %s93 = sadd.s32 %s92, 1
      %s94 = scalar_select %p91, %s92, %s93
      %p97 = pneg %p91
      %p98 = scmp.eq.s32.totalorder %s21, 63
      %p99 = por %p97, %p98
      %p100 = scmp.ne.s32.totalorder %s92, %s95
      %p101 = scmp.eq.s32.totalorder %s21, 0
      %p102 = por %p100, %p101
      %p103 = scmp.ne.s32.totalorder %s92, %s95
      %p104 = scmp.eq.s32.totalorder %s26, 63
      %p105 = por %p103, %p104
      %p106 = scmp.ne.s32.totalorder %s95, %s96
      %p107 = scmp.eq.s32.totalorder %s26, 0
      %p108 = por %p106, %p107
      %p109 = scmp.ne.s32.totalorder %s95, %s96
      %p110 = scmp.eq.s32.totalorder %s27, 63
      %p111 = por %p109, %p110
      %p113 = scmp.ne.s32.totalorder %s96, %s112
      %p114 = scmp.eq.s32.totalorder %s27, 0
      %p115 = por %p113, %p114
      %s116 = ssub.s32 %s28, %s40
      %p117 = scmp.eq.s32.totalorder %s116, 0
      %s119 = sadd.s32 %s118, 1
      %s120 = scalar_select %p117, %s118, %s119
      %p123 = pneg %p117
      %p124 = scmp.eq.s32.totalorder %s21, 63
      %p125 = por %p123, %p124
      %p126 = scmp.ne.s32.totalorder %s118, %s121
      %p127 = scmp.eq.s32.totalorder %s21, 0
      %p128 = por %p126, %p127
      %p129 = scmp.ne.s32.totalorder %s118, %s121
      %p130 = scmp.eq.s32.totalorder %s26, 63
      %p131 = por %p129, %p130
      %p132 = scmp.ne.s32.totalorder %s121, %s122
      %p133 = scmp.eq.s32.totalorder %s26, 0
      %p134 = por %p132, %p133
      %p135 = scmp.ne.s32.totalorder %s121, %s122
      %p136 = scmp.eq.s32.totalorder %s27, 63
      %p137 = por %p135, %p136
      %p139 = scmp.ne.s32.totalorder %s122, %s138
      %p140 = scmp.eq.s32.totalorder %s27, 0
      %p141 = por %p139, %p140
      %s142 = ssub.s32 %s28, %s40
      %p143 = scmp.eq.s32.totalorder %s142, 0
      %s145 = sadd.s32 %s144, 1
      %s146 = scalar_select %p143, %s144, %s145
      %p149 = pneg %p143
      %p150 = scmp.eq.s32.totalorder %s21, 63
      %p151 = por %p149, %p150
      %p152 = scmp.ne.s32.totalorder %s144, %s147
      %p153 = scmp.eq.s32.totalorder %s21, 0
      %p154 = por %p152, %p153
      %p155 = scmp.ne.s32.totalorder %s144, %s147
      %p156 = scmp.eq.s32.totalorder %s26, 63
      %p157 = por %p155, %p156
      %p158 = scmp.ne.s32.totalorder %s147, %s148
      %p159 = scmp.eq.s32.totalorder %s26, 0
      %p160 = por %p158, %p159
      %p161 = scmp.ne.s32.totalorder %s147, %s148
      %p162 = scmp.eq.s32.totalorder %s27, 63
      %p163 = por %p161, %p162
      %p165 = scmp.ne.s32.totalorder %s148, %s164
      %p166 = scmp.eq.s32.totalorder %s27, 0
      %p167 = por %p165, %p166
      %s168 = ssub.s32 %s28, %s40
      %p169 = scmp.eq.s32.totalorder %s168, 0
      %s171 = sadd.s32 %s170, 1
      %s172 = scalar_select %p169, %s170, %s171
      %p175 = pneg %p169
      %p176 = scmp.eq.s32.totalorder %s21, 63
      %p177 = por %p175, %p176
      %p178 = scmp.ne.s32.totalorder %s170, %s173
      %p179 = scmp.eq.s32.totalorder %s21, 0
      %p180 = por %p178, %p179
      %p181 = scmp.ne.s32.totalorder %s170, %s173
      %p182 = scmp.eq.s32.totalorder %s26, 63
      %p183 = por %p181, %p182
      %p184 = scmp.ne.s32.totalorder %s173, %s174
      %p185 = scmp.eq.s32.totalorder %s26, 0
      %p186 = por %p184, %p185
      %p187 = scmp.ne.s32.totalorder %s173, %s174
      %p188 = scmp.eq.s32.totalorder %s27, 63
      %p189 = por %p187, %p188
      %p191 = scmp.ne.s32.totalorder %s174, %s190
      %p192 = scmp.eq.s32.totalorder %s27, 0
      %p193 = por %p191, %p192
      %p194 = scmp.le.s32.totalorder 1, %s21
      %p195 = scmp.lt.s32.totalorder %s21, 65
      %p196 = pnand %p194, %p195
      %p197 = pneg %p196
      // Predicated region
      $region9: #{tpu_custom_call.1} parent=5 // pred_check
        _
      $region10: #{tpu_custom_call.1} parent=5 // pred_check_branch
        %199 = sbr.rel (%p196) target = $region12
      $region11: #{tpu_custom_call.1} parent=5 // pred_region
        %s200 = ssub.s32 %s21, 1
        // Predicated region
        $region13: #{tpu_custom_call.1} parent=11 // pred_check
          %p201 = pneg %p54
        $region14: #{tpu_custom_call.1} parent=11 // pred_check_branch
          %203 = sbr.rel (%p201) target = $region16
        $region15: #{tpu_custom_call.1} parent=11 // pred_region
          %205 = vsyncadd [#allocation3], 0
          %s207 = sshll.u32 %s0, 4
          %s208 = int_to_ptr.hbm [resolvable:$true] %s207
          %s209 = sshll.u32 [#allocation2], 4
          %s210 = int_to_ptr.vmem [resolvable:$true] %s209
          %212 = dma.hbm_to_vmem [thread:$0]  %s208, 16384, %s210, [#allocation3]
        $region16: #{tpu_custom_call.1} parent=11 // pred_fallthru
          _
      $region12: #{tpu_custom_call.1} parent=5 // pred_fallthru
        _
      %p213 = scmp.lt.s32.totalorder %s21, 64
      // Predicated region
      $region17: #{tpu_custom_call.1} parent=5 // pred_check
        %p214 = pneg %p213
      $region18: #{tpu_custom_call.1} parent=5 // pred_check_branch
        %216 = sbr.rel (%p214) target = $region20
      $region19: #{tpu_custom_call.1} parent=5 // pred_region
        // Predicated region
        $region21: #{tpu_custom_call.1} parent=19 // pred_check
          %p217 = pneg %p76
        $region22: #{tpu_custom_call.1} parent=19 // pred_check_branch
          %219 = sbr.rel (%p217) target = $region24
        $region23: #{tpu_custom_call.1} parent=19 // pred_region
          %s220 = sand.u32 %s21, 1
          %s221 = scalar_lea.sflag [#allocation6], %s220
          %s222 = sand.u32 %s66, 1
          %s223 = smul.addr %s222, 8192
          %s224 = scalar_lea.vmem [#allocation5], %s223
          %s225 = smul.u32 256, %s29
          %s226 = smul.u32 4, %s28
          %228 = vsyncadd %s221, 0
          %s229 = smul.addr %s225, 8
          %s230 = sadd.s32 %s226, %s229
          %s231 = smul.addr %s230, 8
          %s232 = scalar_lea.hbm %s1, %s231
          %s233 = sshll.u32 %s232, 4
          %s234 = int_to_ptr.hbm [resolvable:$true] %s233
          %s235 = sshll.u32 %s224, 4
          %s236 = int_to_ptr.vmem [resolvable:$true] %s235
          %241 = dma.hbm_to_vmem [thread:$0]  %s234, 131072, %s236, %s221, 1024, 512, 32
        $region24: #{tpu_custom_call.1} parent=19 // pred_fallthru
          _
        // Predicated region
        $region25: #{tpu_custom_call.1} parent=19 // pred_check
          %p242 = pneg %p102
        $region26: #{tpu_custom_call.1} parent=19 // pred_check_branch
          %244 = sbr.rel (%p242) target = $region28
        $region27: #{tpu_custom_call.1} parent=19 // pred_region
          %s245 = sand.u32 %s21, 1
          %s246 = scalar_lea.sflag [#allocation6], %s245
          %s247 = sand.u32 %s92, 1
          %s248 = smul.addr %s247, 4
          %s249 = scalar_lea.vmem [#allocation7], %s248
          %s250 = smul.u32 4, %s28
          %252 = vsyncadd %s246, 0
          %s253 = scalar_lea.hbm %s2, %s250
          %s255 = sshll.u32 %s253, 4
          %s256 = int_to_ptr.hbm [resolvable:$true] %s255
          %s257 = sshll.u32 %s249, 4
          %s258 = int_to_ptr.vmem [resolvable:$true] %s257
          %260 = dma.hbm_to_vmem [thread:$0]  %s256, 64, %s258, %s246
        $region28: #{tpu_custom_call.1} parent=19 // pred_fallthru
          _
        // Predicated region
        $region29: #{tpu_custom_call.1} parent=19 // pred_check
          %p261 = pneg %p128
        $region30: #{tpu_custom_call.1} parent=19 // pred_check_branch
          %263 = sbr.rel (%p261) target = $region32
        $region31: #{tpu_custom_call.1} parent=19 // pred_region
          %s264 = sand.u32 %s21, 1
          %s265 = scalar_lea.sflag [#allocation9], %s264
          %s266 = sand.u32 %s118, 1
          %s267 = smul.addr %s266, 4
          %s268 = scalar_lea.vmem [#allocation8], %s267
          %s269 = smul.u32 4, %s28
          %271 = vsyncadd %s265, 0
          %s272 = scalar_lea.hbm %s3, %s269
          %s274 = sshll.u32 %s272, 4
          %s275 = int_to_ptr.hbm [resolvable:$true] %s274
          %s276 = sshll.u32 %s268, 4
          %s277 = int_to_ptr.vmem [resolvable:$true] %s276
          %279 = dma.hbm_to_vmem [thread:$0]  %s275, 64, %s277, %s265
        $region32: #{tpu_custom_call.1} parent=19 // pred_fallthru
          _
        // Predicated region
        $region33: #{tpu_custom_call.1} parent=19 // pred_check
          %p280 = pneg %p154
        $region34: #{tpu_custom_call.1} parent=19 // pred_check_branch
          %282 = sbr.rel (%p280) target = $region36
        $region35: #{tpu_custom_call.1} parent=19 // pred_region
          %s283 = sand.u32 %s21, 1
          %s284 = scalar_lea.sflag [#allocation9], %s283
          %s285 = sand.u32 %s144, 1
          %s286 = smul.addr %s285, 4
          %s287 = scalar_lea.vmem [#allocation10], %s286
          %s288 = smul.u32 4, %s28
          %290 = vsyncadd %s284, 0
          %s291 = scalar_lea.hbm %s4, %s288
          %s293 = sshll.u32 %s291, 4
          %s294 = int_to_ptr.hbm [resolvable:$true] %s293
          %s295 = sshll.u32 %s287, 4
          %s296 = int_to_ptr.vmem [resolvable:$true] %s295
          %298 = dma.hbm_to_vmem [thread:$0]  %s294, 64, %s296, %s284
        $region36: #{tpu_custom_call.1} parent=19 // pred_fallthru
          _
      $region20: #{tpu_custom_call.1} parent=5 // pred_fallthru
        _
      %p299 = scmp.le.s32.totalorder 1, %s21
      %p300 = scmp.lt.s32.totalorder %s21, 65
      %p301 = pnand %p299, %p300
      %p302 = pneg %p301
      // Predicated region
      $region37: #{tpu_custom_call.1} parent=5 // pred_check
        _
      $region38: #{tpu_custom_call.1} parent=5 // pred_check_branch
        %304 = sbr.rel (%p301) target = $region40
      $region39: #{tpu_custom_call.1} parent=5 // pred_region
        %s305 = ssub.s32 %s21, 1
        // Predicated region
        $region41: #{tpu_custom_call.1} parent=39 // pred_check
          %p306 = pneg %p54
        $region42: #{tpu_custom_call.1} parent=39 // pred_check_branch
          %308 = sbr.rel (%p306) target = $region44
        $region43: #{tpu_custom_call.1} parent=39 // pred_region
          %310 = dma.done [#allocation3], 16384
        $region44: #{tpu_custom_call.1} parent=39 // pred_fallthru
          _
        %s311 = sand.u32 %s26, 1
        %s312 = scalar_lea.sflag [#allocation6], %s311
        %s313 = sand.u32 %s69, 1
        %s314 = smul.addr %s313, 8192
        %s315 = scalar_lea.vmem [#allocation5], %s314
        // Predicated region
        $region45: #{tpu_custom_call.1} parent=39 // pred_check
          %p316 = pneg %p82
        $region46: #{tpu_custom_call.1} parent=39 // pred_check_branch
          %318 = sbr.rel (%p316) target = $region48
        $region47: #{tpu_custom_call.1} parent=39 // pred_region
          %320 = dma.done %s312, 131072
        $region48: #{tpu_custom_call.1} parent=39 // pred_fallthru
          _
        %s321 = sand.u32 %s26, 1
        %s322 = scalar_lea.sflag [#allocation6], %s321
        %s323 = sand.u32 %s95, 1
        %s324 = smul.addr %s323, 4
        %s325 = scalar_lea.vmem [#allocation7], %s324
        // Predicated region
        $region49: #{tpu_custom_call.1} parent=39 // pred_check
          %p326 = pneg %p108
        $region50: #{tpu_custom_call.1} parent=39 // pred_check_branch
          %328 = sbr.rel (%p326) target = $region52
        $region51: #{tpu_custom_call.1} parent=39 // pred_region
          %330 = dma.done %s322, 64
        $region52: #{tpu_custom_call.1} parent=39 // pred_fallthru
          _
        %s331 = sand.u32 %s26, 1
        %s332 = scalar_lea.sflag [#allocation9], %s331
        %s333 = sand.u32 %s121, 1
        %s334 = smul.addr %s333, 4
        %s335 = scalar_lea.vmem [#allocation8], %s334
        // Predicated region
        $region53: #{tpu_custom_call.1} parent=39 // pred_check
          %p336 = pneg %p134
        $region54: #{tpu_custom_call.1} parent=39 // pred_check_branch
          %338 = sbr.rel (%p336) target = $region56
        $region55: #{tpu_custom_call.1} parent=39 // pred_region
          %340 = dma.done %s332, 64
        $region56: #{tpu_custom_call.1} parent=39 // pred_fallthru
          _
        %s341 = sand.u32 %s26, 1
        %s342 = scalar_lea.sflag [#allocation9], %s341
        %s343 = sand.u32 %s147, 1
        %s344 = smul.addr %s343, 4
        %s345 = scalar_lea.vmem [#allocation10], %s344
        // Predicated region
        $region57: #{tpu_custom_call.1} parent=39 // pred_check
          %p346 = pneg %p160
        $region58: #{tpu_custom_call.1} parent=39 // pred_check_branch
          %348 = sbr.rel (%p346) target = $region60
        $region59: #{tpu_custom_call.1} parent=39 // pred_region
          %350 = dma.done %s342, 64
        $region60: #{tpu_custom_call.1} parent=39 // pred_fallthru
          _
        %p351 = pneg %p54
        %p352 = pneg %p51
        %s353 = sand.u32 %s26, 1
        %s354 = scalar_lea.sflag [#allocation6], %s353
        %s355 = sand.u32 %s69, 1
        %s356 = smul.addr %s355, 8192
        %s357 = scalar_lea.vmem [#allocation5], %s356
        %p358 = pneg %p82
        %p359 = pneg %p79
        %s360 = sand.u32 %s26, 1
        %s361 = scalar_lea.sflag [#allocation6], %s360
        %s362 = sand.u32 %s95, 1
        %s363 = smul.addr %s362, 4
        %s364 = scalar_lea.vmem [#allocation7], %s363
        %p365 = pneg %p108
        %p366 = pneg %p105
        %s367 = sand.u32 %s26, 1
        %s368 = scalar_lea.sflag [#allocation9], %s367
        %s369 = sand.u32 %s121, 1
        %s370 = smul.addr %s369, 4
        %s371 = scalar_lea.vmem [#allocation8], %s370
        %p372 = pneg %p134
        %p373 = pneg %p131
        %s374 = sand.u32 %s26, 1
        %s375 = scalar_lea.sflag [#allocation9], %s374
        %s376 = sand.u32 %s147, 1
        %s377 = smul.addr %s376, 4
        %s378 = scalar_lea.vmem [#allocation10], %s377
        %p379 = pneg %p160
        %p380 = pneg %p157
        %p381 = pneg %p186
        %p382 = pneg %p183
        %s383 = sand.u32 %s173, 1
        %s384 = scalar_lea.sflag [#allocation4], %s383
        %s385 = sand.u32 %s173, 1
        %s386 = smul.addr %s385, 8
        %s387 = scalar_lea.vmem [#allocation11], %s386
        %s388 = smul.u32 256, %s31
        %s389 = smul.u32 4, %s30
        %s390 = smul.u32 4, %s30
        %s391 = smul.u32 4, %s30
        %s392 = smul.u32 4, %s30
        %s393 = smul.u32 4, %s30
        %p394 = scmp.eq.s32.totalorder %s31, 0
        // Predicated region
        $region61: #{tpu_custom_call.1} parent=39 // pred_check
          %p395 = pneg %p394
        $region62: #{tpu_custom_call.1} parent=39 // pred_check_branch
          %397 = sbr.rel (%p395) target = $region64
        $region63: #{tpu_custom_call.1} parent=39 // pred_region
          %398 = vst [vmem:[%s387] sm:$0xff] 0.0
        $region64: #{tpu_custom_call.1} parent=39 // pred_fallthru
          _
        %s399 = smul.u32 %s31, 2048
        %v400 = vld [vmem:[%s387] sm:$0xff]
        %s401 = sshra.s32 %s399, 7
        %s402 = sand.u32 %s399, 127
        %s403 = smul.addr %s401, 2
        %s404 = scalar_lea.vmem [#allocation2], %s403
        %v405 = vld [vmem:[%s404] sm:$0xff]
        %v406 = vld [vmem:[%s404 + $0x8] sm:$0xff]
        %v407 = vld [vmem:[%s404 + $0x10] sm:$0xff]
        %v408 = vld [vmem:[%s404 + $0x18] sm:$0xff]
        %v409 = vld [vmem:[%s315] sm:$0xff]
        %v410 = vld [vmem:[%s315 + $0x8] sm:$0xff]
        %v411 = vld [vmem:[%s315 + $0x10] sm:$0xff]
        %v412 = vld [vmem:[%s315 + $0x18] sm:$0xff]
        %v413 = vld [vmem:[%s315 + $0x20] sm:$0xff]
        %v414 = vld [vmem:[%s315 + $0x28] sm:$0xff]
        %v415 = vld [vmem:[%s315 + $0x30] sm:$0xff]
        %v416 = vld [vmem:[%s315 + $0x38] sm:$0xff]
        %v417 = vld [vmem:[%s315 + $0x40] sm:$0xff]
        %v418 = vld [vmem:[%s315 + $0x48] sm:$0xff]
        %v419 = vld [vmem:[%s315 + $0x50] sm:$0xff]
        %v420 = vld [vmem:[%s315 + $0x58] sm:$0xff]
        %v421 = vld [vmem:[%s315 + $0x60] sm:$0xff]
        %v422 = vld [vmem:[%s315 + $0x68] sm:$0xff]
        %v423 = vld [vmem:[%s315 + $0x70] sm:$0xff]
        %v424 = vld [vmem:[%s315 + $0x78] sm:$0xff]
        %v425 = vld [vmem:[%s315 + $0x80] sm:$0xff]
        %v426 = vld [vmem:[%s315 + $0x88] sm:$0xff]
        %v427 = vld [vmem:[%s315 + $0x90] sm:$0xff]
        %v428 = vld [vmem:[%s315 + $0x98] sm:$0xff]
        %v429 = vld [vmem:[%s315 + $0xa0] sm:$0xff]
        %v430 = vld [vmem:[%s315 + $0xa8] sm:$0xff]
        %v431 = vld [vmem:[%s315 + $0xb0] sm:$0xff]
        %v432 = vld [vmem:[%s315 + $0xb8] sm:$0xff]
        %v433 = vld [vmem:[%s315 + $0xc0] sm:$0xff]
        %v434 = vld [vmem:[%s315 + $0xc8] sm:$0xff]
        %v435 = vld [vmem:[%s315 + $0xd0] sm:$0xff]
        %v436 = vld [vmem:[%s315 + $0xd8] sm:$0xff]
        %v437 = vld [vmem:[%s315 + $0xe0] sm:$0xff]
        %v438 = vld [vmem:[%s315 + $0xe8] sm:$0xff]
        %v439 = vld [vmem:[%s315 + $0xf0] sm:$0xff]
        %v440 = vld [vmem:[%s315 + $0xf8] sm:$0xff]
        %v441 = vld [vmem:[%s315 + $0x100] sm:$0xff]
        %v442 = vld [vmem:[%s315 + $0x108] sm:$0xff]
        %v443 = vld [vmem:[%s315 + $0x110] sm:$0xff]
        %v444 = vld [vmem:[%s315 + $0x118] sm:$0xff]
        %v445 = vld [vmem:[%s315 + $0x120] sm:$0xff]
        %v446 = vld [vmem:[%s315 + $0x128] sm:$0xff]
        %v447 = vld [vmem:[%s315 + $0x130] sm:$0xff]
        %v448 = vld [vmem:[%s315 + $0x138] sm:$0xff]
        %v449 = vld [vmem:[%s315 + $0x140] sm:$0xff]
        %v450 = vld [vmem:[%s315 + $0x148] sm:$0xff]
        %v451 = vld [vmem:[%s315 + $0x150] sm:$0xff]
        %v452 = vld [vmem:[%s315 + $0x158] sm:$0xff]
        %v453 = vld [vmem:[%s315 + $0x160] sm:$0xff]
        %v454 = vld [vmem:[%s315 + $0x168] sm:$0xff]
        %v455 = vld [vmem:[%s315 + $0x170] sm:$0xff]
        %v456 = vld [vmem:[%s315 + $0x178] sm:$0xff]
        %v457 = vld [vmem:[%s315 + $0x180] sm:$0xff]
        %v458 = vld [vmem:[%s315 + $0x188] sm:$0xff]
        %v459 = vld [vmem:[%s315 + $0x190] sm:$0xff]
        %v460 = vld [vmem:[%s315 + $0x198] sm:$0xff]
        %v461 = vld [vmem:[%s315 + $0x1a0] sm:$0xff]
        %v462 = vld [vmem:[%s315 + $0x1a8] sm:$0xff]
        %v463 = vld [vmem:[%s315 + $0x1b0] sm:$0xff]
        %v464 = vld [vmem:[%s315 + $0x1b8] sm:$0xff]
        %v465 = vld [vmem:[%s315 + $0x1c0] sm:$0xff]
        %v466 = vld [vmem:[%s315 + $0x1c8] sm:$0xff]
        %v467 = vld [vmem:[%s315 + $0x1d0] sm:$0xff]
        %v468 = vld [vmem:[%s315 + $0x1d8] sm:$0xff]
        %v469 = vld [vmem:[%s315 + $0x1e0] sm:$0xff]
        %v470 = vld [vmem:[%s315 + $0x1e8] sm:$0xff]
        %v471 = vld [vmem:[%s315 + $0x1f0] sm:$0xff]
        %v472 = vld [vmem:[%s315 + $0x1f8] sm:$0xff]
        %v473 = vld [vmem:[%s315 + $0x200] sm:$0xff]
        %v474 = vld [vmem:[%s315 + $0x208] sm:$0xff]
        %v475 = vld [vmem:[%s315 + $0x210] sm:$0xff]
        %v476 = vld [vmem:[%s315 + $0x218] sm:$0xff]
        %v477 = vld [vmem:[%s315 + $0x220] sm:$0xff]
        %v478 = vld [vmem:[%s315 + $0x228] sm:$0xff]
        %v479 = vld [vmem:[%s315 + $0x230] sm:$0xff]
        %v480 = vld [vmem:[%s315 + $0x238] sm:$0xff]
        %v481 = vld [vmem:[%s315 + $0x240] sm:$0xff]
        %v482 = vld [vmem:[%s315 + $0x248] sm:$0xff]
        %v483 = vld [vmem:[%s315 + $0x250] sm:$0xff]
        %v484 = vld [vmem:[%s315 + $0x258] sm:$0xff]
        %v485 = vld [vmem:[%s315 + $0x260] sm:$0xff]
        %v486 = vld [vmem:[%s315 + $0x268] sm:$0xff]
        %v487 = vld [vmem:[%s315 + $0x270] sm:$0xff]
        %v488 = vld [vmem:[%s315 + $0x278] sm:$0xff]
        %v489 = vld [vmem:[%s315 + $0x280] sm:$0xff]
        %v490 = vld [vmem:[%s315 + $0x288] sm:$0xff]
        %v491 = vld [vmem:[%s315 + $0x290] sm:$0xff]
        %v492 = vld [vmem:[%s315 + $0x298] sm:$0xff]
        %v493 = vld [vmem:[%s315 + $0x2a0] sm:$0xff]
        %v494 = vld [vmem:[%s315 + $0x2a8] sm:$0xff]
        %v495 = vld [vmem:[%s315 + $0x2b0] sm:$0xff]
        %v496 = vld [vmem:[%s315 + $0x2b8] sm:$0xff]
        %v497 = vld [vmem:[%s315 + $0x2c0] sm:$0xff]
        %v498 = vld [vmem:[%s315 + $0x2c8] sm:$0xff]
        %v499 = vld [vmem:[%s315 + $0x2d0] sm:$0xff]
        %v500 = vld [vmem:[%s315 + $0x2d8] sm:$0xff]
        %v501 = vld [vmem:[%s315 + $0x2e0] sm:$0xff]
        %v502 = vld [vmem:[%s315 + $0x2e8] sm:$0xff]
        %v503 = vld [vmem:[%s315 + $0x2f0] sm:$0xff]
        %v504 = vld [vmem:[%s315 + $0x2f8] sm:$0xff]
        %v505 = vld [vmem:[%s315 + $0x300] sm:$0xff]
        %v506 = vld [vmem:[%s315 + $0x308] sm:$0xff]
        %v507 = vld [vmem:[%s315 + $0x310] sm:$0xff]
        %v508 = vld [vmem:[%s315 + $0x318] sm:$0xff]
        %v509 = vld [vmem:[%s315 + $0x320] sm:$0xff]
        %v510 = vld [vmem:[%s315 + $0x328] sm:$0xff]
        %v511 = vld [vmem:[%s315 + $0x330] sm:$0xff]
        %v512 = vld [vmem:[%s315 + $0x338] sm:$0xff]
        %v513 = vld [vmem:[%s315 + $0x340] sm:$0xff]
        %v514 = vld [vmem:[%s315 + $0x348] sm:$0xff]
        %v515 = vld [vmem:[%s315 + $0x350] sm:$0xff]
        %v516 = vld [vmem:[%s315 + $0x358] sm:$0xff]
        %v517 = vld [vmem:[%s315 + $0x360] sm:$0xff]
        %v518 = vld [vmem:[%s315 + $0x368] sm:$0xff]
        %v519 = vld [vmem:[%s315 + $0x370] sm:$0xff]
        %v520 = vld [vmem:[%s315 + $0x378] sm:$0xff]
        %v521 = vld [vmem:[%s315 + $0x380] sm:$0xff]
        %v522 = vld [vmem:[%s315 + $0x388] sm:$0xff]
        %v523 = vld [vmem:[%s315 + $0x390] sm:$0xff]
        %v524 = vld [vmem:[%s315 + $0x398] sm:$0xff]
        %v525 = vld [vmem:[%s315 + $0x3a0] sm:$0xff]
        %v526 = vld [vmem:[%s315 + $0x3a8] sm:$0xff]
        %v527 = vld [vmem:[%s315 + $0x3b0] sm:$0xff]
        %v528 = vld [vmem:[%s315 + $0x3b8] sm:$0xff]
        %v529 = vld [vmem:[%s315 + $0x3c0] sm:$0xff]
        %v530 = vld [vmem:[%s315 + $0x3c8] sm:$0xff]
        %v531 = vld [vmem:[%s315 + $0x3d0] sm:$0xff]
        %v532 = vld [vmem:[%s315 + $0x3d8] sm:$0xff]
        %v533 = vld [vmem:[%s315 + $0x3e0] sm:$0xff]
        %v534 = vld [vmem:[%s315 + $0x3e8] sm:$0xff]
        %v535 = vld [vmem:[%s315 + $0x3f0] sm:$0xff]
        %v536 = vld [vmem:[%s315 + $0x3f8] sm:$0xff]
        %v537 = vld [vmem:[%s315 + $0x400] sm:$0xff]
        %v538 = vld [vmem:[%s315 + $0x408] sm:$0xff]
        %v539 = vld [vmem:[%s315 + $0x410] sm:$0xff]
        %v540 = vld [vmem:[%s315 + $0x418] sm:$0xff]
        %v541 = vld [vmem:[%s315 + $0x420] sm:$0xff]
        %v542 = vld [vmem:[%s315 + $0x428] sm:$0xff]
        %v543 = vld [vmem:[%s315 + $0x430] sm:$0xff]
        %v544 = vld [vmem:[%s315 + $0x438] sm:$0xff]
        %v545 = vld [vmem:[%s315 + $0x440] sm:$0xff]
        %v546 = vld [vmem:[%s315 + $0x448] sm:$0xff]
        %v547 = vld [vmem:[%s315 + $0x450] sm:$0xff]
        %v548 = vld [vmem:[%s315 + $0x458] sm:$0xff]
        %v549 = vld [vmem:[%s315 + $0x460] sm:$0xff]
        %v550 = vld [vmem:[%s315 + $0x468] sm:$0xff]
        %v551 = vld [vmem:[%s315 + $0x470] sm:$0xff]
        %v552 = vld [vmem:[%s315 + $0x478] sm:$0xff]
        %v553 = vld [vmem:[%s315 + $0x480] sm:$0xff]
        %v554 = vld [vmem:[%s315 + $0x488] sm:$0xff]
        %v555 = vld [vmem:[%s315 + $0x490] sm:$0xff]
        %v556 = vld [vmem:[%s315 + $0x498] sm:$0xff]
        %v557 = vld [vmem:[%s315 + $0x4a0] sm:$0xff]
        %v558 = vld [vmem:[%s315 + $0x4a8] sm:$0xff]
        %v559 = vld [vmem:[%s315 + $0x4b0] sm:$0xff]
        %v560 = vld [vmem:[%s315 + $0x4b8] sm:$0xff]
        %v561 = vld [vmem:[%s315 + $0x4c0] sm:$0xff]
        %v562 = vld [vmem:[%s315 + $0x4c8] sm:$0xff]
        %v563 = vld [vmem:[%s315 + $0x4d0] sm:$0xff]
        %v564 = vld [vmem:[%s315 + $0x4d8] sm:$0xff]
        %v565 = vld [vmem:[%s315 + $0x4e0] sm:$0xff]
        %v566 = vld [vmem:[%s315 + $0x4e8] sm:$0xff]
        %v567 = vld [vmem:[%s315 + $0x4f0] sm:$0xff]
        %v568 = vld [vmem:[%s315 + $0x4f8] sm:$0xff]
        %v569 = vld [vmem:[%s315 + $0x500] sm:$0xff]
        %v570 = vld [vmem:[%s315 + $0x508] sm:$0xff]
        %v571 = vld [vmem:[%s315 + $0x510] sm:$0xff]
        %v572 = vld [vmem:[%s315 + $0x518] sm:$0xff]
        %v573 = vld [vmem:[%s315 + $0x520] sm:$0xff]
        %v574 = vld [vmem:[%s315 + $0x528] sm:$0xff]
        %v575 = vld [vmem:[%s315 + $0x530] sm:$0xff]
        %v576 = vld [vmem:[%s315 + $0x538] sm:$0xff]
        %v577 = vld [vmem:[%s315 + $0x540] sm:$0xff]
        %v578 = vld [vmem:[%s315 + $0x548] sm:$0xff]
        %v579 = vld [vmem:[%s315 + $0x550] sm:$0xff]
        %v580 = vld [vmem:[%s315 + $0x558] sm:$0xff]
        %v581 = vld [vmem:[%s315 + $0x560] sm:$0xff]
        %v582 = vld [vmem:[%s315 + $0x568] sm:$0xff]
        %v583 = vld [vmem:[%s315 + $0x570] sm:$0xff]
        %v584 = vld [vmem:[%s315 + $0x578] sm:$0xff]
        %v585 = vld [vmem:[%s315 + $0x580] sm:$0xff]
        %v586 = vld [vmem:[%s315 + $0x588] sm:$0xff]
        %v587 = vld [vmem:[%s315 + $0x590] sm:$0xff]
        %v588 = vld [vmem:[%s315 + $0x598] sm:$0xff]
        %v589 = vld [vmem:[%s315 + $0x5a0] sm:$0xff]
        %v590 = vld [vmem:[%s315 + $0x5a8] sm:$0xff]
        %v591 = vld [vmem:[%s315 + $0x5b0] sm:$0xff]
        %v592 = vld [vmem:[%s315 + $0x5b8] sm:$0xff]
        %v593 = vld [vmem:[%s315 + $0x5c0] sm:$0xff]
        %v594 = vld [vmem:[%s315 + $0x5c8] sm:$0xff]
        %v595 = vld [vmem:[%s315 + $0x5d0] sm:$0xff]
        %v596 = vld [vmem:[%s315 + $0x5d8] sm:$0xff]
        %v597 = vld [vmem:[%s315 + $0x5e0] sm:$0xff]
        %v598 = vld [vmem:[%s315 + $0x5e8] sm:$0xff]
        %v599 = vld [vmem:[%s315 + $0x5f0] sm:$0xff]
        %v600 = vld [vmem:[%s315 + $0x5f8] sm:$0xff]
        %v601 = vld [vmem:[%s315 + $0x600] sm:$0xff]
        %v602 = vld [vmem:[%s315 + $0x608] sm:$0xff]
        %v603 = vld [vmem:[%s315 + $0x610] sm:$0xff]
        %v604 = vld [vmem:[%s315 + $0x618] sm:$0xff]
        %v605 = vld [vmem:[%s315 + $0x620] sm:$0xff]
        %v606 = vld [vmem:[%s315 + $0x628] sm:$0xff]
        %v607 = vld [vmem:[%s315 + $0x630] sm:$0xff]
        %v608 = vld [vmem:[%s315 + $0x638] sm:$0xff]
        %v609 = vld [vmem:[%s315 + $0x640] sm:$0xff]
        %v610 = vld [vmem:[%s315 + $0x648] sm:$0xff]
        %v611 = vld [vmem:[%s315 + $0x650] sm:$0xff]
        %v612 = vld [vmem:[%s315 + $0x658] sm:$0xff]
        %v613 = vld [vmem:[%s315 + $0x660] sm:$0xff]
        %v614 = vld [vmem:[%s315 + $0x668] sm:$0xff]
        %v615 = vld [vmem:[%s315 + $0x670] sm:$0xff]
        %v616 = vld [vmem:[%s315 + $0x678] sm:$0xff]
        %v617 = vld [vmem:[%s315 + $0x680] sm:$0xff]
        %v618 = vld [vmem:[%s315 + $0x688] sm:$0xff]
        %v619 = vld [vmem:[%s315 + $0x690] sm:$0xff]
        %v620 = vld [vmem:[%s315 + $0x698] sm:$0xff]
        %v621 = vld [vmem:[%s315 + $0x6a0] sm:$0xff]
        %v622 = vld [vmem:[%s315 + $0x6a8] sm:$0xff]
        %v623 = vld [vmem:[%s315 + $0x6b0] sm:$0xff]
        %v624 = vld [vmem:[%s315 + $0x6b8] sm:$0xff]
        %v625 = vld [vmem:[%s315 + $0x6c0] sm:$0xff]
        %v626 = vld [vmem:[%s315 + $0x6c8] sm:$0xff]
        %v627 = vld [vmem:[%s315 + $0x6d0] sm:$0xff]
        %v628 = vld [vmem:[%s315 + $0x6d8] sm:$0xff]
        %v629 = vld [vmem:[%s315 + $0x6e0] sm:$0xff]
        %v630 = vld [vmem:[%s315 + $0x6e8] sm:$0xff]
        %v631 = vld [vmem:[%s315 + $0x6f0] sm:$0xff]
        %v632 = vld [vmem:[%s315 + $0x6f8] sm:$0xff]
        %v633 = vld [vmem:[%s315 + $0x700] sm:$0xff]
        %v634 = vld [vmem:[%s315 + $0x708] sm:$0xff]
        %v635 = vld [vmem:[%s315 + $0x710] sm:$0xff]
        %v636 = vld [vmem:[%s315 + $0x718] sm:$0xff]
        %v637 = vld [vmem:[%s315 + $0x720] sm:$0xff]
        %v638 = vld [vmem:[%s315 + $0x728] sm:$0xff]
        %v639 = vld [vmem:[%s315 + $0x730] sm:$0xff]
        %v640 = vld [vmem:[%s315 + $0x738] sm:$0xff]
        %v641 = vld [vmem:[%s315 + $0x740] sm:$0xff]
        %v642 = vld [vmem:[%s315 + $0x748] sm:$0xff]
        %v643 = vld [vmem:[%s315 + $0x750] sm:$0xff]
        %v644 = vld [vmem:[%s315 + $0x758] sm:$0xff]
        %v645 = vld [vmem:[%s315 + $0x760] sm:$0xff]
        %v646 = vld [vmem:[%s315 + $0x768] sm:$0xff]
        %v647 = vld [vmem:[%s315 + $0x770] sm:$0xff]
        %v648 = vld [vmem:[%s315 + $0x778] sm:$0xff]
        %v649 = vld [vmem:[%s315 + $0x780] sm:$0xff]
        %v650 = vld [vmem:[%s315 + $0x788] sm:$0xff]
        %v651 = vld [vmem:[%s315 + $0x790] sm:$0xff]
        %v652 = vld [vmem:[%s315 + $0x798] sm:$0xff]
        %v653 = vld [vmem:[%s315 + $0x7a0] sm:$0xff]
        %v654 = vld [vmem:[%s315 + $0x7a8] sm:$0xff]
        %v655 = vld [vmem:[%s315 + $0x7b0] sm:$0xff]
        %v656 = vld [vmem:[%s315 + $0x7b8] sm:$0xff]
        %v657 = vld [vmem:[%s315 + $0x7c0] sm:$0xff]
        %v658 = vld [vmem:[%s315 + $0x7c8] sm:$0xff]
        %v659 = vld [vmem:[%s315 + $0x7d0] sm:$0xff]
        %v660 = vld [vmem:[%s315 + $0x7d8] sm:$0xff]
        %v661 = vld [vmem:[%s315 + $0x7e0] sm:$0xff]
        %v662 = vld [vmem:[%s315 + $0x7e8] sm:$0xff]
        %v663 = vld [vmem:[%s315 + $0x7f0] sm:$0xff]
        %v664 = vld [vmem:[%s315 + $0x7f8] sm:$0xff]
        %v665 = vld [vmem:[%s315 + $0x800] sm:$0xff]
        %v666 = vld [vmem:[%s315 + $0x808] sm:$0xff]
        %v667 = vld [vmem:[%s315 + $0x810] sm:$0xff]
        %v668 = vld [vmem:[%s315 + $0x818] sm:$0xff]
        %v669 = vld [vmem:[%s315 + $0x820] sm:$0xff]
        %v670 = vld [vmem:[%s315 + $0x828] sm:$0xff]
        %v671 = vld [vmem:[%s315 + $0x830] sm:$0xff]
        %v672 = vld [vmem:[%s315 + $0x838] sm:$0xff]
        %v673 = vld [vmem:[%s315 + $0x840] sm:$0xff]
        %v674 = vld [vmem:[%s315 + $0x848] sm:$0xff]
        %v675 = vld [vmem:[%s315 + $0x850] sm:$0xff]
        %v676 = vld [vmem:[%s315 + $0x858] sm:$0xff]
        %v677 = vld [vmem:[%s315 + $0x860] sm:$0xff]
        %v678 = vld [vmem:[%s315 + $0x868] sm:$0xff]
        %v679 = vld [vmem:[%s315 + $0x870] sm:$0xff]
        %v680 = vld [vmem:[%s315 + $0x878] sm:$0xff]
        %v681 = vld [vmem:[%s315 + $0x880] sm:$0xff]
        %v682 = vld [vmem:[%s315 + $0x888] sm:$0xff]
        %v683 = vld [vmem:[%s315 + $0x890] sm:$0xff]
        %v684 = vld [vmem:[%s315 + $0x898] sm:$0xff]
        %v685 = vld [vmem:[%s315 + $0x8a0] sm:$0xff]
        %v686 = vld [vmem:[%s315 + $0x8a8] sm:$0xff]
        %v687 = vld [vmem:[%s315 + $0x8b0] sm:$0xff]
        %v688 = vld [vmem:[%s315 + $0x8b8] sm:$0xff]
        %v689 = vld [vmem:[%s315 + $0x8c0] sm:$0xff]
        %v690 = vld [vmem:[%s315 + $0x8c8] sm:$0xff]
        %v691 = vld [vmem:[%s315 + $0x8d0] sm:$0xff]
        %v692 = vld [vmem:[%s315 + $0x8d8] sm:$0xff]
        %v693 = vld [vmem:[%s315 + $0x8e0] sm:$0xff]
        %v694 = vld [vmem:[%s315 + $0x8e8] sm:$0xff]
        %v695 = vld [vmem:[%s315 + $0x8f0] sm:$0xff]
        %v696 = vld [vmem:[%s315 + $0x8f8] sm:$0xff]
        %v697 = vld [vmem:[%s315 + $0x900] sm:$0xff]
        %v698 = vld [vmem:[%s315 + $0x908] sm:$0xff]
        %v699 = vld [vmem:[%s315 + $0x910] sm:$0xff]
        %v700 = vld [vmem:[%s315 + $0x918] sm:$0xff]
        %v701 = vld [vmem:[%s315 + $0x920] sm:$0xff]
        %v702 = vld [vmem:[%s315 + $0x928] sm:$0xff]
        %v703 = vld [vmem:[%s315 + $0x930] sm:$0xff]
        %v704 = vld [vmem:[%s315 + $0x938] sm:$0xff]
        %v705 = vld [vmem:[%s315 + $0x940] sm:$0xff]
        %v706 = vld [vmem:[%s315 + $0x948] sm:$0xff]
        %v707 = vld [vmem:[%s315 + $0x950] sm:$0xff]
        %v708 = vld [vmem:[%s315 + $0x958] sm:$0xff]
        %v709 = vld [vmem:[%s315 + $0x960] sm:$0xff]
        %v710 = vld [vmem:[%s315 + $0x968] sm:$0xff]
        %v711 = vld [vmem:[%s315 + $0x970] sm:$0xff]
        %v712 = vld [vmem:[%s315 + $0x978] sm:$0xff]
        %v713 = vld [vmem:[%s315 + $0x980] sm:$0xff]
        %v714 = vld [vmem:[%s315 + $0x988] sm:$0xff]
        %v715 = vld [vmem:[%s315 + $0x990] sm:$0xff]
        %v716 = vld [vmem:[%s315 + $0x998] sm:$0xff]
        %v717 = vld [vmem:[%s315 + $0x9a0] sm:$0xff]
        %v718 = vld [vmem:[%s315 + $0x9a8] sm:$0xff]
        %v719 = vld [vmem:[%s315 + $0x9b0] sm:$0xff]
        %v720 = vld [vmem:[%s315 + $0x9b8] sm:$0xff]
        %v721 = vld [vmem:[%s315 + $0x9c0] sm:$0xff]
        %v722 = vld [vmem:[%s315 + $0x9c8] sm:$0xff]
        %v723 = vld [vmem:[%s315 + $0x9d0] sm:$0xff]
        %v724 = vld [vmem:[%s315 + $0x9d8] sm:$0xff]
        %v725 = vld [vmem:[%s315 + $0x9e0] sm:$0xff]
        %v726 = vld [vmem:[%s315 + $0x9e8] sm:$0xff]
        %v727 = vld [vmem:[%s315 + $0x9f0] sm:$0xff]
        %v728 = vld [vmem:[%s315 + $0x9f8] sm:$0xff]
        %v729 = vld [vmem:[%s315 + $0xa00] sm:$0xff]
        %v730 = vld [vmem:[%s315 + $0xa08] sm:$0xff]
        %v731 = vld [vmem:[%s315 + $0xa10] sm:$0xff]
        %v732 = vld [vmem:[%s315 + $0xa18] sm:$0xff]
        %v733 = vld [vmem:[%s315 + $0xa20] sm:$0xff]
        %v734 = vld [vmem:[%s315 + $0xa28] sm:$0xff]
        %v735 = vld [vmem:[%s315 + $0xa30] sm:$0xff]
        %v736 = vld [vmem:[%s315 + $0xa38] sm:$0xff]
        %v737 = vld [vmem:[%s315 + $0xa40] sm:$0xff]
        %v738 = vld [vmem:[%s315 + $0xa48] sm:$0xff]
        %v739 = vld [vmem:[%s315 + $0xa50] sm:$0xff]
        %v740 = vld [vmem:[%s315 + $0xa58] sm:$0xff]
        %v741 = vld [vmem:[%s315 + $0xa60] sm:$0xff]
        %v742 = vld [vmem:[%s315 + $0xa68] sm:$0xff]
        %v743 = vld [vmem:[%s315 + $0xa70] sm:$0xff]
        %v744 = vld [vmem:[%s315 + $0xa78] sm:$0xff]
        %v745 = vld [vmem:[%s315 + $0xa80] sm:$0xff]
        %v746 = vld [vmem:[%s315 + $0xa88] sm:$0xff]
        %v747 = vld [vmem:[%s315 + $0xa90] sm:$0xff]
        %v748 = vld [vmem:[%s315 + $0xa98] sm:$0xff]
        %v749 = vld [vmem:[%s315 + $0xaa0] sm:$0xff]
        %v750 = vld [vmem:[%s315 + $0xaa8] sm:$0xff]
        %v751 = vld [vmem:[%s315 + $0xab0] sm:$0xff]
        %v752 = vld [vmem:[%s315 + $0xab8] sm:$0xff]
        %v753 = vld [vmem:[%s315 + $0xac0] sm:$0xff]
        %v754 = vld [vmem:[%s315 + $0xac8] sm:$0xff]
        %v755 = vld [vmem:[%s315 + $0xad0] sm:$0xff]
        %v756 = vld [vmem:[%s315 + $0xad8] sm:$0xff]
        %v757 = vld [vmem:[%s315 + $0xae0] sm:$0xff]
        %v758 = vld [vmem:[%s315 + $0xae8] sm:$0xff]
        %v759 = vld [vmem:[%s315 + $0xaf0] sm:$0xff]
        %v760 = vld [vmem:[%s315 + $0xaf8] sm:$0xff]
        %v761 = vld [vmem:[%s315 + $0xb00] sm:$0xff]
        %v762 = vld [vmem:[%s315 + $0xb08] sm:$0xff]
        %v763 = vld [vmem:[%s315 + $0xb10] sm:$0xff]
        %v764 = vld [vmem:[%s315 + $0xb18] sm:$0xff]
        %v765 = vld [vmem:[%s315 + $0xb20] sm:$0xff]
        %v766 = vld [vmem:[%s315 + $0xb28] sm:$0xff]
        %v767 = vld [vmem:[%s315 + $0xb30] sm:$0xff]
        %v768 = vld [vmem:[%s315 + $0xb38] sm:$0xff]
        %v769 = vld [vmem:[%s315 + $0xb40] sm:$0xff]
        %v770 = vld [vmem:[%s315 + $0xb48] sm:$0xff]
        %v771 = vld [vmem:[%s315 + $0xb50] sm:$0xff]
        %v772 = vld [vmem:[%s315 + $0xb58] sm:$0xff]
        %v773 = vld [vmem:[%s315 + $0xb60] sm:$0xff]
        %v774 = vld [vmem:[%s315 + $0xb68] sm:$0xff]
        %v775 = vld [vmem:[%s315 + $0xb70] sm:$0xff]
        %v776 = vld [vmem:[%s315 + $0xb78] sm:$0xff]
        %v777 = vld [vmem:[%s315 + $0xb80] sm:$0xff]
        %v778 = vld [vmem:[%s315 + $0xb88] sm:$0xff]
        %v779 = vld [vmem:[%s315 + $0xb90] sm:$0xff]
        %v780 = vld [vmem:[%s315 + $0xb98] sm:$0xff]
        %v781 = vld [vmem:[%s315 + $0xba0] sm:$0xff]
        %v782 = vld [vmem:[%s315 + $0xba8] sm:$0xff]
        %v783 = vld [vmem:[%s315 + $0xbb0] sm:$0xff]
        %v784 = vld [vmem:[%s315 + $0xbb8] sm:$0xff]
        %v785 = vld [vmem:[%s315 + $0xbc0] sm:$0xff]
        %v786 = vld [vmem:[%s315 + $0xbc8] sm:$0xff]
        %v787 = vld [vmem:[%s315 + $0xbd0] sm:$0xff]
        %v788 = vld [vmem:[%s315 + $0xbd8] sm:$0xff]
        %v789 = vld [vmem:[%s315 + $0xbe0] sm:$0xff]
        %v790 = vld [vmem:[%s315 + $0xbe8] sm:$0xff]
        %v791 = vld [vmem:[%s315 + $0xbf0] sm:$0xff]
        %v792 = vld [vmem:[%s315 + $0xbf8] sm:$0xff]
        %v793 = vld [vmem:[%s315 + $0xc00] sm:$0xff]
        %v794 = vld [vmem:[%s315 + $0xc08] sm:$0xff]
        %v795 = vld [vmem:[%s315 + $0xc10] sm:$0xff]
        %v796 = vld [vmem:[%s315 + $0xc18] sm:$0xff]
        %v797 = vld [vmem:[%s315 + $0xc20] sm:$0xff]
        %v798 = vld [vmem:[%s315 + $0xc28] sm:$0xff]
        %v799 = vld [vmem:[%s315 + $0xc30] sm:$0xff]
        %v800 = vld [vmem:[%s315 + $0xc38] sm:$0xff]
        %v801 = vld [vmem:[%s315 + $0xc40] sm:$0xff]
        %v802 = vld [vmem:[%s315 + $0xc48] sm:$0xff]
        %v803 = vld [vmem:[%s315 + $0xc50] sm:$0xff]
        %v804 = vld [vmem:[%s315 + $0xc58] sm:$0xff]
        %v805 = vld [vmem:[%s315 + $0xc60] sm:$0xff]
        %v806 = vld [vmem:[%s315 + $0xc68] sm:$0xff]
        %v807 = vld [vmem:[%s315 + $0xc70] sm:$0xff]
        %v808 = vld [vmem:[%s315 + $0xc78] sm:$0xff]
        %v809 = vld [vmem:[%s315 + $0xc80] sm:$0xff]
        %v810 = vld [vmem:[%s315 + $0xc88] sm:$0xff]
        %v811 = vld [vmem:[%s315 + $0xc90] sm:$0xff]
        %v812 = vld [vmem:[%s315 + $0xc98] sm:$0xff]
        %v813 = vld [vmem:[%s315 + $0xca0] sm:$0xff]
        %v814 = vld [vmem:[%s315 + $0xca8] sm:$0xff]
        %v815 = vld [vmem:[%s315 + $0xcb0] sm:$0xff]
        %v816 = vld [vmem:[%s315 + $0xcb8] sm:$0xff]
        %v817 = vld [vmem:[%s315 + $0xcc0] sm:$0xff]
        %v818 = vld [vmem:[%s315 + $0xcc8] sm:$0xff]
        %v819 = vld [vmem:[%s315 + $0xcd0] sm:$0xff]
        %v820 = vld [vmem:[%s315 + $0xcd8] sm:$0xff]
        %v821 = vld [vmem:[%s315 + $0xce0] sm:$0xff]
        %v822 = vld [vmem:[%s315 + $0xce8] sm:$0xff]
        %v823 = vld [vmem:[%s315 + $0xcf0] sm:$0xff]
        %v824 = vld [vmem:[%s315 + $0xcf8] sm:$0xff]
        %v825 = vld [vmem:[%s315 + $0xd00] sm:$0xff]
        %v826 = vld [vmem:[%s315 + $0xd08] sm:$0xff]
        %v827 = vld [vmem:[%s315 + $0xd10] sm:$0xff]
        %v828 = vld [vmem:[%s315 + $0xd18] sm:$0xff]
        %v829 = vld [vmem:[%s315 + $0xd20] sm:$0xff]
        %v830 = vld [vmem:[%s315 + $0xd28] sm:$0xff]
        %v831 = vld [vmem:[%s315 + $0xd30] sm:$0xff]
        %v832 = vld [vmem:[%s315 + $0xd38] sm:$0xff]
        %v833 = vld [vmem:[%s315 + $0xd40] sm:$0xff]
        %v834 = vld [vmem:[%s315 + $0xd48] sm:$0xff]
        %v835 = vld [vmem:[%s315 + $0xd50] sm:$0xff]
        %v836 = vld [vmem:[%s315 + $0xd58] sm:$0xff]
        %v837 = vld [vmem:[%s315 + $0xd60] sm:$0xff]
        %v838 = vld [vmem:[%s315 + $0xd68] sm:$0xff]
        %v839 = vld [vmem:[%s315 + $0xd70] sm:$0xff]
        %v840 = vld [vmem:[%s315 + $0xd78] sm:$0xff]
        %v841 = vld [vmem:[%s315 + $0xd80] sm:$0xff]
        %v842 = vld [vmem:[%s315 + $0xd88] sm:$0xff]
        %v843 = vld [vmem:[%s315 + $0xd90] sm:$0xff]
        %v844 = vld [vmem:[%s315 + $0xd98] sm:$0xff]
        %v845 = vld [vmem:[%s315 + $0xda0] sm:$0xff]
        %v846 = vld [vmem:[%s315 + $0xda8] sm:$0xff]
        %v847 = vld [vmem:[%s315 + $0xdb0] sm:$0xff]
        %v848 = vld [vmem:[%s315 + $0xdb8] sm:$0xff]
        %v849 = vld [vmem:[%s315 + $0xdc0] sm:$0xff]
        %v850 = vld [vmem:[%s315 + $0xdc8] sm:$0xff]
        %v851 = vld [vmem:[%s315 + $0xdd0] sm:$0xff]
        %v852 = vld [vmem:[%s315 + $0xdd8] sm:$0xff]
        %v853 = vld [vmem:[%s315 + $0xde0] sm:$0xff]
        %v854 = vld [vmem:[%s315 + $0xde8] sm:$0xff]
        %v855 = vld [vmem:[%s315 + $0xdf0] sm:$0xff]
        %v856 = vld [vmem:[%s315 + $0xdf8] sm:$0xff]
        %v857 = vld [vmem:[%s315 + $0xe00] sm:$0xff]
        %v858 = vld [vmem:[%s315 + $0xe08] sm:$0xff]
        %v859 = vld [vmem:[%s315 + $0xe10] sm:$0xff]
        %v860 = vld [vmem:[%s315 + $0xe18] sm:$0xff]
        %v861 = vld [vmem:[%s315 + $0xe20] sm:$0xff]
        %v862 = vld [vmem:[%s315 + $0xe28] sm:$0xff]
        %v863 = vld [vmem:[%s315 + $0xe30] sm:$0xff]
        %v864 = vld [vmem:[%s315 + $0xe38] sm:$0xff]
        %v865 = vld [vmem:[%s315 + $0xe40] sm:$0xff]
        %v866 = vld [vmem:[%s315 + $0xe48] sm:$0xff]
        %v867 = vld [vmem:[%s315 + $0xe50] sm:$0xff]
        %v868 = vld [vmem:[%s315 + $0xe58] sm:$0xff]
        %v869 = vld [vmem:[%s315 + $0xe60] sm:$0xff]
        %v870 = vld [vmem:[%s315 + $0xe68] sm:$0xff]
        %v871 = vld [vmem:[%s315 + $0xe70] sm:$0xff]
        %v872 = vld [vmem:[%s315 + $0xe78] sm:$0xff]
        %v873 = vld [vmem:[%s315 + $0xe80] sm:$0xff]
        %v874 = vld [vmem:[%s315 + $0xe88] sm:$0xff]
        %v875 = vld [vmem:[%s315 + $0xe90] sm:$0xff]
        %v876 = vld [vmem:[%s315 + $0xe98] sm:$0xff]
        %v877 = vld [vmem:[%s315 + $0xea0] sm:$0xff]
        %v878 = vld [vmem:[%s315 + $0xea8] sm:$0xff]
        %v879 = vld [vmem:[%s315 + $0xeb0] sm:$0xff]
        %v880 = vld [vmem:[%s315 + $0xeb8] sm:$0xff]
        %v881 = vld [vmem:[%s315 + $0xec0] sm:$0xff]
        %v882 = vld [vmem:[%s315 + $0xec8] sm:$0xff]
        %v883 = vld [vmem:[%s315 + $0xed0] sm:$0xff]
        %v884 = vld [vmem:[%s315 + $0xed8] sm:$0xff]
        %v885 = vld [vmem:[%s315 + $0xee0] sm:$0xff]
        %v886 = vld [vmem:[%s315 + $0xee8] sm:$0xff]
        %v887 = vld [vmem:[%s315 + $0xef0] sm:$0xff]
        %v888 = vld [vmem:[%s315 + $0xef8] sm:$0xff]
        %v889 = vld [vmem:[%s315 + $0xf00] sm:$0xff]
        %v890 = vld [vmem:[%s315 + $0xf08] sm:$0xff]
        %v891 = vld [vmem:[%s315 + $0xf10] sm:$0xff]
        %v892 = vld [vmem:[%s315 + $0xf18] sm:$0xff]
        %v893 = vld [vmem:[%s315 + $0xf20] sm:$0xff]
        %v894 = vld [vmem:[%s315 + $0xf28] sm:$0xff]
        %v895 = vld [vmem:[%s315 + $0xf30] sm:$0xff]
        %v896 = vld [vmem:[%s315 + $0xf38] sm:$0xff]
        %v897 = vld [vmem:[%s315 + $0xf40] sm:$0xff]
        %v898 = vld [vmem:[%s315 + $0xf48] sm:$0xff]
        %v899 = vld [vmem:[%s315 + $0xf50] sm:$0xff]
        %v900 = vld [vmem:[%s315 + $0xf58] sm:$0xff]
        %v901 = vld [vmem:[%s315 + $0xf60] sm:$0xff]
        %v902 = vld [vmem:[%s315 + $0xf68] sm:$0xff]
        %v903 = vld [vmem:[%s315 + $0xf70] sm:$0xff]
        %v904 = vld [vmem:[%s315 + $0xf78] sm:$0xff]
        %v905 = vld [vmem:[%s315 + $0xf80] sm:$0xff]
        %v906 = vld [vmem:[%s315 + $0xf88] sm:$0xff]
        %v907 = vld [vmem:[%s315 + $0xf90] sm:$0xff]
        %v908 = vld [vmem:[%s315 + $0xf98] sm:$0xff]
        %v909 = vld [vmem:[%s315 + $0xfa0] sm:$0xff]
        %v910 = vld [vmem:[%s315 + $0xfa8] sm:$0xff]
        %v911 = vld [vmem:[%s315 + $0xfb0] sm:$0xff]
        %v912 = vld [vmem:[%s315 + $0xfb8] sm:$0xff]
        %v913 = vld [vmem:[%s315 + $0xfc0] sm:$0xff]
        %v914 = vld [vmem:[%s315 + $0xfc8] sm:$0xff]
        %v915 = vld [vmem:[%s315 + $0xfd0] sm:$0xff]
        %v916 = vld [vmem:[%s315 + $0xfd8] sm:$0xff]
        %v917 = vld [vmem:[%s315 + $0xfe0] sm:$0xff]
        %v918 = vld [vmem:[%s315 + $0xfe8] sm:$0xff]
        %v919 = vld [vmem:[%s315 + $0xff0] sm:$0xff]
        %v920 = vld [vmem:[%s315 + $0xff8] sm:$0xff]
        %v921 = vld [vmem:[%s315 + $0x1000] sm:$0xff]
        %v922 = vld [vmem:[%s315 + $0x1008] sm:$0xff]
        %v923 = vld [vmem:[%s315 + $0x1010] sm:$0xff]
        %v924 = vld [vmem:[%s315 + $0x1018] sm:$0xff]
        %v925 = vld [vmem:[%s315 + $0x1020] sm:$0xff]
        %v926 = vld [vmem:[%s315 + $0x1028] sm:$0xff]
        %v927 = vld [vmem:[%s315 + $0x1030] sm:$0xff]
        %v928 = vld [vmem:[%s315 + $0x1038] sm:$0xff]
        %v929 = vld [vmem:[%s315 + $0x1040] sm:$0xff]
        %v930 = vld [vmem:[%s315 + $0x1048] sm:$0xff]
        %v931 = vld [vmem:[%s315 + $0x1050] sm:$0xff]
        %v932 = vld [vmem:[%s315 + $0x1058] sm:$0xff]
        %v933 = vld [vmem:[%s315 + $0x1060] sm:$0xff]
        %v934 = vld [vmem:[%s315 + $0x1068] sm:$0xff]
        %v935 = vld [vmem:[%s315 + $0x1070] sm:$0xff]
        %v936 = vld [vmem:[%s315 + $0x1078] sm:$0xff]
        %v937 = vld [vmem:[%s315 + $0x1080] sm:$0xff]
        %v938 = vld [vmem:[%s315 + $0x1088] sm:$0xff]
        %v939 = vld [vmem:[%s315 + $0x1090] sm:$0xff]
        %v940 = vld [vmem:[%s315 + $0x1098] sm:$0xff]
        %v941 = vld [vmem:[%s315 + $0x10a0] sm:$0xff]
        %v942 = vld [vmem:[%s315 + $0x10a8] sm:$0xff]
        %v943 = vld [vmem:[%s315 + $0x10b0] sm:$0xff]
        %v944 = vld [vmem:[%s315 + $0x10b8] sm:$0xff]
        %v945 = vld [vmem:[%s315 + $0x10c0] sm:$0xff]
        %v946 = vld [vmem:[%s315 + $0x10c8] sm:$0xff]
        %v947 = vld [vmem:[%s315 + $0x10d0] sm:$0xff]
        %v948 = vld [vmem:[%s315 + $0x10d8] sm:$0xff]
        %v949 = vld [vmem:[%s315 + $0x10e0] sm:$0xff]
        %v950 = vld [vmem:[%s315 + $0x10e8] sm:$0xff]
        %v951 = vld [vmem:[%s315 + $0x10f0] sm:$0xff]
        %v952 = vld [vmem:[%s315 + $0x10f8] sm:$0xff]
        %v953 = vld [vmem:[%s315 + $0x1100] sm:$0xff]
        %v954 = vld [vmem:[%s315 + $0x1108] sm:$0xff]
        %v955 = vld [vmem:[%s315 + $0x1110] sm:$0xff]
        %v956 = vld [vmem:[%s315 + $0x1118] sm:$0xff]
        %v957 = vld [vmem:[%s315 + $0x1120] sm:$0xff]
        %v958 = vld [vmem:[%s315 + $0x1128] sm:$0xff]
        %v959 = vld [vmem:[%s315 + $0x1130] sm:$0xff]
        %v960 = vld [vmem:[%s315 + $0x1138] sm:$0xff]
        %v961 = vld [vmem:[%s315 + $0x1140] sm:$0xff]
        %v962 = vld [vmem:[%s315 + $0x1148] sm:$0xff]
        %v963 = vld [vmem:[%s315 + $0x1150] sm:$0xff]
        %v964 = vld [vmem:[%s315 + $0x1158] sm:$0xff]
        %v965 = vld [vmem:[%s315 + $0x1160] sm:$0xff]
        %v966 = vld [vmem:[%s315 + $0x1168] sm:$0xff]
        %v967 = vld [vmem:[%s315 + $0x1170] sm:$0xff]
        %v968 = vld [vmem:[%s315 + $0x1178] sm:$0xff]
        %v969 = vld [vmem:[%s315 + $0x1180] sm:$0xff]
        %v970 = vld [vmem:[%s315 + $0x1188] sm:$0xff]
        %v971 = vld [vmem:[%s315 + $0x1190] sm:$0xff]
        %v972 = vld [vmem:[%s315 + $0x1198] sm:$0xff]
        %v973 = vld [vmem:[%s315 + $0x11a0] sm:$0xff]
        %v974 = vld [vmem:[%s315 + $0x11a8] sm:$0xff]
        %v975 = vld [vmem:[%s315 + $0x11b0] sm:$0xff]
        %v976 = vld [vmem:[%s315 + $0x11b8] sm:$0xff]
        %v977 = vld [vmem:[%s315 + $0x11c0] sm:$0xff]
        %v978 = vld [vmem:[%s315 + $0x11c8] sm:$0xff]
        %v979 = vld [vmem:[%s315 + $0x11d0] sm:$0xff]
        %v980 = vld [vmem:[%s315 + $0x11d8] sm:$0xff]
        %v981 = vld [vmem:[%s315 + $0x11e0] sm:$0xff]
        %v982 = vld [vmem:[%s315 + $0x11e8] sm:$0xff]
        %v983 = vld [vmem:[%s315 + $0x11f0] sm:$0xff]
        %v984 = vld [vmem:[%s315 + $0x11f8] sm:$0xff]
        %v985 = vld [vmem:[%s315 + $0x1200] sm:$0xff]
        %v986 = vld [vmem:[%s315 + $0x1208] sm:$0xff]
        %v987 = vld [vmem:[%s315 + $0x1210] sm:$0xff]
        %v988 = vld [vmem:[%s315 + $0x1218] sm:$0xff]
        %v989 = vld [vmem:[%s315 + $0x1220] sm:$0xff]
        %v990 = vld [vmem:[%s315 + $0x1228] sm:$0xff]
        %v991 = vld [vmem:[%s315 + $0x1230] sm:$0xff]
        %v992 = vld [vmem:[%s315 + $0x1238] sm:$0xff]
        %v993 = vld [vmem:[%s315 + $0x1240] sm:$0xff]
        %v994 = vld [vmem:[%s315 + $0x1248] sm:$0xff]
        %v995 = vld [vmem:[%s315 + $0x1250] sm:$0xff]
        %v996 = vld [vmem:[%s315 + $0x1258] sm:$0xff]
        %v997 = vld [vmem:[%s315 + $0x1260] sm:$0xff]
        %v998 = vld [vmem:[%s315 + $0x1268] sm:$0xff]
        %v999 = vld [vmem:[%s315 + $0x1270] sm:$0xff]
        %v1000 = vld [vmem:[%s315 + $0x1278] sm:$0xff]
        %v1001 = vld [vmem:[%s315 + $0x1280] sm:$0xff]
        %v1002 = vld [vmem:[%s315 + $0x1288] sm:$0xff]
        %v1003 = vld [vmem:[%s315 + $0x1290] sm:$0xff]
        %v1004 = vld [vmem:[%s315 + $0x1298] sm:$0xff]
        %v1005 = vld [vmem:[%s315 + $0x12a0] sm:$0xff]
        %v1006 = vld [vmem:[%s315 + $0x12a8] sm:$0xff]
        %v1007 = vld [vmem:[%s315 + $0x12b0] sm:$0xff]
        %v1008 = vld [vmem:[%s315 + $0x12b8] sm:$0xff]
        %v1009 = vld [vmem:[%s315 + $0x12c0] sm:$0xff]
        %v1010 = vld [vmem:[%s315 + $0x12c8] sm:$0xff]
        %v1011 = vld [vmem:[%s315 + $0x12d0] sm:$0xff]
        %v1012 = vld [vmem:[%s315 + $0x12d8] sm:$0xff]
        %v1013 = vld [vmem:[%s315 + $0x12e0] sm:$0xff]
        %v1014 = vld [vmem:[%s315 + $0x12e8] sm:$0xff]
        %v1015 = vld [vmem:[%s315 + $0x12f0] sm:$0xff]
        %v1016 = vld [vmem:[%s315 + $0x12f8] sm:$0xff]
        %v1017 = vld [vmem:[%s315 + $0x1300] sm:$0xff]
        %v1018 = vld [vmem:[%s315 + $0x1308] sm:$0xff]
        %v1019 = vld [vmem:[%s315 + $0x1310] sm:$0xff]
        %v1020 = vld [vmem:[%s315 + $0x1318] sm:$0xff]
        %v1021 = vld [vmem:[%s315 + $0x1320] sm:$0xff]
        %v1022 = vld [vmem:[%s315 + $0x1328] sm:$0xff]
        %v1023 = vld [vmem:[%s315 + $0x1330] sm:$0xff]
        %v1024 = vld [vmem:[%s315 + $0x1338] sm:$0xff]
        %v1025 = vld [vmem:[%s315 + $0x1340] sm:$0xff]
        %v1026 = vld [vmem:[%s315 + $0x1348] sm:$0xff]
        %v1027 = vld [vmem:[%s315 + $0x1350] sm:$0xff]
        %v1028 = vld [vmem:[%s315 + $0x1358] sm:$0xff]
        %v1029 = vld [vmem:[%s315 + $0x1360] sm:$0xff]
        %v1030 = vld [vmem:[%s315 + $0x1368] sm:$0xff]
        %v1031 = vld [vmem:[%s315 + $0x1370] sm:$0xff]
        %v1032 = vld [vmem:[%s315 + $0x1378] sm:$0xff]
        %v1033 = vld [vmem:[%s315 + $0x1380] sm:$0xff]
        %v1034 = vld [vmem:[%s315 + $0x1388] sm:$0xff]
        %v1035 = vld [vmem:[%s315 + $0x1390] sm:$0xff]
        %v1036 = vld [vmem:[%s315 + $0x1398] sm:$0xff]
        %v1037 = vld [vmem:[%s315 + $0x13a0] sm:$0xff]
        %v1038 = vld [vmem:[%s315 + $0x13a8] sm:$0xff]
        %v1039 = vld [vmem:[%s315 + $0x13b0] sm:$0xff]
        %v1040 = vld [vmem:[%s315 + $0x13b8] sm:$0xff]
        %v1041 = vld [vmem:[%s315 + $0x13c0] sm:$0xff]
        %v1042 = vld [vmem:[%s315 + $0x13c8] sm:$0xff]
        %v1043 = vld [vmem:[%s315 + $0x13d0] sm:$0xff]
        %v1044 = vld [vmem:[%s315 + $0x13d8] sm:$0xff]
        %v1045 = vld [vmem:[%s315 + $0x13e0] sm:$0xff]
        %v1046 = vld [vmem:[%s315 + $0x13e8] sm:$0xff]
        %v1047 = vld [vmem:[%s315 + $0x13f0] sm:$0xff]
        %v1048 = vld [vmem:[%s315 + $0x13f8] sm:$0xff]
        %v1049 = vld [vmem:[%s315 + $0x1400] sm:$0xff]
        %v1050 = vld [vmem:[%s315 + $0x1408] sm:$0xff]
        %v1051 = vld [vmem:[%s315 + $0x1410] sm:$0xff]
        %v1052 = vld [vmem:[%s315 + $0x1418] sm:$0xff]
        %v1053 = vld [vmem:[%s315 + $0x1420] sm:$0xff]
        %v1054 = vld [vmem:[%s315 + $0x1428] sm:$0xff]
        %v1055 = vld [vmem:[%s315 + $0x1430] sm:$0xff]
        %v1056 = vld [vmem:[%s315 + $0x1438] sm:$0xff]
        %v1057 = vld [vmem:[%s315 + $0x1440] sm:$0xff]
        %v1058 = vld [vmem:[%s315 + $0x1448] sm:$0xff]
        %v1059 = vld [vmem:[%s315 + $0x1450] sm:$0xff]
        %v1060 = vld [vmem:[%s315 + $0x1458] sm:$0xff]
        %v1061 = vld [vmem:[%s315 + $0x1460] sm:$0xff]
        %v1062 = vld [vmem:[%s315 + $0x1468] sm:$0xff]
        %v1063 = vld [vmem:[%s315 + $0x1470] sm:$0xff]
        %v1064 = vld [vmem:[%s315 + $0x1478] sm:$0xff]
        %v1065 = vld [vmem:[%s315 + $0x1480] sm:$0xff]
        %v1066 = vld [vmem:[%s315 + $0x1488] sm:$0xff]
        %v1067 = vld [vmem:[%s315 + $0x1490] sm:$0xff]
        %v1068 = vld [vmem:[%s315 + $0x1498] sm:$0xff]
        %v1069 = vld [vmem:[%s315 + $0x14a0] sm:$0xff]
        %v1070 = vld [vmem:[%s315 + $0x14a8] sm:$0xff]
        %v1071 = vld [vmem:[%s315 + $0x14b0] sm:$0xff]
        %v1072 = vld [vmem:[%s315 + $0x14b8] sm:$0xff]
        %v1073 = vld [vmem:[%s315 + $0x14c0] sm:$0xff]
        %v1074 = vld [vmem:[%s315 + $0x14c8] sm:$0xff]
        %v1075 = vld [vmem:[%s315 + $0x14d0] sm:$0xff]
        %v1076 = vld [vmem:[%s315 + $0x14d8] sm:$0xff]
        %v1077 = vld [vmem:[%s315 + $0x14e0] sm:$0xff]
        %v1078 = vld [vmem:[%s315 + $0x14e8] sm:$0xff]
        %v1079 = vld [vmem:[%s315 + $0x14f0] sm:$0xff]
        %v1080 = vld [vmem:[%s315 + $0x14f8] sm:$0xff]
        %v1081 = vld [vmem:[%s315 + $0x1500] sm:$0xff]
        %v1082 = vld [vmem:[%s315 + $0x1508] sm:$0xff]
        %v1083 = vld [vmem:[%s315 + $0x1510] sm:$0xff]
        %v1084 = vld [vmem:[%s315 + $0x1518] sm:$0xff]
        %v1085 = vld [vmem:[%s315 + $0x1520] sm:$0xff]
        %v1086 = vld [vmem:[%s315 + $0x1528] sm:$0xff]
        %v1087 = vld [vmem:[%s315 + $0x1530] sm:$0xff]
        %v1088 = vld [vmem:[%s315 + $0x1538] sm:$0xff]
        %v1089 = vld [vmem:[%s315 + $0x1540] sm:$0xff]
        %v1090 = vld [vmem:[%s315 + $0x1548] sm:$0xff]
        %v1091 = vld [vmem:[%s315 + $0x1550] sm:$0xff]
        %v1092 = vld [vmem:[%s315 + $0x1558] sm:$0xff]
        %v1093 = vld [vmem:[%s315 + $0x1560] sm:$0xff]
        %v1094 = vld [vmem:[%s315 + $0x1568] sm:$0xff]
        %v1095 = vld [vmem:[%s315 + $0x1570] sm:$0xff]
        %v1096 = vld [vmem:[%s315 + $0x1578] sm:$0xff]
        %v1097 = vld [vmem:[%s315 + $0x1580] sm:$0xff]
        %v1098 = vld [vmem:[%s315 + $0x1588] sm:$0xff]
        %v1099 = vld [vmem:[%s315 + $0x1590] sm:$0xff]
        %v1100 = vld [vmem:[%s315 + $0x1598] sm:$0xff]
        %v1101 = vld [vmem:[%s315 + $0x15a0] sm:$0xff]
        %v1102 = vld [vmem:[%s315 + $0x15a8] sm:$0xff]
        %v1103 = vld [vmem:[%s315 + $0x15b0] sm:$0xff]
        %v1104 = vld [vmem:[%s315 + $0x15b8] sm:$0xff]
        %v1105 = vld [vmem:[%s315 + $0x15c0] sm:$0xff]
        %v1106 = vld [vmem:[%s315 + $0x15c8] sm:$0xff]
        %v1107 = vld [vmem:[%s315 + $0x15d0] sm:$0xff]
        %v1108 = vld [vmem:[%s315 + $0x15d8] sm:$0xff]
        %v1109 = vld [vmem:[%s315 + $0x15e0] sm:$0xff]
        %v1110 = vld [vmem:[%s315 + $0x15e8] sm:$0xff]
        %v1111 = vld [vmem:[%s315 + $0x15f0] sm:$0xff]
        %v1112 = vld [vmem:[%s315 + $0x15f8] sm:$0xff]
        %v1113 = vld [vmem:[%s315 + $0x1600] sm:$0xff]
        %v1114 = vld [vmem:[%s315 + $0x1608] sm:$0xff]
        %v1115 = vld [vmem:[%s315 + $0x1610] sm:$0xff]
        %v1116 = vld [vmem:[%s315 + $0x1618] sm:$0xff]
        %v1117 = vld [vmem:[%s315 + $0x1620] sm:$0xff]
        %v1118 = vld [vmem:[%s315 + $0x1628] sm:$0xff]
        %v1119 = vld [vmem:[%s315 + $0x1630] sm:$0xff]
        %v1120 = vld [vmem:[%s315 + $0x1638] sm:$0xff]
        %v1121 = vld [vmem:[%s315 + $0x1640] sm:$0xff]
        %v1122 = vld [vmem:[%s315 + $0x1648] sm:$0xff]
        %v1123 = vld [vmem:[%s315 + $0x1650] sm:$0xff]
        %v1124 = vld [vmem:[%s315 + $0x1658] sm:$0xff]
        %v1125 = vld [vmem:[%s315 + $0x1660] sm:$0xff]
        %v1126 = vld [vmem:[%s315 + $0x1668] sm:$0xff]
        %v1127 = vld [vmem:[%s315 + $0x1670] sm:$0xff]
        %v1128 = vld [vmem:[%s315 + $0x1678] sm:$0xff]
        %v1129 = vld [vmem:[%s315 + $0x1680] sm:$0xff]
        %v1130 = vld [vmem:[%s315 + $0x1688] sm:$0xff]
        %v1131 = vld [vmem:[%s315 + $0x1690] sm:$0xff]
        %v1132 = vld [vmem:[%s315 + $0x1698] sm:$0xff]
        %v1133 = vld [vmem:[%s315 + $0x16a0] sm:$0xff]
        %v1134 = vld [vmem:[%s315 + $0x16a8] sm:$0xff]
        %v1135 = vld [vmem:[%s315 + $0x16b0] sm:$0xff]
        %v1136 = vld [vmem:[%s315 + $0x16b8] sm:$0xff]
        %v1137 = vld [vmem:[%s315 + $0x16c0] sm:$0xff]
        %v1138 = vld [vmem:[%s315 + $0x16c8] sm:$0xff]
        %v1139 = vld [vmem:[%s315 + $0x16d0] sm:$0xff]
        %v1140 = vld [vmem:[%s315 + $0x16d8] sm:$0xff]
        %v1141 = vld [vmem:[%s315 + $0x16e0] sm:$0xff]
        %v1142 = vld [vmem:[%s315 + $0x16e8] sm:$0xff]
        %v1143 = vld [vmem:[%s315 + $0x16f0] sm:$0xff]
        %v1144 = vld [vmem:[%s315 + $0x16f8] sm:$0xff]
        %v1145 = vld [vmem:[%s315 + $0x1700] sm:$0xff]
        %v1146 = vld [vmem:[%s315 + $0x1708] sm:$0xff]
        %v1147 = vld [vmem:[%s315 + $0x1710] sm:$0xff]
        %v1148 = vld [vmem:[%s315 + $0x1718] sm:$0xff]
        %v1149 = vld [vmem:[%s315 + $0x1720] sm:$0xff]
        %v1150 = vld [vmem:[%s315 + $0x1728] sm:$0xff]
        %v1151 = vld [vmem:[%s315 + $0x1730] sm:$0xff]
        %v1152 = vld [vmem:[%s315 + $0x1738] sm:$0xff]
        %v1153 = vld [vmem:[%s315 + $0x1740] sm:$0xff]
        %v1154 = vld [vmem:[%s315 + $0x1748] sm:$0xff]
        %v1155 = vld [vmem:[%s315 + $0x1750] sm:$0xff]
        %v1156 = vld [vmem:[%s315 + $0x1758] sm:$0xff]
        %v1157 = vld [vmem:[%s315 + $0x1760] sm:$0xff]
        %v1158 = vld [vmem:[%s315 + $0x1768] sm:$0xff]
        %v1159 = vld [vmem:[%s315 + $0x1770] sm:$0xff]
        %v1160 = vld [vmem:[%s315 + $0x1778] sm:$0xff]
        %v1161 = vld [vmem:[%s315 + $0x1780] sm:$0xff]
        %v1162 = vld [vmem:[%s315 + $0x1788] sm:$0xff]
        %v1163 = vld [vmem:[%s315 + $0x1790] sm:$0xff]
        %v1164 = vld [vmem:[%s315 + $0x1798] sm:$0xff]
        %v1165 = vld [vmem:[%s315 + $0x17a0] sm:$0xff]
        %v1166 = vld [vmem:[%s315 + $0x17a8] sm:$0xff]
        %v1167 = vld [vmem:[%s315 + $0x17b0] sm:$0xff]
        %v1168 = vld [vmem:[%s315 + $0x17b8] sm:$0xff]
        %v1169 = vld [vmem:[%s315 + $0x17c0] sm:$0xff]
        %v1170 = vld [vmem:[%s315 + $0x17c8] sm:$0xff]
        %v1171 = vld [vmem:[%s315 + $0x17d0] sm:$0xff]
        %v1172 = vld [vmem:[%s315 + $0x17d8] sm:$0xff]
        %v1173 = vld [vmem:[%s315 + $0x17e0] sm:$0xff]
        %v1174 = vld [vmem:[%s315 + $0x17e8] sm:$0xff]
        %v1175 = vld [vmem:[%s315 + $0x17f0] sm:$0xff]
        %v1176 = vld [vmem:[%s315 + $0x17f8] sm:$0xff]
        %v1177 = vld [vmem:[%s315 + $0x1800] sm:$0xff]
        %v1178 = vld [vmem:[%s315 + $0x1808] sm:$0xff]
        %v1179 = vld [vmem:[%s315 + $0x1810] sm:$0xff]
        %v1180 = vld [vmem:[%s315 + $0x1818] sm:$0xff]
        %v1181 = vld [vmem:[%s315 + $0x1820] sm:$0xff]
        %v1182 = vld [vmem:[%s315 + $0x1828] sm:$0xff]
        %v1183 = vld [vmem:[%s315 + $0x1830] sm:$0xff]
        %v1184 = vld [vmem:[%s315 + $0x1838] sm:$0xff]
        %v1185 = vld [vmem:[%s315 + $0x1840] sm:$0xff]
        %v1186 = vld [vmem:[%s315 + $0x1848] sm:$0xff]
        %v1187 = vld [vmem:[%s315 + $0x1850] sm:$0xff]
        %v1188 = vld [vmem:[%s315 + $0x1858] sm:$0xff]
        %v1189 = vld [vmem:[%s315 + $0x1860] sm:$0xff]
        %v1190 = vld [vmem:[%s315 + $0x1868] sm:$0xff]
        %v1191 = vld [vmem:[%s315 + $0x1870] sm:$0xff]
        %v1192 = vld [vmem:[%s315 + $0x1878] sm:$0xff]
        %v1193 = vld [vmem:[%s315 + $0x1880] sm:$0xff]
        %v1194 = vld [vmem:[%s315 + $0x1888] sm:$0xff]
        %v1195 = vld [vmem:[%s315 + $0x1890] sm:$0xff]
        %v1196 = vld [vmem:[%s315 + $0x1898] sm:$0xff]
        %v1197 = vld [vmem:[%s315 + $0x18a0] sm:$0xff]
        %v1198 = vld [vmem:[%s315 + $0x18a8] sm:$0xff]
        %v1199 = vld [vmem:[%s315 + $0x18b0] sm:$0xff]
        %v1200 = vld [vmem:[%s315 + $0x18b8] sm:$0xff]
        %v1201 = vld [vmem:[%s315 + $0x18c0] sm:$0xff]
        %v1202 = vld [vmem:[%s315 + $0x18c8] sm:$0xff]
        %v1203 = vld [vmem:[%s315 + $0x18d0] sm:$0xff]
        %v1204 = vld [vmem:[%s315 + $0x18d8] sm:$0xff]
        %v1205 = vld [vmem:[%s315 + $0x18e0] sm:$0xff]
        %v1206 = vld [vmem:[%s315 + $0x18e8] sm:$0xff]
        %v1207 = vld [vmem:[%s315 + $0x18f0] sm:$0xff]
        %v1208 = vld [vmem:[%s315 + $0x18f8] sm:$0xff]
        %v1209 = vld [vmem:[%s315 + $0x1900] sm:$0xff]
        %v1210 = vld [vmem:[%s315 + $0x1908] sm:$0xff]
        %v1211 = vld [vmem:[%s315 + $0x1910] sm:$0xff]
        %v1212 = vld [vmem:[%s315 + $0x1918] sm:$0xff]
        %v1213 = vld [vmem:[%s315 + $0x1920] sm:$0xff]
        %v1214 = vld [vmem:[%s315 + $0x1928] sm:$0xff]
        %v1215 = vld [vmem:[%s315 + $0x1930] sm:$0xff]
        %v1216 = vld [vmem:[%s315 + $0x1938] sm:$0xff]
        %v1217 = vld [vmem:[%s315 + $0x1940] sm:$0xff]
        %v1218 = vld [vmem:[%s315 + $0x1948] sm:$0xff]
        %v1219 = vld [vmem:[%s315 + $0x1950] sm:$0xff]
        %v1220 = vld [vmem:[%s315 + $0x1958] sm:$0xff]
        %v1221 = vld [vmem:[%s315 + $0x1960] sm:$0xff]
        %v1222 = vld [vmem:[%s315 + $0x1968] sm:$0xff]
        %v1223 = vld [vmem:[%s315 + $0x1970] sm:$0xff]
        %v1224 = vld [vmem:[%s315 + $0x1978] sm:$0xff]
        %v1225 = vld [vmem:[%s315 + $0x1980] sm:$0xff]
        %v1226 = vld [vmem:[%s315 + $0x1988] sm:$0xff]
        %v1227 = vld [vmem:[%s315 + $0x1990] sm:$0xff]
        %v1228 = vld [vmem:[%s315 + $0x1998] sm:$0xff]
        %v1229 = vld [vmem:[%s315 + $0x19a0] sm:$0xff]
        %v1230 = vld [vmem:[%s315 + $0x19a8] sm:$0xff]
        %v1231 = vld [vmem:[%s315 + $0x19b0] sm:$0xff]
        %v1232 = vld [vmem:[%s315 + $0x19b8] sm:$0xff]
        %v1233 = vld [vmem:[%s315 + $0x19c0] sm:$0xff]
        %v1234 = vld [vmem:[%s315 + $0x19c8] sm:$0xff]
        %v1235 = vld [vmem:[%s315 + $0x19d0] sm:$0xff]
        %v1236 = vld [vmem:[%s315 + $0x19d8] sm:$0xff]
        %v1237 = vld [vmem:[%s315 + $0x19e0] sm:$0xff]
        %v1238 = vld [vmem:[%s315 + $0x19e8] sm:$0xff]
        %v1239 = vld [vmem:[%s315 + $0x19f0] sm:$0xff]
        %v1240 = vld [vmem:[%s315 + $0x19f8] sm:$0xff]
        %v1241 = vld [vmem:[%s315 + $0x1a00] sm:$0xff]
        %v1242 = vld [vmem:[%s315 + $0x1a08] sm:$0xff]
        %v1243 = vld [vmem:[%s315 + $0x1a10] sm:$0xff]
        %v1244 = vld [vmem:[%s315 + $0x1a18] sm:$0xff]
        %v1245 = vld [vmem:[%s315 + $0x1a20] sm:$0xff]
        %v1246 = vld [vmem:[%s315 + $0x1a28] sm:$0xff]
        %v1247 = vld [vmem:[%s315 + $0x1a30] sm:$0xff]
        %v1248 = vld [vmem:[%s315 + $0x1a38] sm:$0xff]
        %v1249 = vld [vmem:[%s315 + $0x1a40] sm:$0xff]
        %v1250 = vld [vmem:[%s315 + $0x1a48] sm:$0xff]
        %v1251 = vld [vmem:[%s315 + $0x1a50] sm:$0xff]
        %v1252 = vld [vmem:[%s315 + $0x1a58] sm:$0xff]
        %v1253 = vld [vmem:[%s315 + $0x1a60] sm:$0xff]
        %v1254 = vld [vmem:[%s315 + $0x1a68] sm:$0xff]
        %v1255 = vld [vmem:[%s315 + $0x1a70] sm:$0xff]
        %v1256 = vld [vmem:[%s315 + $0x1a78] sm:$0xff]
        %v1257 = vld [vmem:[%s315 + $0x1a80] sm:$0xff]
        %v1258 = vld [vmem:[%s315 + $0x1a88] sm:$0xff]
        %v1259 = vld [vmem:[%s315 + $0x1a90] sm:$0xff]
        %v1260 = vld [vmem:[%s315 + $0x1a98] sm:$0xff]
        %v1261 = vld [vmem:[%s315 + $0x1aa0] sm:$0xff]
        %v1262 = vld [vmem:[%s315 + $0x1aa8] sm:$0xff]
        %v1263 = vld [vmem:[%s315 + $0x1ab0] sm:$0xff]
        %v1264 = vld [vmem:[%s315 + $0x1ab8] sm:$0xff]
        %v1265 = vld [vmem:[%s315 + $0x1ac0] sm:$0xff]
        %v1266 = vld [vmem:[%s315 + $0x1ac8] sm:$0xff]
        %v1267 = vld [vmem:[%s315 + $0x1ad0] sm:$0xff]
        %v1268 = vld [vmem:[%s315 + $0x1ad8] sm:$0xff]
        %v1269 = vld [vmem:[%s315 + $0x1ae0] sm:$0xff]
        %v1270 = vld [vmem:[%s315 + $0x1ae8] sm:$0xff]
        %v1271 = vld [vmem:[%s315 + $0x1af0] sm:$0xff]
        %v1272 = vld [vmem:[%s315 + $0x1af8] sm:$0xff]
        %v1273 = vld [vmem:[%s315 + $0x1b00] sm:$0xff]
        %v1274 = vld [vmem:[%s315 + $0x1b08] sm:$0xff]
        %v1275 = vld [vmem:[%s315 + $0x1b10] sm:$0xff]
        %v1276 = vld [vmem:[%s315 + $0x1b18] sm:$0xff]
        %v1277 = vld [vmem:[%s315 + $0x1b20] sm:$0xff]
        %v1278 = vld [vmem:[%s315 + $0x1b28] sm:$0xff]
        %v1279 = vld [vmem:[%s315 + $0x1b30] sm:$0xff]
        %v1280 = vld [vmem:[%s315 + $0x1b38] sm:$0xff]
        %v1281 = vld [vmem:[%s315 + $0x1b40] sm:$0xff]
        %v1282 = vld [vmem:[%s315 + $0x1b48] sm:$0xff]
        %v1283 = vld [vmem:[%s315 + $0x1b50] sm:$0xff]
        %v1284 = vld [vmem:[%s315 + $0x1b58] sm:$0xff]
        %v1285 = vld [vmem:[%s315 + $0x1b60] sm:$0xff]
        %v1286 = vld [vmem:[%s315 + $0x1b68] sm:$0xff]
        %v1287 = vld [vmem:[%s315 + $0x1b70] sm:$0xff]
        %v1288 = vld [vmem:[%s315 + $0x1b78] sm:$0xff]
        %v1289 = vld [vmem:[%s315 + $0x1b80] sm:$0xff]
        %v1290 = vld [vmem:[%s315 + $0x1b88] sm:$0xff]
        %v1291 = vld [vmem:[%s315 + $0x1b90] sm:$0xff]
        %v1292 = vld [vmem:[%s315 + $0x1b98] sm:$0xff]
        %v1293 = vld [vmem:[%s315 + $0x1ba0] sm:$0xff]
        %v1294 = vld [vmem:[%s315 + $0x1ba8] sm:$0xff]
        %v1295 = vld [vmem:[%s315 + $0x1bb0] sm:$0xff]
        %v1296 = vld [vmem:[%s315 + $0x1bb8] sm:$0xff]
        %v1297 = vld [vmem:[%s315 + $0x1bc0] sm:$0xff]
        %v1298 = vld [vmem:[%s315 + $0x1bc8] sm:$0xff]
        %v1299 = vld [vmem:[%s315 + $0x1bd0] sm:$0xff]
        %v1300 = vld [vmem:[%s315 + $0x1bd8] sm:$0xff]
        %v1301 = vld [vmem:[%s315 + $0x1be0] sm:$0xff]
        %v1302 = vld [vmem:[%s315 + $0x1be8] sm:$0xff]
        %v1303 = vld [vmem:[%s315 + $0x1bf0] sm:$0xff]
        %v1304 = vld [vmem:[%s315 + $0x1bf8] sm:$0xff]
        %v1305 = vld [vmem:[%s315 + $0x1c00] sm:$0xff]
        %v1306 = vld [vmem:[%s315 + $0x1c08] sm:$0xff]
        %v1307 = vld [vmem:[%s315 + $0x1c10] sm:$0xff]
        %v1308 = vld [vmem:[%s315 + $0x1c18] sm:$0xff]
        %v1309 = vld [vmem:[%s315 + $0x1c20] sm:$0xff]
        %v1310 = vld [vmem:[%s315 + $0x1c28] sm:$0xff]
        %v1311 = vld [vmem:[%s315 + $0x1c30] sm:$0xff]
        %v1312 = vld [vmem:[%s315 + $0x1c38] sm:$0xff]
        %v1313 = vld [vmem:[%s315 + $0x1c40] sm:$0xff]
        %v1314 = vld [vmem:[%s315 + $0x1c48] sm:$0xff]
        %v1315 = vld [vmem:[%s315 + $0x1c50] sm:$0xff]
        %v1316 = vld [vmem:[%s315 + $0x1c58] sm:$0xff]
        %v1317 = vld [vmem:[%s315 + $0x1c60] sm:$0xff]
        %v1318 = vld [vmem:[%s315 + $0x1c68] sm:$0xff]
        %v1319 = vld [vmem:[%s315 + $0x1c70] sm:$0xff]
        %v1320 = vld [vmem:[%s315 + $0x1c78] sm:$0xff]
        %v1321 = vld [vmem:[%s315 + $0x1c80] sm:$0xff]
        %v1322 = vld [vmem:[%s315 + $0x1c88] sm:$0xff]
        %v1323 = vld [vmem:[%s315 + $0x1c90] sm:$0xff]
        %v1324 = vld [vmem:[%s315 + $0x1c98] sm:$0xff]
        %v1325 = vld [vmem:[%s315 + $0x1ca0] sm:$0xff]
        %v1326 = vld [vmem:[%s315 + $0x1ca8] sm:$0xff]
        %v1327 = vld [vmem:[%s315 + $0x1cb0] sm:$0xff]
        %v1328 = vld [vmem:[%s315 + $0x1cb8] sm:$0xff]
        %v1329 = vld [vmem:[%s315 + $0x1cc0] sm:$0xff]
        %v1330 = vld [vmem:[%s315 + $0x1cc8] sm:$0xff]
        %v1331 = vld [vmem:[%s315 + $0x1cd0] sm:$0xff]
        %v1332 = vld [vmem:[%s315 + $0x1cd8] sm:$0xff]
        %v1333 = vld [vmem:[%s315 + $0x1ce0] sm:$0xff]
        %v1334 = vld [vmem:[%s315 + $0x1ce8] sm:$0xff]
        %v1335 = vld [vmem:[%s315 + $0x1cf0] sm:$0xff]
        %v1336 = vld [vmem:[%s315 + $0x1cf8] sm:$0xff]
        %v1337 = vld [vmem:[%s315 + $0x1d00] sm:$0xff]
        %v1338 = vld [vmem:[%s315 + $0x1d08] sm:$0xff]
        %v1339 = vld [vmem:[%s315 + $0x1d10] sm:$0xff]
        %v1340 = vld [vmem:[%s315 + $0x1d18] sm:$0xff]
        %v1341 = vld [vmem:[%s315 + $0x1d20] sm:$0xff]
        %v1342 = vld [vmem:[%s315 + $0x1d28] sm:$0xff]
        %v1343 = vld [vmem:[%s315 + $0x1d30] sm:$0xff]
        %v1344 = vld [vmem:[%s315 + $0x1d38] sm:$0xff]
        %v1345 = vld [vmem:[%s315 + $0x1d40] sm:$0xff]
        %v1346 = vld [vmem:[%s315 + $0x1d48] sm:$0xff]
        %v1347 = vld [vmem:[%s315 + $0x1d50] sm:$0xff]
        %v1348 = vld [vmem:[%s315 + $0x1d58] sm:$0xff]
        %v1349 = vld [vmem:[%s315 + $0x1d60] sm:$0xff]
        %v1350 = vld [vmem:[%s315 + $0x1d68] sm:$0xff]
        %v1351 = vld [vmem:[%s315 + $0x1d70] sm:$0xff]
        %v1352 = vld [vmem:[%s315 + $0x1d78] sm:$0xff]
        %v1353 = vld [vmem:[%s315 + $0x1d80] sm:$0xff]
        %v1354 = vld [vmem:[%s315 + $0x1d88] sm:$0xff]
        %v1355 = vld [vmem:[%s315 + $0x1d90] sm:$0xff]
        %v1356 = vld [vmem:[%s315 + $0x1d98] sm:$0xff]
        %v1357 = vld [vmem:[%s315 + $0x1da0] sm:$0xff]
        %v1358 = vld [vmem:[%s315 + $0x1da8] sm:$0xff]
        %v1359 = vld [vmem:[%s315 + $0x1db0] sm:$0xff]
        %v1360 = vld [vmem:[%s315 + $0x1db8] sm:$0xff]
        %v1361 = vld [vmem:[%s315 + $0x1dc0] sm:$0xff]
        %v1362 = vld [vmem:[%s315 + $0x1dc8] sm:$0xff]
        %v1363 = vld [vmem:[%s315 + $0x1dd0] sm:$0xff]
        %v1364 = vld [vmem:[%s315 + $0x1dd8] sm:$0xff]
        %v1365 = vld [vmem:[%s315 + $0x1de0] sm:$0xff]
        %v1366 = vld [vmem:[%s315 + $0x1de8] sm:$0xff]
        %v1367 = vld [vmem:[%s315 + $0x1df0] sm:$0xff]
        %v1368 = vld [vmem:[%s315 + $0x1df8] sm:$0xff]
        %v1369 = vld [vmem:[%s315 + $0x1e00] sm:$0xff]
        %v1370 = vld [vmem:[%s315 + $0x1e08] sm:$0xff]
        %v1371 = vld [vmem:[%s315 + $0x1e10] sm:$0xff]
        %v1372 = vld [vmem:[%s315 + $0x1e18] sm:$0xff]
        %v1373 = vld [vmem:[%s315 + $0x1e20] sm:$0xff]
        %v1374 = vld [vmem:[%s315 + $0x1e28] sm:$0xff]
        %v1375 = vld [vmem:[%s315 + $0x1e30] sm:$0xff]
        %v1376 = vld [vmem:[%s315 + $0x1e38] sm:$0xff]
        %v1377 = vld [vmem:[%s315 + $0x1e40] sm:$0xff]
        %v1378 = vld [vmem:[%s315 + $0x1e48] sm:$0xff]
        %v1379 = vld [vmem:[%s315 + $0x1e50] sm:$0xff]
        %v1380 = vld [vmem:[%s315 + $0x1e58] sm:$0xff]
        %v1381 = vld [vmem:[%s315 + $0x1e60] sm:$0xff]
        %v1382 = vld [vmem:[%s315 + $0x1e68] sm:$0xff]
        %v1383 = vld [vmem:[%s315 + $0x1e70] sm:$0xff]
        %v1384 = vld [vmem:[%s315 + $0x1e78] sm:$0xff]
        %v1385 = vld [vmem:[%s315 + $0x1e80] sm:$0xff]
        %v1386 = vld [vmem:[%s315 + $0x1e88] sm:$0xff]
        %v1387 = vld [vmem:[%s315 + $0x1e90] sm:$0xff]
        %v1388 = vld [vmem:[%s315 + $0x1e98] sm:$0xff]
        %v1389 = vld [vmem:[%s315 + $0x1ea0] sm:$0xff]
        %v1390 = vld [vmem:[%s315 + $0x1ea8] sm:$0xff]
        %v1391 = vld [vmem:[%s315 + $0x1eb0] sm:$0xff]
        %v1392 = vld [vmem:[%s315 + $0x1eb8] sm:$0xff]
        %v1393 = vld [vmem:[%s315 + $0x1ec0] sm:$0xff]
        %v1394 = vld [vmem:[%s315 + $0x1ec8] sm:$0xff]
        %v1395 = vld [vmem:[%s315 + $0x1ed0] sm:$0xff]
        %v1396 = vld [vmem:[%s315 + $0x1ed8] sm:$0xff]
        %v1397 = vld [vmem:[%s315 + $0x1ee0] sm:$0xff]
        %v1398 = vld [vmem:[%s315 + $0x1ee8] sm:$0xff]
        %v1399 = vld [vmem:[%s315 + $0x1ef0] sm:$0xff]
        %v1400 = vld [vmem:[%s315 + $0x1ef8] sm:$0xff]
        %v1401 = vld [vmem:[%s315 + $0x1f00] sm:$0xff]
        %v1402 = vld [vmem:[%s315 + $0x1f08] sm:$0xff]
        %v1403 = vld [vmem:[%s315 + $0x1f10] sm:$0xff]
        %v1404 = vld [vmem:[%s315 + $0x1f18] sm:$0xff]
        %v1405 = vld [vmem:[%s315 + $0x1f20] sm:$0xff]
        %v1406 = vld [vmem:[%s315 + $0x1f28] sm:$0xff]
        %v1407 = vld [vmem:[%s315 + $0x1f30] sm:$0xff]
        %v1408 = vld [vmem:[%s315 + $0x1f38] sm:$0xff]
        %v1409 = vld [vmem:[%s315 + $0x1f40] sm:$0xff]
        %v1410 = vld [vmem:[%s315 + $0x1f48] sm:$0xff]
        %v1411 = vld [vmem:[%s315 + $0x1f50] sm:$0xff]
        %v1412 = vld [vmem:[%s315 + $0x1f58] sm:$0xff]
        %v1413 = vld [vmem:[%s315 + $0x1f60] sm:$0xff]
        %v1414 = vld [vmem:[%s315 + $0x1f68] sm:$0xff]
        %v1415 = vld [vmem:[%s315 + $0x1f70] sm:$0xff]
        %v1416 = vld [vmem:[%s315 + $0x1f78] sm:$0xff]
        %v1417 = vld [vmem:[%s315 + $0x1f80] sm:$0xff]
        %v1418 = vld [vmem:[%s315 + $0x1f88] sm:$0xff]
        %v1419 = vld [vmem:[%s315 + $0x1f90] sm:$0xff]
        %v1420 = vld [vmem:[%s315 + $0x1f98] sm:$0xff]
        %v1421 = vld [vmem:[%s315 + $0x1fa0] sm:$0xff]
        %v1422 = vld [vmem:[%s315 + $0x1fa8] sm:$0xff]
        %v1423 = vld [vmem:[%s315 + $0x1fb0] sm:$0xff]
        %v1424 = vld [vmem:[%s315 + $0x1fb8] sm:$0xff]
        %v1425 = vld [vmem:[%s315 + $0x1fc0] sm:$0xff]
        %v1426 = vld [vmem:[%s315 + $0x1fc8] sm:$0xff]
        %v1427 = vld [vmem:[%s315 + $0x1fd0] sm:$0xff]
        %v1428 = vld [vmem:[%s315 + $0x1fd8] sm:$0xff]
        %v1429 = vld [vmem:[%s315 + $0x1fe0] sm:$0xff]
        %v1430 = vld [vmem:[%s315 + $0x1fe8] sm:$0xff]
        %v1431 = vld [vmem:[%s315 + $0x1ff0] sm:$0xff]
        %v1432 = vld [vmem:[%s315 + $0x1ff8] sm:$0xff]
        %1437 = vst [vmem:[#allocation1] ss:$4 sm:$0xff] %v405
        %s1438 = scalar_lea.vmem [#allocation1], 32
        %1439 = vst [vmem:[%s1438] ss:$4 sm:$0xff] %v406
        %v1440 = vld.sshfl [vmem:[#allocation1] sm:$0xff pattern:$0x73625140]
        %v1441 = vld.sshfl [vmem:[#allocation1 + $0x8] sm:$0xff pattern:$0x73625140]
        %v1442 = vld.sshfl [vmem:[#allocation1 + $0x10] sm:$0xff pattern:$0x73625140]
        %v1443 = vld.sshfl [vmem:[#allocation1 + $0x18] sm:$0xff pattern:$0x73625140]
        %v1444 = vld.sshfl [vmem:[#allocation1 + $0x20] sm:$0xff pattern:$0x73625140]
        %v1445 = vld.sshfl [vmem:[#allocation1 + $0x28] sm:$0xff pattern:$0x73625140]
        %v1446 = vld.sshfl [vmem:[#allocation1 + $0x30] sm:$0xff pattern:$0x73625140]
        %v1447 = vld.sshfl [vmem:[#allocation1 + $0x38] sm:$0xff pattern:$0x73625140]
        %1448 = vst [vmem:[#allocation1] ss:$4 sm:$0xff] %v407
        %1449 = vst [vmem:[%s1438] ss:$4 sm:$0xff] %v408
        %v1450 = vld.sshfl [vmem:[#allocation1] sm:$0xff pattern:$0x73625140]
        %v1451 = vld.sshfl [vmem:[#allocation1 + $0x8] sm:$0xff pattern:$0x73625140]
        %v1452 = vld.sshfl [vmem:[#allocation1 + $0x10] sm:$0xff pattern:$0x73625140]
        %v1453 = vld.sshfl [vmem:[#allocation1 + $0x18] sm:$0xff pattern:$0x73625140]
        %v1454 = vld.sshfl [vmem:[#allocation1 + $0x20] sm:$0xff pattern:$0x73625140]
        %v1455 = vld.sshfl [vmem:[#allocation1 + $0x28] sm:$0xff pattern:$0x73625140]
        %v1456 = vld.sshfl [vmem:[#allocation1 + $0x30] sm:$0xff pattern:$0x73625140]
        %v1457 = vld.sshfl [vmem:[#allocation1 + $0x38] sm:$0xff pattern:$0x73625140]
        %1474 = vmatpush.msra.mxu0 %v469
        %1475 = vmatpush.msra.mxu0 %v465
        %1476 = vmatpush.msra.mxu0 %v461
        %1477 = vmatpush.msra.mxu0 %v457
        %1478 = vmatpush.msra.mxu0 %v453
        %1479 = vmatpush.msra.mxu0 %v449
        %1480 = vmatpush.msra.mxu0 %v445
        %1481 = vmatpush.msra.mxu0 %v441
        %1482 = vmatpush.msra.mxu0 %v437
        %1483 = vmatpush.msra.mxu0 %v433
        %1484 = vmatpush.msra.mxu0 %v429
        %1485 = vmatpush.msra.mxu0 %v425
        %1486 = vmatpush.msra.mxu0 %v421
        %1487 = vmatpush.msra.mxu0 %v417
        %1488 = vmatpush.msra.mxu0 %v413
        %1489 = vmatpush.msra.mxu0 %v409
        %1490 = vmatmul.f32.gmra.mxu0 %v1440
        %v1491 = vpop.f32.mrf.mxu0
        %v1492 = vadd.f32 0.0, %v1491
        %1493 = vdwg.mxu0
        %1494 = vmatpush.msra.mxu0 %v533
        %1495 = vmatpush.msra.mxu0 %v529
        %1496 = vmatpush.msra.mxu0 %v525
        %1497 = vmatpush.msra.mxu0 %v521
        %1498 = vmatpush.msra.mxu0 %v517
        %1499 = vmatpush.msra.mxu0 %v513
        %1500 = vmatpush.msra.mxu0 %v509
        %1501 = vmatpush.msra.mxu0 %v505
        %1502 = vmatpush.msra.mxu0 %v501
        %1503 = vmatpush.msra.mxu0 %v497
        %1504 = vmatpush.msra.mxu0 %v493
        %1505 = vmatpush.msra.mxu0 %v489
        %1506 = vmatpush.msra.mxu0 %v485
        %1507 = vmatpush.msra.mxu0 %v481
        %1508 = vmatpush.msra.mxu0 %v477
        %1509 = vmatpush.msra.mxu0 %v473
        %1510 = vmatmul.f32.gmra.mxu0 %v1441
        %v1511 = vpop.f32.mrf.mxu0
        %v1512 = vadd.f32 %v1492, %v1511
        %1513 = vdwg.mxu0
        %1514 = vmatpush.msra.mxu0 %v597
        %1515 = vmatpush.msra.mxu0 %v593
        %1516 = vmatpush.msra.mxu0 %v589
        %1517 = vmatpush.msra.mxu0 %v585
        %1518 = vmatpush.msra.mxu0 %v581
        %1519 = vmatpush.msra.mxu0 %v577
        %1520 = vmatpush.msra.mxu0 %v573
        %1521 = vmatpush.msra.mxu0 %v569
        %1522 = vmatpush.msra.mxu0 %v565
        %1523 = vmatpush.msra.mxu0 %v561
        %1524 = vmatpush.msra.mxu0 %v557
        %1525 = vmatpush.msra.mxu0 %v553
        %1526 = vmatpush.msra.mxu0 %v549
        %1527 = vmatpush.msra.mxu0 %v545
        %1528 = vmatpush.msra.mxu0 %v541
        %1529 = vmatpush.msra.mxu0 %v537
        %1530 = vmatmul.f32.gmra.mxu0 %v1442
        %v1531 = vpop.f32.mrf.mxu0
        %v1532 = vadd.f32 %v1512, %v1531
        %1533 = vdwg.mxu0
        %1534 = vmatpush.msra.mxu0 %v661
        %1535 = vmatpush.msra.mxu0 %v657
        %1536 = vmatpush.msra.mxu0 %v653
        %1537 = vmatpush.msra.mxu0 %v649
        %1538 = vmatpush.msra.mxu0 %v645
        %1539 = vmatpush.msra.mxu0 %v641
        %1540 = vmatpush.msra.mxu0 %v637
        %1541 = vmatpush.msra.mxu0 %v633
        %1542 = vmatpush.msra.mxu0 %v629
        %1543 = vmatpush.msra.mxu0 %v625
        %1544 = vmatpush.msra.mxu0 %v621
        %1545 = vmatpush.msra.mxu0 %v617
        %1546 = vmatpush.msra.mxu0 %v613
        %1547 = vmatpush.msra.mxu0 %v609
        %1548 = vmatpush.msra.mxu0 %v605
        %1549 = vmatpush.msra.mxu0 %v601
        %1550 = vmatmul.f32.gmra.mxu0 %v1443
        %v1551 = vpop.f32.mrf.mxu0
        %v1552 = vadd.f32 %v1532, %v1551
        %1553 = vdwg.mxu0
        %1554 = vmatpush.msra.mxu0 %v725
        %1555 = vmatpush.msra.mxu0 %v721
        %1556 = vmatpush.msra.mxu0 %v717
        %1557 = vmatpush.msra.mxu0 %v713
        %1558 = vmatpush.msra.mxu0 %v709
        %1559 = vmatpush.msra.mxu0 %v705
        %1560 = vmatpush.msra.mxu0 %v701
        %1561 = vmatpush.msra.mxu0 %v697
        %1562 = vmatpush.msra.mxu0 %v693
        %1563 = vmatpush.msra.mxu0 %v689
        %1564 = vmatpush.msra.mxu0 %v685
        %1565 = vmatpush.msra.mxu0 %v681
        %1566 = vmatpush.msra.mxu0 %v677
        %1567 = vmatpush.msra.mxu0 %v673
        %1568 = vmatpush.msra.mxu0 %v669
        %1569 = vmatpush.msra.mxu0 %v665
        %1570 = vmatmul.f32.gmra.mxu0 %v1444
        %v1571 = vpop.f32.mrf.mxu0
        %v1572 = vadd.f32 %v1552, %v1571
        %1573 = vdwg.mxu0
        %1574 = vmatpush.msra.mxu0 %v789
        %1575 = vmatpush.msra.mxu0 %v785
        %1576 = vmatpush.msra.mxu0 %v781
        %1577 = vmatpush.msra.mxu0 %v777
        %1578 = vmatpush.msra.mxu0 %v773
        %1579 = vmatpush.msra.mxu0 %v769
        %1580 = vmatpush.msra.mxu0 %v765
        %1581 = vmatpush.msra.mxu0 %v761
        %1582 = vmatpush.msra.mxu0 %v757
        %1583 = vmatpush.msra.mxu0 %v753
        %1584 = vmatpush.msra.mxu0 %v749
        %1585 = vmatpush.msra.mxu0 %v745
        %1586 = vmatpush.msra.mxu0 %v741
        %1587 = vmatpush.msra.mxu0 %v737
        %1588 = vmatpush.msra.mxu0 %v733
        %1589 = vmatpush.msra.mxu0 %v729
        %1590 = vmatmul.f32.gmra.mxu0 %v1445
        %v1591 = vpop.f32.mrf.mxu0
        %v1592 = vadd.f32 %v1572, %v1591
        %1593 = vdwg.mxu0
        %1594 = vmatpush.msra.mxu0 %v853
        %1595 = vmatpush.msra.mxu0 %v849
        %1596 = vmatpush.msra.mxu0 %v845
        %1597 = vmatpush.msra.mxu0 %v841
        %1598 = vmatpush.msra.mxu0 %v837
        %1599 = vmatpush.msra.mxu0 %v833
        %1600 = vmatpush.msra.mxu0 %v829
        %1601 = vmatpush.msra.mxu0 %v825
        %1602 = vmatpush.msra.mxu0 %v821
        %1603 = vmatpush.msra.mxu0 %v817
        %1604 = vmatpush.msra.mxu0 %v813
        %1605 = vmatpush.msra.mxu0 %v809
        %1606 = vmatpush.msra.mxu0 %v805
        %1607 = vmatpush.msra.mxu0 %v801
        %1608 = vmatpush.msra.mxu0 %v797
        %1609 = vmatpush.msra.mxu0 %v793
        %1610 = vmatmul.f32.gmra.mxu0 %v1446
        %v1611 = vpop.f32.mrf.mxu0
        %v1612 = vadd.f32 %v1592, %v1611
        %1613 = vdwg.mxu0
        %1614 = vmatpush.msra.mxu0 %v917
        %1615 = vmatpush.msra.mxu0 %v913
        %1616 = vmatpush.msra.mxu0 %v909
        %1617 = vmatpush.msra.mxu0 %v905
        %1618 = vmatpush.msra.mxu0 %v901
        %1619 = vmatpush.msra.mxu0 %v897
        %1620 = vmatpush.msra.mxu0 %v893
        %1621 = vmatpush.msra.mxu0 %v889
        %1622 = vmatpush.msra.mxu0 %v885
        %1623 = vmatpush.msra.mxu0 %v881
        %1624 = vmatpush.msra.mxu0 %v877
        %1625 = vmatpush.msra.mxu0 %v873
        %1626 = vmatpush.msra.mxu0 %v869
        %1627 = vmatpush.msra.mxu0 %v865
        %1628 = vmatpush.msra.mxu0 %v861
        %1629 = vmatpush.msra.mxu0 %v857
        %1630 = vmatmul.f32.gmra.mxu0 %v1447
        %v1631 = vpop.f32.mrf.mxu0
        %v1632 = vadd.f32 %v1612, %v1631
        %1633 = vdwg.mxu0
        %1634 = vmatpush.msra.mxu0 %v981
        %1635 = vmatpush.msra.mxu0 %v977
        %1636 = vmatpush.msra.mxu0 %v973
        %1637 = vmatpush.msra.mxu0 %v969
        %1638 = vmatpush.msra.mxu0 %v965
        %1639 = vmatpush.msra.mxu0 %v961
        %1640 = vmatpush.msra.mxu0 %v957
        %1641 = vmatpush.msra.mxu0 %v953
        %1642 = vmatpush.msra.mxu0 %v949
        %1643 = vmatpush.msra.mxu0 %v945
        %1644 = vmatpush.msra.mxu0 %v941
        %1645 = vmatpush.msra.mxu0 %v937
        %1646 = vmatpush.msra.mxu0 %v933
        %1647 = vmatpush.msra.mxu0 %v929
        %1648 = vmatpush.msra.mxu0 %v925
        %1649 = vmatpush.msra.mxu0 %v921
        %1650 = vmatmul.f32.gmra.mxu0 %v1450
        %v1651 = vpop.f32.mrf.mxu0
        %v1652 = vadd.f32 %v1632, %v1651
        %1653 = vdwg.mxu0
        %1654 = vmatpush.msra.mxu0 %v1045
        %1655 = vmatpush.msra.mxu0 %v1041
        %1656 = vmatpush.msra.mxu0 %v1037
        %1657 = vmatpush.msra.mxu0 %v1033
        %1658 = vmatpush.msra.mxu0 %v1029
        %1659 = vmatpush.msra.mxu0 %v1025
        %1660 = vmatpush.msra.mxu0 %v1021
        %1661 = vmatpush.msra.mxu0 %v1017
        %1662 = vmatpush.msra.mxu0 %v1013
        %1663 = vmatpush.msra.mxu0 %v1009
        %1664 = vmatpush.msra.mxu0 %v1005
        %1665 = vmatpush.msra.mxu0 %v1001
        %1666 = vmatpush.msra.mxu0 %v997
        %1667 = vmatpush.msra.mxu0 %v993
        %1668 = vmatpush.msra.mxu0 %v989
        %1669 = vmatpush.msra.mxu0 %v985
        %1670 = vmatmul.f32.gmra.mxu0 %v1451
        %v1671 = vpop.f32.mrf.mxu0
        %v1672 = vadd.f32 %v1652, %v1671
        %1673 = vdwg.mxu0
        %1674 = vmatpush.msra.mxu0 %v1109
        %1675 = vmatpush.msra.mxu0 %v1105
        %1676 = vmatpush.msra.mxu0 %v1101
        %1677 = vmatpush.msra.mxu0 %v1097
        %1678 = vmatpush.msra.mxu0 %v1093
        %1679 = vmatpush.msra.mxu0 %v1089
        %1680 = vmatpush.msra.mxu0 %v1085
        %1681 = vmatpush.msra.mxu0 %v1081
        %1682 = vmatpush.msra.mxu0 %v1077
        %1683 = vmatpush.msra.mxu0 %v1073
        %1684 = vmatpush.msra.mxu0 %v1069
        %1685 = vmatpush.msra.mxu0 %v1065
        %1686 = vmatpush.msra.mxu0 %v1061
        %1687 = vmatpush.msra.mxu0 %v1057
        %1688 = vmatpush.msra.mxu0 %v1053
        %1689 = vmatpush.msra.mxu0 %v1049
        %1690 = vmatmul.f32.gmra.mxu0 %v1452
        %v1691 = vpop.f32.mrf.mxu0
        %v1692 = vadd.f32 %v1672, %v1691
        %1693 = vdwg.mxu0
        %1694 = vmatpush.msra.mxu0 %v1173
        %1695 = vmatpush.msra.mxu0 %v1169
        %1696 = vmatpush.msra.mxu0 %v1165
        %1697 = vmatpush.msra.mxu0 %v1161
        %1698 = vmatpush.msra.mxu0 %v1157
        %1699 = vmatpush.msra.mxu0 %v1153
        %1700 = vmatpush.msra.mxu0 %v1149
        %1701 = vmatpush.msra.mxu0 %v1145
        %1702 = vmatpush.msra.mxu0 %v1141
        %1703 = vmatpush.msra.mxu0 %v1137
        %1704 = vmatpush.msra.mxu0 %v1133
        %1705 = vmatpush.msra.mxu0 %v1129
        %1706 = vmatpush.msra.mxu0 %v1125
        %1707 = vmatpush.msra.mxu0 %v1121
        %1708 = vmatpush.msra.mxu0 %v1117
        %1709 = vmatpush.msra.mxu0 %v1113
        %1710 = vmatmul.f32.gmra.mxu0 %v1453
        %v1711 = vpop.f32.mrf.mxu0
        %v1712 = vadd.f32 %v1692, %v1711
        %1713 = vdwg.mxu0
        %1714 = vmatpush.msra.mxu0 %v1237
        %1715 = vmatpush.msra.mxu0 %v1233
        %1716 = vmatpush.msra.mxu0 %v1229
        %1717 = vmatpush.msra.mxu0 %v1225
        %1718 = vmatpush.msra.mxu0 %v1221
        %1719 = vmatpush.msra.mxu0 %v1217
        %1720 = vmatpush.msra.mxu0 %v1213
        %1721 = vmatpush.msra.mxu0 %v1209
        %1722 = vmatpush.msra.mxu0 %v1205
        %1723 = vmatpush.msra.mxu0 %v1201
        %1724 = vmatpush.msra.mxu0 %v1197
        %1725 = vmatpush.msra.mxu0 %v1193
        %1726 = vmatpush.msra.mxu0 %v1189
        %1727 = vmatpush.msra.mxu0 %v1185
        %1728 = vmatpush.msra.mxu0 %v1181
        %1729 = vmatpush.msra.mxu0 %v1177
        %1730 = vmatmul.f32.gmra.mxu0 %v1454
        %v1731 = vpop.f32.mrf.mxu0
        %v1732 = vadd.f32 %v1712, %v1731
        %1733 = vdwg.mxu0
        %1734 = vmatpush.msra.mxu0 %v1301
        %1735 = vmatpush.msra.mxu0 %v1297
        %1736 = vmatpush.msra.mxu0 %v1293
        %1737 = vmatpush.msra.mxu0 %v1289
        %1738 = vmatpush.msra.mxu0 %v1285
        %1739 = vmatpush.msra.mxu0 %v1281
        %1740 = vmatpush.msra.mxu0 %v1277
        %1741 = vmatpush.msra.mxu0 %v1273
        %1742 = vmatpush.msra.mxu0 %v1269
        %1743 = vmatpush.msra.mxu0 %v1265
        %1744 = vmatpush.msra.mxu0 %v1261
        %1745 = vmatpush.msra.mxu0 %v1257
        %1746 = vmatpush.msra.mxu0 %v1253
        %1747 = vmatpush.msra.mxu0 %v1249
        %1748 = vmatpush.msra.mxu0 %v1245
        %1749 = vmatpush.msra.mxu0 %v1241
        %1750 = vmatmul.f32.gmra.mxu0 %v1455
        %v1751 = vpop.f32.mrf.mxu0
        %v1752 = vadd.f32 %v1732, %v1751
        %1753 = vdwg.mxu0
        %1754 = vmatpush.msra.mxu0 %v1365
        %1755 = vmatpush.msra.mxu0 %v1361
        %1756 = vmatpush.msra.mxu0 %v1357
        %1757 = vmatpush.msra.mxu0 %v1353
        %1758 = vmatpush.msra.mxu0 %v1349
        %1759 = vmatpush.msra.mxu0 %v1345
        %1760 = vmatpush.msra.mxu0 %v1341
        %1761 = vmatpush.msra.mxu0 %v1337
        %1762 = vmatpush.msra.mxu0 %v1333
        %1763 = vmatpush.msra.mxu0 %v1329
        %1764 = vmatpush.msra.mxu0 %v1325
        %1765 = vmatpush.msra.mxu0 %v1321
        %1766 = vmatpush.msra.mxu0 %v1317
        %1767 = vmatpush.msra.mxu0 %v1313
        %1768 = vmatpush.msra.mxu0 %v1309
        %1769 = vmatpush.msra.mxu0 %v1305
        %1770 = vmatmul.f32.gmra.mxu0 %v1456
        %v1771 = vpop.f32.mrf.mxu0
        %v1772 = vadd.f32 %v1752, %v1771
        %1773 = vdwg.mxu0
        %1774 = vmatpush.msra.mxu0 %v1429
        %1775 = vmatpush.msra.mxu0 %v1425
        %1776 = vmatpush.msra.mxu0 %v1421
        %1777 = vmatpush.msra.mxu0 %v1417
        %1778 = vmatpush.msra.mxu0 %v1413
        %1779 = vmatpush.msra.mxu0 %v1409
        %1780 = vmatpush.msra.mxu0 %v1405
        %1781 = vmatpush.msra.mxu0 %v1401
        %1782 = vmatpush.msra.mxu0 %v1397
        %1783 = vmatpush.msra.mxu0 %v1393
        %1784 = vmatpush.msra.mxu0 %v1389
        %1785 = vmatpush.msra.mxu0 %v1385
        %1786 = vmatpush.msra.mxu0 %v1381
        %1787 = vmatpush.msra.mxu0 %v1377
        %1788 = vmatpush.msra.mxu0 %v1373
        %1789 = vmatpush.msra.mxu0 %v1369
        %1790 = vmatmul.f32.gmra.mxu0 %v1457
        %v1791 = vpop.f32.mrf.mxu0
        %v1792 = vadd.f32 %v1772, %v1791
        %1793 = vdwg.mxu0
        %1794 = vmatpush.msra.mxu0 %v470
        %1795 = vmatpush.msra.mxu0 %v466
        %1796 = vmatpush.msra.mxu0 %v462
        %1797 = vmatpush.msra.mxu0 %v458
        %1798 = vmatpush.msra.mxu0 %v454
        %1799 = vmatpush.msra.mxu0 %v450
        %1800 = vmatpush.msra.mxu0 %v446
        %1801 = vmatpush.msra.mxu0 %v442
        %1802 = vmatpush.msra.mxu0 %v438
        %1803 = vmatpush.msra.mxu0 %v434
        %1804 = vmatpush.msra.mxu0 %v430
        %1805 = vmatpush.msra.mxu0 %v426
        %1806 = vmatpush.msra.mxu0 %v422
        %1807 = vmatpush.msra.mxu0 %v418
        %1808 = vmatpush.msra.mxu0 %v414
        %1809 = vmatpush.msra.mxu0 %v410
        %1810 = vmatmul.f32.gmra.mxu0 %v1440
        %v1811 = vpop.f32.mrf.mxu0
        %v1812 = vadd.f32 0.0, %v1811
        %1813 = vdwg.mxu0
        %1814 = vmatpush.msra.mxu0 %v534
        %1815 = vmatpush.msra.mxu0 %v530
        %1816 = vmatpush.msra.mxu0 %v526
        %1817 = vmatpush.msra.mxu0 %v522
        %1818 = vmatpush.msra.mxu0 %v518
        %1819 = vmatpush.msra.mxu0 %v514
        %1820 = vmatpush.msra.mxu0 %v510
        %1821 = vmatpush.msra.mxu0 %v506
        %1822 = vmatpush.msra.mxu0 %v502
        %1823 = vmatpush.msra.mxu0 %v498
        %1824 = vmatpush.msra.mxu0 %v494
        %1825 = vmatpush.msra.mxu0 %v490
        %1826 = vmatpush.msra.mxu0 %v486
        %1827 = vmatpush.msra.mxu0 %v482
        %1828 = vmatpush.msra.mxu0 %v478
        %1829 = vmatpush.msra.mxu0 %v474
        %1830 = vmatmul.f32.gmra.mxu0 %v1441
        %v1831 = vpop.f32.mrf.mxu0
        %v1832 = vadd.f32 %v1812, %v1831
        %1833 = vdwg.mxu0
        %1834 = vmatpush.msra.mxu0 %v598
        %1835 = vmatpush.msra.mxu0 %v594
        %1836 = vmatpush.msra.mxu0 %v590
        %1837 = vmatpush.msra.mxu0 %v586
        %1838 = vmatpush.msra.mxu0 %v582
        %1839 = vmatpush.msra.mxu0 %v578
        %1840 = vmatpush.msra.mxu0 %v574
        %1841 = vmatpush.msra.mxu0 %v570
        %1842 = vmatpush.msra.mxu0 %v566
        %1843 = vmatpush.msra.mxu0 %v562
        %1844 = vmatpush.msra.mxu0 %v558
        %1845 = vmatpush.msra.mxu0 %v554
        %1846 = vmatpush.msra.mxu0 %v550
        %1847 = vmatpush.msra.mxu0 %v546
        %1848 = vmatpush.msra.mxu0 %v542
        %1849 = vmatpush.msra.mxu0 %v538
        %1850 = vmatmul.f32.gmra.mxu0 %v1442
        %v1851 = vpop.f32.mrf.mxu0
        %v1852 = vadd.f32 %v1832, %v1851
        %1853 = vdwg.mxu0
        %1854 = vmatpush.msra.mxu0 %v662
        %1855 = vmatpush.msra.mxu0 %v658
        %1856 = vmatpush.msra.mxu0 %v654
        %1857 = vmatpush.msra.mxu0 %v650
        %1858 = vmatpush.msra.mxu0 %v646
        %1859 = vmatpush.msra.mxu0 %v642
        %1860 = vmatpush.msra.mxu0 %v638
        %1861 = vmatpush.msra.mxu0 %v634
        %1862 = vmatpush.msra.mxu0 %v630
        %1863 = vmatpush.msra.mxu0 %v626
        %1864 = vmatpush.msra.mxu0 %v622
        %1865 = vmatpush.msra.mxu0 %v618
        %1866 = vmatpush.msra.mxu0 %v614
        %1867 = vmatpush.msra.mxu0 %v610
        %1868 = vmatpush.msra.mxu0 %v606
        %1869 = vmatpush.msra.mxu0 %v602
        %1870 = vmatmul.f32.gmra.mxu0 %v1443
        %v1871 = vpop.f32.mrf.mxu0
        %v1872 = vadd.f32 %v1852, %v1871
        %1873 = vdwg.mxu0
        %1874 = vmatpush.msra.mxu0 %v726
        %1875 = vmatpush.msra.mxu0 %v722
        %1876 = vmatpush.msra.mxu0 %v718
        %1877 = vmatpush.msra.mxu0 %v714
        %1878 = vmatpush.msra.mxu0 %v710
        %1879 = vmatpush.msra.mxu0 %v706
        %1880 = vmatpush.msra.mxu0 %v702
        %1881 = vmatpush.msra.mxu0 %v698
        %1882 = vmatpush.msra.mxu0 %v694
        %1883 = vmatpush.msra.mxu0 %v690
        %1884 = vmatpush.msra.mxu0 %v686
        %1885 = vmatpush.msra.mxu0 %v682
        %1886 = vmatpush.msra.mxu0 %v678
        %1887 = vmatpush.msra.mxu0 %v674
        %1888 = vmatpush.msra.mxu0 %v670
        %1889 = vmatpush.msra.mxu0 %v666
        %1890 = vmatmul.f32.gmra.mxu0 %v1444
        %v1891 = vpop.f32.mrf.mxu0
        %v1892 = vadd.f32 %v1872, %v1891
        %1893 = vdwg.mxu0
        %1894 = vmatpush.msra.mxu0 %v790
        %1895 = vmatpush.msra.mxu0 %v786
        %1896 = vmatpush.msra.mxu0 %v782
        %1897 = vmatpush.msra.mxu0 %v778
        %1898 = vmatpush.msra.mxu0 %v774
        %1899 = vmatpush.msra.mxu0 %v770
        %1900 = vmatpush.msra.mxu0 %v766
        %1901 = vmatpush.msra.mxu0 %v762
        %1902 = vmatpush.msra.mxu0 %v758
        %1903 = vmatpush.msra.mxu0 %v754
        %1904 = vmatpush.msra.mxu0 %v750
        %1905 = vmatpush.msra.mxu0 %v746
        %1906 = vmatpush.msra.mxu0 %v742
        %1907 = vmatpush.msra.mxu0 %v738
        %1908 = vmatpush.msra.mxu0 %v734
        %1909 = vmatpush.msra.mxu0 %v730
        %1910 = vmatmul.f32.gmra.mxu0 %v1445
        %v1911 = vpop.f32.mrf.mxu0
        %v1912 = vadd.f32 %v1892, %v1911
        %1913 = vdwg.mxu0
        %1914 = vmatpush.msra.mxu0 %v854
        %1915 = vmatpush.msra.mxu0 %v850
        %1916 = vmatpush.msra.mxu0 %v846
        %1917 = vmatpush.msra.mxu0 %v842
        %1918 = vmatpush.msra.mxu0 %v838
        %1919 = vmatpush.msra.mxu0 %v834
        %1920 = vmatpush.msra.mxu0 %v830
        %1921 = vmatpush.msra.mxu0 %v826
        %1922 = vmatpush.msra.mxu0 %v822
        %1923 = vmatpush.msra.mxu0 %v818
        %1924 = vmatpush.msra.mxu0 %v814
        %1925 = vmatpush.msra.mxu0 %v810
        %1926 = vmatpush.msra.mxu0 %v806
        %1927 = vmatpush.msra.mxu0 %v802
        %1928 = vmatpush.msra.mxu0 %v798
        %1929 = vmatpush.msra.mxu0 %v794
        %1930 = vmatmul.f32.gmra.mxu0 %v1446
        %v1931 = vpop.f32.mrf.mxu0
        %v1932 = vadd.f32 %v1912, %v1931
        %1933 = vdwg.mxu0
        %1934 = vmatpush.msra.mxu0 %v918
        %1935 = vmatpush.msra.mxu0 %v914
        %1936 = vmatpush.msra.mxu0 %v910
        %1937 = vmatpush.msra.mxu0 %v906
        %1938 = vmatpush.msra.mxu0 %v902
        %1939 = vmatpush.msra.mxu0 %v898
        %1940 = vmatpush.msra.mxu0 %v894
        %1941 = vmatpush.msra.mxu0 %v890
        %1942 = vmatpush.msra.mxu0 %v886
        %1943 = vmatpush.msra.mxu0 %v882
        %1944 = vmatpush.msra.mxu0 %v878
        %1945 = vmatpush.msra.mxu0 %v874
        %1946 = vmatpush.msra.mxu0 %v870
        %1947 = vmatpush.msra.mxu0 %v866
        %1948 = vmatpush.msra.mxu0 %v862
        %1949 = vmatpush.msra.mxu0 %v858
        %1950 = vmatmul.f32.gmra.mxu0 %v1447
        %v1951 = vpop.f32.mrf.mxu0
        %v1952 = vadd.f32 %v1932, %v1951
        %1953 = vdwg.mxu0
        %1954 = vmatpush.msra.mxu0 %v982
        %1955 = vmatpush.msra.mxu0 %v978
        %1956 = vmatpush.msra.mxu0 %v974
        %1957 = vmatpush.msra.mxu0 %v970
        %1958 = vmatpush.msra.mxu0 %v966
        %1959 = vmatpush.msra.mxu0 %v962
        %1960 = vmatpush.msra.mxu0 %v958
        %1961 = vmatpush.msra.mxu0 %v954
        %1962 = vmatpush.msra.mxu0 %v950
        %1963 = vmatpush.msra.mxu0 %v946
        %1964 = vmatpush.msra.mxu0 %v942
        %1965 = vmatpush.msra.mxu0 %v938
        %1966 = vmatpush.msra.mxu0 %v934
        %1967 = vmatpush.msra.mxu0 %v930
        %1968 = vmatpush.msra.mxu0 %v926
        %1969 = vmatpush.msra.mxu0 %v922
        %1970 = vmatmul.f32.gmra.mxu0 %v1450
        %v1971 = vpop.f32.mrf.mxu0
        %v1972 = vadd.f32 %v1952, %v1971
        %1973 = vdwg.mxu0
        %1974 = vmatpush.msra.mxu0 %v1046
        %1975 = vmatpush.msra.mxu0 %v1042
        %1976 = vmatpush.msra.mxu0 %v1038
        %1977 = vmatpush.msra.mxu0 %v1034
        %1978 = vmatpush.msra.mxu0 %v1030
        %1979 = vmatpush.msra.mxu0 %v1026
        %1980 = vmatpush.msra.mxu0 %v1022
        %1981 = vmatpush.msra.mxu0 %v1018
        %1982 = vmatpush.msra.mxu0 %v1014
        %1983 = vmatpush.msra.mxu0 %v1010
        %1984 = vmatpush.msra.mxu0 %v1006
        %1985 = vmatpush.msra.mxu0 %v1002
        %1986 = vmatpush.msra.mxu0 %v998
        %1987 = vmatpush.msra.mxu0 %v994
        %1988 = vmatpush.msra.mxu0 %v990
        %1989 = vmatpush.msra.mxu0 %v986
        %1990 = vmatmul.f32.gmra.mxu0 %v1451
        %v1991 = vpop.f32.mrf.mxu0
        %v1992 = vadd.f32 %v1972, %v1991
        %1993 = vdwg.mxu0
        %1994 = vmatpush.msra.mxu0 %v1110
        %1995 = vmatpush.msra.mxu0 %v1106
        %1996 = vmatpush.msra.mxu0 %v1102
        %1997 = vmatpush.msra.mxu0 %v1098
        %1998 = vmatpush.msra.mxu0 %v1094
        %1999 = vmatpush.msra.mxu0 %v1090
        %2000 = vmatpush.msra.mxu0 %v1086
        %2001 = vmatpush.msra.mxu0 %v1082
        %2002 = vmatpush.msra.mxu0 %v1078
        %2003 = vmatpush.msra.mxu0 %v1074
        %2004 = vmatpush.msra.mxu0 %v1070
        %2005 = vmatpush.msra.mxu0 %v1066
        %2006 = vmatpush.msra.mxu0 %v1062
        %2007 = vmatpush.msra.mxu0 %v1058
        %2008 = vmatpush.msra.mxu0 %v1054
        %2009 = vmatpush.msra.mxu0 %v1050
        %2010 = vmatmul.f32.gmra.mxu0 %v1452
        %v2011 = vpop.f32.mrf.mxu0
        %v2012 = vadd.f32 %v1992, %v2011
        %2013 = vdwg.mxu0
        %2014 = vmatpush.msra.mxu0 %v1174
        %2015 = vmatpush.msra.mxu0 %v1170
        %2016 = vmatpush.msra.mxu0 %v1166
        %2017 = vmatpush.msra.mxu0 %v1162
        %2018 = vmatpush.msra.mxu0 %v1158
        %2019 = vmatpush.msra.mxu0 %v1154
        %2020 = vmatpush.msra.mxu0 %v1150
        %2021 = vmatpush.msra.mxu0 %v1146
        %2022 = vmatpush.msra.mxu0 %v1142
        %2023 = vmatpush.msra.mxu0 %v1138
        %2024 = vmatpush.msra.mxu0 %v1134
        %2025 = vmatpush.msra.mxu0 %v1130
        %2026 = vmatpush.msra.mxu0 %v1126
        %2027 = vmatpush.msra.mxu0 %v1122
        %2028 = vmatpush.msra.mxu0 %v1118
        %2029 = vmatpush.msra.mxu0 %v1114
        %2030 = vmatmul.f32.gmra.mxu0 %v1453
        %v2031 = vpop.f32.mrf.mxu0
        %v2032 = vadd.f32 %v2012, %v2031
        %2033 = vdwg.mxu0
        %2034 = vmatpush.msra.mxu0 %v1238
        %2035 = vmatpush.msra.mxu0 %v1234
        %2036 = vmatpush.msra.mxu0 %v1230
        %2037 = vmatpush.msra.mxu0 %v1226
        %2038 = vmatpush.msra.mxu0 %v1222
        %2039 = vmatpush.msra.mxu0 %v1218
        %2040 = vmatpush.msra.mxu0 %v1214
        %2041 = vmatpush.msra.mxu0 %v1210
        %2042 = vmatpush.msra.mxu0 %v1206
        %2043 = vmatpush.msra.mxu0 %v1202
        %2044 = vmatpush.msra.mxu0 %v1198
        %2045 = vmatpush.msra.mxu0 %v1194
        %2046 = vmatpush.msra.mxu0 %v1190
        %2047 = vmatpush.msra.mxu0 %v1186
        %2048 = vmatpush.msra.mxu0 %v1182
        %2049 = vmatpush.msra.mxu0 %v1178
        %2050 = vmatmul.f32.gmra.mxu0 %v1454
        %v2051 = vpop.f32.mrf.mxu0
        %v2052 = vadd.f32 %v2032, %v2051
        %2053 = vdwg.mxu0
        %2054 = vmatpush.msra.mxu0 %v1302
        %2055 = vmatpush.msra.mxu0 %v1298
        %2056 = vmatpush.msra.mxu0 %v1294
        %2057 = vmatpush.msra.mxu0 %v1290
        %2058 = vmatpush.msra.mxu0 %v1286
        %2059 = vmatpush.msra.mxu0 %v1282
        %2060 = vmatpush.msra.mxu0 %v1278
        %2061 = vmatpush.msra.mxu0 %v1274
        %2062 = vmatpush.msra.mxu0 %v1270
        %2063 = vmatpush.msra.mxu0 %v1266
        %2064 = vmatpush.msra.mxu0 %v1262
        %2065 = vmatpush.msra.mxu0 %v1258
        %2066 = vmatpush.msra.mxu0 %v1254
        %2067 = vmatpush.msra.mxu0 %v1250
        %2068 = vmatpush.msra.mxu0 %v1246
        %2069 = vmatpush.msra.mxu0 %v1242
        %2070 = vmatmul.f32.gmra.mxu0 %v1455
        %v2071 = vpop.f32.mrf.mxu0
        %v2072 = vadd.f32 %v2052, %v2071
        %2073 = vdwg.mxu0
        %2074 = vmatpush.msra.mxu0 %v1366
        %2075 = vmatpush.msra.mxu0 %v1362
        %2076 = vmatpush.msra.mxu0 %v1358
        %2077 = vmatpush.msra.mxu0 %v1354
        %2078 = vmatpush.msra.mxu0 %v1350
        %2079 = vmatpush.msra.mxu0 %v1346
        %2080 = vmatpush.msra.mxu0 %v1342
        %2081 = vmatpush.msra.mxu0 %v1338
        %2082 = vmatpush.msra.mxu0 %v1334
        %2083 = vmatpush.msra.mxu0 %v1330
        %2084 = vmatpush.msra.mxu0 %v1326
        %2085 = vmatpush.msra.mxu0 %v1322
        %2086 = vmatpush.msra.mxu0 %v1318
        %2087 = vmatpush.msra.mxu0 %v1314
        %2088 = vmatpush.msra.mxu0 %v1310
        %2089 = vmatpush.msra.mxu0 %v1306
        %2090 = vmatmul.f32.gmra.mxu0 %v1456
        %v2091 = vpop.f32.mrf.mxu0
        %v2092 = vadd.f32 %v2072, %v2091
        %2093 = vdwg.mxu0
        %2094 = vmatpush.msra.mxu0 %v1430
        %2095 = vmatpush.msra.mxu0 %v1426
        %2096 = vmatpush.msra.mxu0 %v1422
        %2097 = vmatpush.msra.mxu0 %v1418
        %2098 = vmatpush.msra.mxu0 %v1414
        %2099 = vmatpush.msra.mxu0 %v1410
        %2100 = vmatpush.msra.mxu0 %v1406
        %2101 = vmatpush.msra.mxu0 %v1402
        %2102 = vmatpush.msra.mxu0 %v1398
        %2103 = vmatpush.msra.mxu0 %v1394
        %2104 = vmatpush.msra.mxu0 %v1390
        %2105 = vmatpush.msra.mxu0 %v1386
        %2106 = vmatpush.msra.mxu0 %v1382
        %2107 = vmatpush.msra.mxu0 %v1378
        %2108 = vmatpush.msra.mxu0 %v1374
        %2109 = vmatpush.msra.mxu0 %v1370
        %2110 = vmatmul.f32.gmra.mxu0 %v1457
        %v2111 = vpop.f32.mrf.mxu0
        %v2112 = vadd.f32 %v2092, %v2111
        %2113 = vdwg.mxu0
        %2114 = vmatpush.msra.mxu0 %v471
        %2115 = vmatpush.msra.mxu0 %v467
        %2116 = vmatpush.msra.mxu0 %v463
        %2117 = vmatpush.msra.mxu0 %v459
        %2118 = vmatpush.msra.mxu0 %v455
        %2119 = vmatpush.msra.mxu0 %v451
        %2120 = vmatpush.msra.mxu0 %v447
        %2121 = vmatpush.msra.mxu0 %v443
        %2122 = vmatpush.msra.mxu0 %v439
        %2123 = vmatpush.msra.mxu0 %v435
        %2124 = vmatpush.msra.mxu0 %v431
        %2125 = vmatpush.msra.mxu0 %v427
        %2126 = vmatpush.msra.mxu0 %v423
        %2127 = vmatpush.msra.mxu0 %v419
        %2128 = vmatpush.msra.mxu0 %v415
        %2129 = vmatpush.msra.mxu0 %v411
        %2130 = vmatmul.f32.gmra.mxu0 %v1440
        %v2131 = vpop.f32.mrf.mxu0
        %v2132 = vadd.f32 0.0, %v2131
        %2133 = vdwg.mxu0
        %2134 = vmatpush.msra.mxu0 %v535
        %2135 = vmatpush.msra.mxu0 %v531
        %2136 = vmatpush.msra.mxu0 %v527
        %2137 = vmatpush.msra.mxu0 %v523
        %2138 = vmatpush.msra.mxu0 %v519
        %2139 = vmatpush.msra.mxu0 %v515
        %2140 = vmatpush.msra.mxu0 %v511
        %2141 = vmatpush.msra.mxu0 %v507
        %2142 = vmatpush.msra.mxu0 %v503
        %2143 = vmatpush.msra.mxu0 %v499
        %2144 = vmatpush.msra.mxu0 %v495
        %2145 = vmatpush.msra.mxu0 %v491
        %2146 = vmatpush.msra.mxu0 %v487
        %2147 = vmatpush.msra.mxu0 %v483
        %2148 = vmatpush.msra.mxu0 %v479
        %2149 = vmatpush.msra.mxu0 %v475
        %2150 = vmatmul.f32.gmra.mxu0 %v1441
        %v2151 = vpop.f32.mrf.mxu0
        %v2152 = vadd.f32 %v2132, %v2151
        %2153 = vdwg.mxu0
        %2154 = vmatpush.msra.mxu0 %v599
        %2155 = vmatpush.msra.mxu0 %v595
        %2156 = vmatpush.msra.mxu0 %v591
        %2157 = vmatpush.msra.mxu0 %v587
        %2158 = vmatpush.msra.mxu0 %v583
        %2159 = vmatpush.msra.mxu0 %v579
        %2160 = vmatpush.msra.mxu0 %v575
        %2161 = vmatpush.msra.mxu0 %v571
        %2162 = vmatpush.msra.mxu0 %v567
        %2163 = vmatpush.msra.mxu0 %v563
        %2164 = vmatpush.msra.mxu0 %v559
        %2165 = vmatpush.msra.mxu0 %v555
        %2166 = vmatpush.msra.mxu0 %v551
        %2167 = vmatpush.msra.mxu0 %v547
        %2168 = vmatpush.msra.mxu0 %v543
        %2169 = vmatpush.msra.mxu0 %v539
        %2170 = vmatmul.f32.gmra.mxu0 %v1442
        %v2171 = vpop.f32.mrf.mxu0
        %v2172 = vadd.f32 %v2152, %v2171
        %2173 = vdwg.mxu0
        %2174 = vmatpush.msra.mxu0 %v663
        %2175 = vmatpush.msra.mxu0 %v659
        %2176 = vmatpush.msra.mxu0 %v655
        %2177 = vmatpush.msra.mxu0 %v651
        %2178 = vmatpush.msra.mxu0 %v647
        %2179 = vmatpush.msra.mxu0 %v643
        %2180 = vmatpush.msra.mxu0 %v639
        %2181 = vmatpush.msra.mxu0 %v635
        %2182 = vmatpush.msra.mxu0 %v631
        %2183 = vmatpush.msra.mxu0 %v627
        %2184 = vmatpush.msra.mxu0 %v623
        %2185 = vmatpush.msra.mxu0 %v619
        %2186 = vmatpush.msra.mxu0 %v615
        %2187 = vmatpush.msra.mxu0 %v611
        %2188 = vmatpush.msra.mxu0 %v607
        %2189 = vmatpush.msra.mxu0 %v603
        %2190 = vmatmul.f32.gmra.mxu0 %v1443
        %v2191 = vpop.f32.mrf.mxu0
        %v2192 = vadd.f32 %v2172, %v2191
        %2193 = vdwg.mxu0
        %2194 = vmatpush.msra.mxu0 %v727
        %2195 = vmatpush.msra.mxu0 %v723
        %2196 = vmatpush.msra.mxu0 %v719
        %2197 = vmatpush.msra.mxu0 %v715
        %2198 = vmatpush.msra.mxu0 %v711
        %2199 = vmatpush.msra.mxu0 %v707
        %2200 = vmatpush.msra.mxu0 %v703
        %2201 = vmatpush.msra.mxu0 %v699
        %2202 = vmatpush.msra.mxu0 %v695
        %2203 = vmatpush.msra.mxu0 %v691
        %2204 = vmatpush.msra.mxu0 %v687
        %2205 = vmatpush.msra.mxu0 %v683
        %2206 = vmatpush.msra.mxu0 %v679
        %2207 = vmatpush.msra.mxu0 %v675
        %2208 = vmatpush.msra.mxu0 %v671
        %2209 = vmatpush.msra.mxu0 %v667
        %2210 = vmatmul.f32.gmra.mxu0 %v1444
        %v2211 = vpop.f32.mrf.mxu0
        %v2212 = vadd.f32 %v2192, %v2211
        %2213 = vdwg.mxu0
        %2214 = vmatpush.msra.mxu0 %v791
        %2215 = vmatpush.msra.mxu0 %v787
        %2216 = vmatpush.msra.mxu0 %v783
        %2217 = vmatpush.msra.mxu0 %v779
        %2218 = vmatpush.msra.mxu0 %v775
        %2219 = vmatpush.msra.mxu0 %v771
        %2220 = vmatpush.msra.mxu0 %v767
        %2221 = vmatpush.msra.mxu0 %v763
        %2222 = vmatpush.msra.mxu0 %v759
        %2223 = vmatpush.msra.mxu0 %v755
        %2224 = vmatpush.msra.mxu0 %v751
        %2225 = vmatpush.msra.mxu0 %v747
        %2226 = vmatpush.msra.mxu0 %v743
        %2227 = vmatpush.msra.mxu0 %v739
        %2228 = vmatpush.msra.mxu0 %v735
        %2229 = vmatpush.msra.mxu0 %v731
        %2230 = vmatmul.f32.gmra.mxu0 %v1445
        %v2231 = vpop.f32.mrf.mxu0
        %v2232 = vadd.f32 %v2212, %v2231
        %2233 = vdwg.mxu0
        %2234 = vmatpush.msra.mxu0 %v855
        %2235 = vmatpush.msra.mxu0 %v851
        %2236 = vmatpush.msra.mxu0 %v847
        %2237 = vmatpush.msra.mxu0 %v843
        %2238 = vmatpush.msra.mxu0 %v839
        %2239 = vmatpush.msra.mxu0 %v835
        %2240 = vmatpush.msra.mxu0 %v831
        %2241 = vmatpush.msra.mxu0 %v827
        %2242 = vmatpush.msra.mxu0 %v823
        %2243 = vmatpush.msra.mxu0 %v819
        %2244 = vmatpush.msra.mxu0 %v815
        %2245 = vmatpush.msra.mxu0 %v811
        %2246 = vmatpush.msra.mxu0 %v807
        %2247 = vmatpush.msra.mxu0 %v803
        %2248 = vmatpush.msra.mxu0 %v799
        %2249 = vmatpush.msra.mxu0 %v795
        %2250 = vmatmul.f32.gmra.mxu0 %v1446
        %v2251 = vpop.f32.mrf.mxu0
        %v2252 = vadd.f32 %v2232, %v2251
        %2253 = vdwg.mxu0
        %2254 = vmatpush.msra.mxu0 %v919
        %2255 = vmatpush.msra.mxu0 %v915
        %2256 = vmatpush.msra.mxu0 %v911
        %2257 = vmatpush.msra.mxu0 %v907
        %2258 = vmatpush.msra.mxu0 %v903
        %2259 = vmatpush.msra.mxu0 %v899
        %2260 = vmatpush.msra.mxu0 %v895
        %2261 = vmatpush.msra.mxu0 %v891
        %2262 = vmatpush.msra.mxu0 %v887
        %2263 = vmatpush.msra.mxu0 %v883
        %2264 = vmatpush.msra.mxu0 %v879
        %2265 = vmatpush.msra.mxu0 %v875
        %2266 = vmatpush.msra.mxu0 %v871
        %2267 = vmatpush.msra.mxu0 %v867
        %2268 = vmatpush.msra.mxu0 %v863
        %2269 = vmatpush.msra.mxu0 %v859
        %2270 = vmatmul.f32.gmra.mxu0 %v1447
        %v2271 = vpop.f32.mrf.mxu0
        %v2272 = vadd.f32 %v2252, %v2271
        %2273 = vdwg.mxu0
        %2274 = vmatpush.msra.mxu0 %v983
        %2275 = vmatpush.msra.mxu0 %v979
        %2276 = vmatpush.msra.mxu0 %v975
        %2277 = vmatpush.msra.mxu0 %v971
        %2278 = vmatpush.msra.mxu0 %v967
        %2279 = vmatpush.msra.mxu0 %v963
        %2280 = vmatpush.msra.mxu0 %v959
        %2281 = vmatpush.msra.mxu0 %v955
        %2282 = vmatpush.msra.mxu0 %v951
        %2283 = vmatpush.msra.mxu0 %v947
        %2284 = vmatpush.msra.mxu0 %v943
        %2285 = vmatpush.msra.mxu0 %v939
        %2286 = vmatpush.msra.mxu0 %v935
        %2287 = vmatpush.msra.mxu0 %v931
        %2288 = vmatpush.msra.mxu0 %v927
        %2289 = vmatpush.msra.mxu0 %v923
        %2290 = vmatmul.f32.gmra.mxu0 %v1450
        %v2291 = vpop.f32.mrf.mxu0
        %v2292 = vadd.f32 %v2272, %v2291
        %2293 = vdwg.mxu0
        %2294 = vmatpush.msra.mxu0 %v1047
        %2295 = vmatpush.msra.mxu0 %v1043
        %2296 = vmatpush.msra.mxu0 %v1039
        %2297 = vmatpush.msra.mxu0 %v1035
        %2298 = vmatpush.msra.mxu0 %v1031
        %2299 = vmatpush.msra.mxu0 %v1027
        %2300 = vmatpush.msra.mxu0 %v1023
        %2301 = vmatpush.msra.mxu0 %v1019
        %2302 = vmatpush.msra.mxu0 %v1015
        %2303 = vmatpush.msra.mxu0 %v1011
        %2304 = vmatpush.msra.mxu0 %v1007
        %2305 = vmatpush.msra.mxu0 %v1003
        %2306 = vmatpush.msra.mxu0 %v999
        %2307 = vmatpush.msra.mxu0 %v995
        %2308 = vmatpush.msra.mxu0 %v991
        %2309 = vmatpush.msra.mxu0 %v987
        %2310 = vmatmul.f32.gmra.mxu0 %v1451
        %v2311 = vpop.f32.mrf.mxu0
        %v2312 = vadd.f32 %v2292, %v2311
        %2313 = vdwg.mxu0
        %2314 = vmatpush.msra.mxu0 %v1111
        %2315 = vmatpush.msra.mxu0 %v1107
        %2316 = vmatpush.msra.mxu0 %v1103
        %2317 = vmatpush.msra.mxu0 %v1099
        %2318 = vmatpush.msra.mxu0 %v1095
        %2319 = vmatpush.msra.mxu0 %v1091
        %2320 = vmatpush.msra.mxu0 %v1087
        %2321 = vmatpush.msra.mxu0 %v1083
        %2322 = vmatpush.msra.mxu0 %v1079
        %2323 = vmatpush.msra.mxu0 %v1075
        %2324 = vmatpush.msra.mxu0 %v1071
        %2325 = vmatpush.msra.mxu0 %v1067
        %2326 = vmatpush.msra.mxu0 %v1063
        %2327 = vmatpush.msra.mxu0 %v1059
        %2328 = vmatpush.msra.mxu0 %v1055
        %2329 = vmatpush.msra.mxu0 %v1051
        %2330 = vmatmul.f32.gmra.mxu0 %v1452
        %v2331 = vpop.f32.mrf.mxu0
        %v2332 = vadd.f32 %v2312, %v2331
        %2333 = vdwg.mxu0
        %2334 = vmatpush.msra.mxu0 %v1175
        %2335 = vmatpush.msra.mxu0 %v1171
        %2336 = vmatpush.msra.mxu0 %v1167
        %2337 = vmatpush.msra.mxu0 %v1163
        %2338 = vmatpush.msra.mxu0 %v1159
        %2339 = vmatpush.msra.mxu0 %v1155
        %2340 = vmatpush.msra.mxu0 %v1151
        %2341 = vmatpush.msra.mxu0 %v1147
        %2342 = vmatpush.msra.mxu0 %v1143
        %2343 = vmatpush.msra.mxu0 %v1139
        %2344 = vmatpush.msra.mxu0 %v1135
        %2345 = vmatpush.msra.mxu0 %v1131
        %2346 = vmatpush.msra.mxu0 %v1127
        %2347 = vmatpush.msra.mxu0 %v1123
        %2348 = vmatpush.msra.mxu0 %v1119
        %2349 = vmatpush.msra.mxu0 %v1115
        %2350 = vmatmul.f32.gmra.mxu0 %v1453
        %v2351 = vpop.f32.mrf.mxu0
        %v2352 = vadd.f32 %v2332, %v2351
        %2353 = vdwg.mxu0
        %2354 = vmatpush.msra.mxu0 %v1239
        %2355 = vmatpush.msra.mxu0 %v1235
        %2356 = vmatpush.msra.mxu0 %v1231
        %2357 = vmatpush.msra.mxu0 %v1227
        %2358 = vmatpush.msra.mxu0 %v1223
        %2359 = vmatpush.msra.mxu0 %v1219
        %2360 = vmatpush.msra.mxu0 %v1215
        %2361 = vmatpush.msra.mxu0 %v1211
        %2362 = vmatpush.msra.mxu0 %v1207
        %2363 = vmatpush.msra.mxu0 %v1203
        %2364 = vmatpush.msra.mxu0 %v1199
        %2365 = vmatpush.msra.mxu0 %v1195
        %2366 = vmatpush.msra.mxu0 %v1191
        %2367 = vmatpush.msra.mxu0 %v1187
        %2368 = vmatpush.msra.mxu0 %v1183
        %2369 = vmatpush.msra.mxu0 %v1179
        %2370 = vmatmul.f32.gmra.mxu0 %v1454
        %v2371 = vpop.f32.mrf.mxu0
        %v2372 = vadd.f32 %v2352, %v2371
        %2373 = vdwg.mxu0
        %2374 = vmatpush.msra.mxu0 %v1303
        %2375 = vmatpush.msra.mxu0 %v1299
        %2376 = vmatpush.msra.mxu0 %v1295
        %2377 = vmatpush.msra.mxu0 %v1291
        %2378 = vmatpush.msra.mxu0 %v1287
        %2379 = vmatpush.msra.mxu0 %v1283
        %2380 = vmatpush.msra.mxu0 %v1279
        %2381 = vmatpush.msra.mxu0 %v1275
        %2382 = vmatpush.msra.mxu0 %v1271
        %2383 = vmatpush.msra.mxu0 %v1267
        %2384 = vmatpush.msra.mxu0 %v1263
        %2385 = vmatpush.msra.mxu0 %v1259
        %2386 = vmatpush.msra.mxu0 %v1255
        %2387 = vmatpush.msra.mxu0 %v1251
        %2388 = vmatpush.msra.mxu0 %v1247
        %2389 = vmatpush.msra.mxu0 %v1243
        %2390 = vmatmul.f32.gmra.mxu0 %v1455
        %v2391 = vpop.f32.mrf.mxu0
        %v2392 = vadd.f32 %v2372, %v2391
        %2393 = vdwg.mxu0
        %2394 = vmatpush.msra.mxu0 %v1367
        %2395 = vmatpush.msra.mxu0 %v1363
        %2396 = vmatpush.msra.mxu0 %v1359
        %2397 = vmatpush.msra.mxu0 %v1355
        %2398 = vmatpush.msra.mxu0 %v1351
        %2399 = vmatpush.msra.mxu0 %v1347
        %2400 = vmatpush.msra.mxu0 %v1343
        %2401 = vmatpush.msra.mxu0 %v1339
        %2402 = vmatpush.msra.mxu0 %v1335
        %2403 = vmatpush.msra.mxu0 %v1331
        %2404 = vmatpush.msra.mxu0 %v1327
        %2405 = vmatpush.msra.mxu0 %v1323
        %2406 = vmatpush.msra.mxu0 %v1319
        %2407 = vmatpush.msra.mxu0 %v1315
        %2408 = vmatpush.msra.mxu0 %v1311
        %2409 = vmatpush.msra.mxu0 %v1307
        %2410 = vmatmul.f32.gmra.mxu0 %v1456
        %v2411 = vpop.f32.mrf.mxu0
        %v2412 = vadd.f32 %v2392, %v2411
        %2413 = vdwg.mxu0
        %2414 = vmatpush.msra.mxu0 %v1431
        %2415 = vmatpush.msra.mxu0 %v1427
        %2416 = vmatpush.msra.mxu0 %v1423
        %2417 = vmatpush.msra.mxu0 %v1419
        %2418 = vmatpush.msra.mxu0 %v1415
        %2419 = vmatpush.msra.mxu0 %v1411
        %2420 = vmatpush.msra.mxu0 %v1407
        %2421 = vmatpush.msra.mxu0 %v1403
        %2422 = vmatpush.msra.mxu0 %v1399
        %2423 = vmatpush.msra.mxu0 %v1395
        %2424 = vmatpush.msra.mxu0 %v1391
        %2425 = vmatpush.msra.mxu0 %v1387
        %2426 = vmatpush.msra.mxu0 %v1383
        %2427 = vmatpush.msra.mxu0 %v1379
        %2428 = vmatpush.msra.mxu0 %v1375
        %2429 = vmatpush.msra.mxu0 %v1371
        %2430 = vmatmul.f32.gmra.mxu0 %v1457
        %v2431 = vpop.f32.mrf.mxu0
        %v2432 = vadd.f32 %v2412, %v2431
        %2433 = vdwg.mxu0
        %2434 = vmatpush.msra.mxu0 %v472
        %2435 = vmatpush.msra.mxu0 %v468
        %2436 = vmatpush.msra.mxu0 %v464
        %2437 = vmatpush.msra.mxu0 %v460
        %2438 = vmatpush.msra.mxu0 %v456
        %2439 = vmatpush.msra.mxu0 %v452
        %2440 = vmatpush.msra.mxu0 %v448
        %2441 = vmatpush.msra.mxu0 %v444
        %2442 = vmatpush.msra.mxu0 %v440
        %2443 = vmatpush.msra.mxu0 %v436
        %2444 = vmatpush.msra.mxu0 %v432
        %2445 = vmatpush.msra.mxu0 %v428
        %2446 = vmatpush.msra.mxu0 %v424
        %2447 = vmatpush.msra.mxu0 %v420
        %2448 = vmatpush.msra.mxu0 %v416
        %2449 = vmatpush.msra.mxu0 %v412
        %2450 = vmatmul.f32.gmra.mxu0 %v1440
        %v2451 = vpop.f32.mrf.mxu0
        %v2452 = vadd.f32 0.0, %v2451
        %2453 = vdwg.mxu0
        %2454 = vmatpush.msra.mxu0 %v536
        %2455 = vmatpush.msra.mxu0 %v532
        %2456 = vmatpush.msra.mxu0 %v528
        %2457 = vmatpush.msra.mxu0 %v524
        %2458 = vmatpush.msra.mxu0 %v520
        %2459 = vmatpush.msra.mxu0 %v516
        %2460 = vmatpush.msra.mxu0 %v512
        %2461 = vmatpush.msra.mxu0 %v508
        %2462 = vmatpush.msra.mxu0 %v504
        %2463 = vmatpush.msra.mxu0 %v500
        %2464 = vmatpush.msra.mxu0 %v496
        %2465 = vmatpush.msra.mxu0 %v492
        %2466 = vmatpush.msra.mxu0 %v488
        %2467 = vmatpush.msra.mxu0 %v484
        %2468 = vmatpush.msra.mxu0 %v480
        %2469 = vmatpush.msra.mxu0 %v476
        %2470 = vmatmul.f32.gmra.mxu0 %v1441
        %v2471 = vpop.f32.mrf.mxu0
        %v2472 = vadd.f32 %v2452, %v2471
        %2473 = vdwg.mxu0
        %2474 = vmatpush.msra.mxu0 %v600
        %2475 = vmatpush.msra.mxu0 %v596
        %2476 = vmatpush.msra.mxu0 %v592
        %2477 = vmatpush.msra.mxu0 %v588
        %2478 = vmatpush.msra.mxu0 %v584
        %2479 = vmatpush.msra.mxu0 %v580
        %2480 = vmatpush.msra.mxu0 %v576
        %2481 = vmatpush.msra.mxu0 %v572
        %2482 = vmatpush.msra.mxu0 %v568
        %2483 = vmatpush.msra.mxu0 %v564
        %2484 = vmatpush.msra.mxu0 %v560
        %2485 = vmatpush.msra.mxu0 %v556
        %2486 = vmatpush.msra.mxu0 %v552
        %2487 = vmatpush.msra.mxu0 %v548
        %2488 = vmatpush.msra.mxu0 %v544
        %2489 = vmatpush.msra.mxu0 %v540
        %2490 = vmatmul.f32.gmra.mxu0 %v1442
        %v2491 = vpop.f32.mrf.mxu0
        %v2492 = vadd.f32 %v2472, %v2491
        %2493 = vdwg.mxu0
        %2494 = vmatpush.msra.mxu0 %v664
        %2495 = vmatpush.msra.mxu0 %v660
        %2496 = vmatpush.msra.mxu0 %v656
        %2497 = vmatpush.msra.mxu0 %v652
        %2498 = vmatpush.msra.mxu0 %v648
        %2499 = vmatpush.msra.mxu0 %v644
        %2500 = vmatpush.msra.mxu0 %v640
        %2501 = vmatpush.msra.mxu0 %v636
        %2502 = vmatpush.msra.mxu0 %v632
        %2503 = vmatpush.msra.mxu0 %v628
        %2504 = vmatpush.msra.mxu0 %v624
        %2505 = vmatpush.msra.mxu0 %v620
        %2506 = vmatpush.msra.mxu0 %v616
        %2507 = vmatpush.msra.mxu0 %v612
        %2508 = vmatpush.msra.mxu0 %v608
        %2509 = vmatpush.msra.mxu0 %v604
        %2510 = vmatmul.f32.gmra.mxu0 %v1443
        %v2511 = vpop.f32.mrf.mxu0
        %v2512 = vadd.f32 %v2492, %v2511
        %2513 = vdwg.mxu0
        %2514 = vmatpush.msra.mxu0 %v728
        %2515 = vmatpush.msra.mxu0 %v724
        %2516 = vmatpush.msra.mxu0 %v720
        %2517 = vmatpush.msra.mxu0 %v716
        %2518 = vmatpush.msra.mxu0 %v712
        %2519 = vmatpush.msra.mxu0 %v708
        %2520 = vmatpush.msra.mxu0 %v704
        %2521 = vmatpush.msra.mxu0 %v700
        %2522 = vmatpush.msra.mxu0 %v696
        %2523 = vmatpush.msra.mxu0 %v692
        %2524 = vmatpush.msra.mxu0 %v688
        %2525 = vmatpush.msra.mxu0 %v684
        %2526 = vmatpush.msra.mxu0 %v680
        %2527 = vmatpush.msra.mxu0 %v676
        %2528 = vmatpush.msra.mxu0 %v672
        %2529 = vmatpush.msra.mxu0 %v668
        %2530 = vmatmul.f32.gmra.mxu0 %v1444
        %v2531 = vpop.f32.mrf.mxu0
        %v2532 = vadd.f32 %v2512, %v2531
        %2533 = vdwg.mxu0
        %2534 = vmatpush.msra.mxu0 %v792
        %2535 = vmatpush.msra.mxu0 %v788
        %2536 = vmatpush.msra.mxu0 %v784
        %2537 = vmatpush.msra.mxu0 %v780
        %2538 = vmatpush.msra.mxu0 %v776
        %2539 = vmatpush.msra.mxu0 %v772
        %2540 = vmatpush.msra.mxu0 %v768
        %2541 = vmatpush.msra.mxu0 %v764
        %2542 = vmatpush.msra.mxu0 %v760
        %2543 = vmatpush.msra.mxu0 %v756
        %2544 = vmatpush.msra.mxu0 %v752
        %2545 = vmatpush.msra.mxu0 %v748
        %2546 = vmatpush.msra.mxu0 %v744
        %2547 = vmatpush.msra.mxu0 %v740
        %2548 = vmatpush.msra.mxu0 %v736
        %2549 = vmatpush.msra.mxu0 %v732
        %2550 = vmatmul.f32.gmra.mxu0 %v1445
        %v2551 = vpop.f32.mrf.mxu0
        %v2552 = vadd.f32 %v2532, %v2551
        %2553 = vdwg.mxu0
        %2554 = vmatpush.msra.mxu0 %v856
        %2555 = vmatpush.msra.mxu0 %v852
        %2556 = vmatpush.msra.mxu0 %v848
        %2557 = vmatpush.msra.mxu0 %v844
        %2558 = vmatpush.msra.mxu0 %v840
        %2559 = vmatpush.msra.mxu0 %v836
        %2560 = vmatpush.msra.mxu0 %v832
        %2561 = vmatpush.msra.mxu0 %v828
        %2562 = vmatpush.msra.mxu0 %v824
        %2563 = vmatpush.msra.mxu0 %v820
        %2564 = vmatpush.msra.mxu0 %v816
        %2565 = vmatpush.msra.mxu0 %v812
        %2566 = vmatpush.msra.mxu0 %v808
        %2567 = vmatpush.msra.mxu0 %v804
        %2568 = vmatpush.msra.mxu0 %v800
        %2569 = vmatpush.msra.mxu0 %v796
        %2570 = vmatmul.f32.gmra.mxu0 %v1446
        %v2571 = vpop.f32.mrf.mxu0
        %v2572 = vadd.f32 %v2552, %v2571
        %2573 = vdwg.mxu0
        %2574 = vmatpush.msra.mxu0 %v920
        %2575 = vmatpush.msra.mxu0 %v916
        %2576 = vmatpush.msra.mxu0 %v912
        %2577 = vmatpush.msra.mxu0 %v908
        %2578 = vmatpush.msra.mxu0 %v904
        %2579 = vmatpush.msra.mxu0 %v900
        %2580 = vmatpush.msra.mxu0 %v896
        %2581 = vmatpush.msra.mxu0 %v892
        %2582 = vmatpush.msra.mxu0 %v888
        %2583 = vmatpush.msra.mxu0 %v884
        %2584 = vmatpush.msra.mxu0 %v880
        %2585 = vmatpush.msra.mxu0 %v876
        %2586 = vmatpush.msra.mxu0 %v872
        %2587 = vmatpush.msra.mxu0 %v868
        %2588 = vmatpush.msra.mxu0 %v864
        %2589 = vmatpush.msra.mxu0 %v860
        %2590 = vmatmul.f32.gmra.mxu0 %v1447
        %v2591 = vpop.f32.mrf.mxu0
        %v2592 = vadd.f32 %v2572, %v2591
        %2593 = vdwg.mxu0
        %2594 = vmatpush.msra.mxu0 %v984
        %2595 = vmatpush.msra.mxu0 %v980
        %2596 = vmatpush.msra.mxu0 %v976
        %2597 = vmatpush.msra.mxu0 %v972
        %2598 = vmatpush.msra.mxu0 %v968
        %2599 = vmatpush.msra.mxu0 %v964
        %2600 = vmatpush.msra.mxu0 %v960
        %2601 = vmatpush.msra.mxu0 %v956
        %2602 = vmatpush.msra.mxu0 %v952
        %2603 = vmatpush.msra.mxu0 %v948
        %2604 = vmatpush.msra.mxu0 %v944
        %2605 = vmatpush.msra.mxu0 %v940
        %2606 = vmatpush.msra.mxu0 %v936
        %2607 = vmatpush.msra.mxu0 %v932
        %2608 = vmatpush.msra.mxu0 %v928
        %2609 = vmatpush.msra.mxu0 %v924
        %2610 = vmatmul.f32.gmra.mxu0 %v1450
        %v2611 = vpop.f32.mrf.mxu0
        %v2612 = vadd.f32 %v2592, %v2611
        %2613 = vdwg.mxu0
        %2614 = vmatpush.msra.mxu0 %v1048
        %2615 = vmatpush.msra.mxu0 %v1044
        %2616 = vmatpush.msra.mxu0 %v1040
        %2617 = vmatpush.msra.mxu0 %v1036
        %2618 = vmatpush.msra.mxu0 %v1032
        %2619 = vmatpush.msra.mxu0 %v1028
        %2620 = vmatpush.msra.mxu0 %v1024
        %2621 = vmatpush.msra.mxu0 %v1020
        %2622 = vmatpush.msra.mxu0 %v1016
        %2623 = vmatpush.msra.mxu0 %v1012
        %2624 = vmatpush.msra.mxu0 %v1008
        %2625 = vmatpush.msra.mxu0 %v1004
        %2626 = vmatpush.msra.mxu0 %v1000
        %2627 = vmatpush.msra.mxu0 %v996
        %2628 = vmatpush.msra.mxu0 %v992
        %2629 = vmatpush.msra.mxu0 %v988
        %2630 = vmatmul.f32.gmra.mxu0 %v1451
        %v2631 = vpop.f32.mrf.mxu0
        %v2632 = vadd.f32 %v2612, %v2631
        %2633 = vdwg.mxu0
        %2634 = vmatpush.msra.mxu0 %v1112
        %2635 = vmatpush.msra.mxu0 %v1108
        %2636 = vmatpush.msra.mxu0 %v1104
        %2637 = vmatpush.msra.mxu0 %v1100
        %2638 = vmatpush.msra.mxu0 %v1096
        %2639 = vmatpush.msra.mxu0 %v1092
        %2640 = vmatpush.msra.mxu0 %v1088
        %2641 = vmatpush.msra.mxu0 %v1084
        %2642 = vmatpush.msra.mxu0 %v1080
        %2643 = vmatpush.msra.mxu0 %v1076
        %2644 = vmatpush.msra.mxu0 %v1072
        %2645 = vmatpush.msra.mxu0 %v1068
        %2646 = vmatpush.msra.mxu0 %v1064
        %2647 = vmatpush.msra.mxu0 %v1060
        %2648 = vmatpush.msra.mxu0 %v1056
        %2649 = vmatpush.msra.mxu0 %v1052
        %2650 = vmatmul.f32.gmra.mxu0 %v1452
        %v2651 = vpop.f32.mrf.mxu0
        %v2652 = vadd.f32 %v2632, %v2651
        %2653 = vdwg.mxu0
        %2654 = vmatpush.msra.mxu0 %v1176
        %2655 = vmatpush.msra.mxu0 %v1172
        %2656 = vmatpush.msra.mxu0 %v1168
        %2657 = vmatpush.msra.mxu0 %v1164
        %2658 = vmatpush.msra.mxu0 %v1160
        %2659 = vmatpush.msra.mxu0 %v1156
        %2660 = vmatpush.msra.mxu0 %v1152
        %2661 = vmatpush.msra.mxu0 %v1148
        %2662 = vmatpush.msra.mxu0 %v1144
        %2663 = vmatpush.msra.mxu0 %v1140
        %2664 = vmatpush.msra.mxu0 %v1136
        %2665 = vmatpush.msra.mxu0 %v1132
        %2666 = vmatpush.msra.mxu0 %v1128
        %2667 = vmatpush.msra.mxu0 %v1124
        %2668 = vmatpush.msra.mxu0 %v1120
        %2669 = vmatpush.msra.mxu0 %v1116
        %2670 = vmatmul.f32.gmra.mxu0 %v1453
        %v2671 = vpop.f32.mrf.mxu0
        %v2672 = vadd.f32 %v2652, %v2671
        %2673 = vdwg.mxu0
        %2674 = vmatpush.msra.mxu0 %v1240
        %2675 = vmatpush.msra.mxu0 %v1236
        %2676 = vmatpush.msra.mxu0 %v1232
        %2677 = vmatpush.msra.mxu0 %v1228
        %2678 = vmatpush.msra.mxu0 %v1224
        %2679 = vmatpush.msra.mxu0 %v1220
        %2680 = vmatpush.msra.mxu0 %v1216
        %2681 = vmatpush.msra.mxu0 %v1212
        %2682 = vmatpush.msra.mxu0 %v1208
        %2683 = vmatpush.msra.mxu0 %v1204
        %2684 = vmatpush.msra.mxu0 %v1200
        %2685 = vmatpush.msra.mxu0 %v1196
        %2686 = vmatpush.msra.mxu0 %v1192
        %2687 = vmatpush.msra.mxu0 %v1188
        %2688 = vmatpush.msra.mxu0 %v1184
        %2689 = vmatpush.msra.mxu0 %v1180
        %2690 = vmatmul.f32.gmra.mxu0 %v1454
        %v2691 = vpop.f32.mrf.mxu0
        %v2692 = vadd.f32 %v2672, %v2691
        %2693 = vdwg.mxu0
        %2694 = vmatpush.msra.mxu0 %v1304
        %2695 = vmatpush.msra.mxu0 %v1300
        %2696 = vmatpush.msra.mxu0 %v1296
        %2697 = vmatpush.msra.mxu0 %v1292
        %2698 = vmatpush.msra.mxu0 %v1288
        %2699 = vmatpush.msra.mxu0 %v1284
        %2700 = vmatpush.msra.mxu0 %v1280
        %2701 = vmatpush.msra.mxu0 %v1276
        %2702 = vmatpush.msra.mxu0 %v1272
        %2703 = vmatpush.msra.mxu0 %v1268
        %2704 = vmatpush.msra.mxu0 %v1264
        %2705 = vmatpush.msra.mxu0 %v1260
        %2706 = vmatpush.msra.mxu0 %v1256
        %2707 = vmatpush.msra.mxu0 %v1252
        %2708 = vmatpush.msra.mxu0 %v1248
        %2709 = vmatpush.msra.mxu0 %v1244
        %2710 = vmatmul.f32.gmra.mxu0 %v1455
        %v2711 = vpop.f32.mrf.mxu0
        %v2712 = vadd.f32 %v2692, %v2711
        %2713 = vdwg.mxu0
        %2714 = vmatpush.msra.mxu0 %v1368
        %2715 = vmatpush.msra.mxu0 %v1364
        %2716 = vmatpush.msra.mxu0 %v1360
        %2717 = vmatpush.msra.mxu0 %v1356
        %2718 = vmatpush.msra.mxu0 %v1352
        %2719 = vmatpush.msra.mxu0 %v1348
        %2720 = vmatpush.msra.mxu0 %v1344
        %2721 = vmatpush.msra.mxu0 %v1340
        %2722 = vmatpush.msra.mxu0 %v1336
        %2723 = vmatpush.msra.mxu0 %v1332
        %2724 = vmatpush.msra.mxu0 %v1328
        %2725 = vmatpush.msra.mxu0 %v1324
        %2726 = vmatpush.msra.mxu0 %v1320
        %2727 = vmatpush.msra.mxu0 %v1316
        %2728 = vmatpush.msra.mxu0 %v1312
        %2729 = vmatpush.msra.mxu0 %v1308
        %2730 = vmatmul.f32.gmra.mxu0 %v1456
        %v2731 = vpop.f32.mrf.mxu0
        %v2732 = vadd.f32 %v2712, %v2731
        %2733 = vdwg.mxu0
        %2734 = vmatpush.msra.mxu0 %v1432
        %2735 = vmatpush.msra.mxu0 %v1428
        %2736 = vmatpush.msra.mxu0 %v1424
        %2737 = vmatpush.msra.mxu0 %v1420
        %2738 = vmatpush.msra.mxu0 %v1416
        %2739 = vmatpush.msra.mxu0 %v1412
        %2740 = vmatpush.msra.mxu0 %v1408
        %2741 = vmatpush.msra.mxu0 %v1404
        %2742 = vmatpush.msra.mxu0 %v1400
        %2743 = vmatpush.msra.mxu0 %v1396
        %2744 = vmatpush.msra.mxu0 %v1392
        %2745 = vmatpush.msra.mxu0 %v1388
        %2746 = vmatpush.msra.mxu0 %v1384
        %2747 = vmatpush.msra.mxu0 %v1380
        %2748 = vmatpush.msra.mxu0 %v1376
        %2749 = vmatpush.msra.mxu0 %v1372
        %2750 = vmatmul.f32.gmra.mxu0 %v1457
        %v2751 = vpop.f32.mrf.mxu0
        %v2752 = vadd.f32 %v2732, %v2751
        %2753 = vdwg.mxu0
        %v2758 = vrot.slane %v2112, 6
        %v2759 = vrot.slane %v2432, 4
        %v2760 = vrot.slane %v2752, 2
        %vm2761 = vcmask 1041408
        %v2762 = vsel %vm2761, %v1792, %v2758
        %vm2763 = vcmask 1045508
        %v2764 = vsel %vm2763, %v2759, %v2760
        %vm2765 = vcmask 1043456
        %v2766 = vsel %vm2765, %v2762, %v2764
        %v2768 = vadd.f32 %v400, %v2766
        %2769 = vst [vmem:[%s387] sm:$0xff] %v2768
        %p2770 = scmp.eq.s32.totalorder %s31, 31
        // Predicated region
        $region65: #{tpu_custom_call.1} parent=39 // pred_check
          %p2771 = pneg %p2770
        $region66: #{tpu_custom_call.1} parent=39 // pred_check_branch
          %2773 = sbr.rel (%p2771) target = $region68
        $region67: #{tpu_custom_call.1} parent=39 // pred_region
          %v2774 = vld [vmem:[%s387] sm:$0xff]
          %v2775 = vld [vmem:[%s325] sm:$0xf]
          %v2777 = vperm.slane %v2775, 0
          %v2778 = vperm.slane %v2775, 1
          %v2779 = vperm.slane %v2775, 2
          %v2780 = vperm.slane %v2775, 3
          %v2781 = vrot.slane %v2778, 6
          %v2782 = vrot.slane %v2779, 4
          %v2783 = vrot.slane %v2780, 2
          %v2784 = vsel %vm2761, %v2777, %v2781
          %v2785 = vsel %vm2763, %v2782, %v2783
          %v2786 = vsel %vm2765, %v2784, %v2785
          %v2788 = vadd.f32 %v2774, %v2786
          %2790 = vst [vmem:[#allocation1] ss:$4 sm:$0xff] %v2788
          %v2791 = vld.sshfl [vmem:[#allocation1] sm:$0xff pattern:$0x73625140]
          %v2792 = vld.sshfl [vmem:[#allocation1 + $0x8] sm:$0xff pattern:$0x73625140]
          %v2793 = vld.sshfl [vmem:[#allocation1 + $0x10] sm:$0xff pattern:$0x73625140]
          %v2794 = vld.sshfl [vmem:[#allocation1 + $0x18] sm:$0xff pattern:$0x73625140]
          %v2799 = vsel %vm2761, %v2791, 0.0
          %v2800 = vrot.slane %v2799, 4
          %v2801 = vadd.f32 %v2799, %v2800
          %v2802 = vrot.slane %v2801, 2
          %v2803 = vadd.f32 %v2801, %v2802
          %v2804 = vrot.slane %v2803, 1
          %v2805 = vadd.f32 %v2803, %v2804
          %v2806 = vsel %vm2761, %v2792, 0.0
          %v2807 = vrot.slane %v2806, 4
          %v2808 = vadd.f32 %v2806, %v2807
          %v2809 = vrot.slane %v2808, 2
          %v2810 = vadd.f32 %v2808, %v2809
          %v2811 = vrot.slane %v2810, 1
          %v2812 = vadd.f32 %v2810, %v2811
          %v2813 = vsel %vm2761, %v2793, 0.0
          %v2814 = vrot.slane %v2813, 4
          %v2815 = vadd.f32 %v2813, %v2814
          %v2816 = vrot.slane %v2815, 2
          %v2817 = vadd.f32 %v2815, %v2816
          %v2818 = vrot.slane %v2817, 1
          %v2819 = vadd.f32 %v2817, %v2818
          %v2820 = vsel %vm2761, %v2794, 0.0
          %v2821 = vrot.slane %v2820, 4
          %v2822 = vadd.f32 %v2820, %v2821
          %v2823 = vrot.slane %v2822, 2
          %v2824 = vadd.f32 %v2822, %v2823
          %v2825 = vrot.slane %v2824, 1
          %v2826 = vadd.f32 %v2824, %v2825
          %v2827 = vrcp.pop 2.0
          %v2828 = vmul.f32 2.0, %v2827
          %v2829 = vsub.f32 1.0, %v2828
          %v2830 = vmul.f32 %v2827, %v2829
          %v2831 = vadd.f32 %v2827, %v2830
          %vm2832 = vweird.f32 %v2827
          %v2833 = vsel %vm2832, %v2827, %v2831
          %v2834 = vmul.f32 %v2805, %v2833
          %v2835 = vmul.f32 %v2812, %v2833
          %v2836 = vmul.f32 %v2819, %v2833
          %v2837 = vmul.f32 %v2826, %v2833
          %v2842 = vrot.slane %v2835, 6
          %v2843 = vrot.slane %v2836, 4
          %v2844 = vrot.slane %v2837, 2
          %v2845 = vsel %vm2761, %v2834, %v2842
          %v2846 = vsel %vm2763, %v2843, %v2844
          %v2847 = vsel %vm2765, %v2845, %v2846
          %v2849 = vsub.f32 %v2788, %v2847
          %v2850 = vmul.f32 %v2849, %v2849
          %2852 = vst [vmem:[#allocation1] ss:$4 sm:$0xff] %v2850
          %v2853 = vld.sshfl [vmem:[#allocation1] sm:$0xff pattern:$0x73625140]
          %v2854 = vld.sshfl [vmem:[#allocation1 + $0x8] sm:$0xff pattern:$0x73625140]
          %v2855 = vld.sshfl [vmem:[#allocation1 + $0x10] sm:$0xff pattern:$0x73625140]
          %v2856 = vld.sshfl [vmem:[#allocation1 + $0x18] sm:$0xff pattern:$0x73625140]
          %v2861 = vsel %vm2761, %v2853, 0.0
          %v2862 = vrot.slane %v2861, 4
          %v2863 = vadd.f32 %v2861, %v2862
          %v2864 = vrot.slane %v2863, 2
          %v2865 = vadd.f32 %v2863, %v2864
          %v2866 = vrot.slane %v2865, 1
          %v2867 = vadd.f32 %v2865, %v2866
          %v2868 = vsel %vm2761, %v2854, 0.0
          %v2869 = vrot.slane %v2868, 4
          %v2870 = vadd.f32 %v2868, %v2869
          %v2871 = vrot.slane %v2870, 2
          %v2872 = vadd.f32 %v2870, %v2871
          %v2873 = vrot.slane %v2872, 1
          %v2874 = vadd.f32 %v2872, %v2873
          %v2875 = vsel %vm2761, %v2855, 0.0
          %v2876 = vrot.slane %v2875, 4
          %v2877 = vadd.f32 %v2875, %v2876
          %v2878 = vrot.slane %v2877, 2
          %v2879 = vadd.f32 %v2877, %v2878
          %v2880 = vrot.slane %v2879, 1
          %v2881 = vadd.f32 %v2879, %v2880
          %v2882 = vsel %vm2761, %v2856, 0.0
          %v2883 = vrot.slane %v2882, 4
          %v2884 = vadd.f32 %v2882, %v2883
          %v2885 = vrot.slane %v2884, 2
          %v2886 = vadd.f32 %v2884, %v2885
          %v2887 = vrot.slane %v2886, 1
          %v2888 = vadd.f32 %v2886, %v2887
          %v2889 = vmul.f32 %v2867, %v2833
          %v2890 = vmul.f32 %v2874, %v2833
          %v2891 = vmul.f32 %v2881, %v2833
          %v2892 = vmul.f32 %v2888, %v2833
          %v2893 = vadd.f32 %v2889, 1e-05
          %v2894 = vadd.f32 %v2890, 1e-05
          %v2895 = vadd.f32 %v2891, 1e-05
          %v2896 = vadd.f32 %v2892, 1e-05
          %v2897 = vrsqrt.pop %v2893
          %v2898 = vmul.f32 %v2897, %v2893
          %v2899 = vmul.f32 %v2898, %v2897
          %v2900 = vmul.f32 0.5, %v2899
          %v2901 = vsub.f32 1.5, %v2900
          %v2902 = vmul.f32 %v2897, %v2901
          %vm2903 = vweird.f32 %v2893
          %vm2904 = vweird.f32 %v2897
          %vm2905 = vmor %vm2903, %vm2904
          %v2906 = vsel %vm2905, %v2897, %v2902
          %v2907 = vrsqrt.pop %v2894
          %v2908 = vmul.f32 %v2907, %v2894
          %v2909 = vmul.f32 %v2908, %v2907
          %v2910 = vmul.f32 0.5, %v2909
          %v2911 = vsub.f32 1.5, %v2910
          %v2912 = vmul.f32 %v2907, %v2911
          %vm2913 = vweird.f32 %v2894
          %vm2914 = vweird.f32 %v2907
          %vm2915 = vmor %vm2913, %vm2914
          %v2916 = vsel %vm2915, %v2907, %v2912
          %v2917 = vrsqrt.pop %v2895
          %v2918 = vmul.f32 %v2917, %v2895
          %v2919 = vmul.f32 %v2918, %v2917
          %v2920 = vmul.f32 0.5, %v2919
          %v2921 = vsub.f32 1.5, %v2920
          %v2922 = vmul.f32 %v2917, %v2921
          %vm2923 = vweird.f32 %v2895
          %vm2924 = vweird.f32 %v2917
          %vm2925 = vmor %vm2923, %vm2924
          %v2926 = vsel %vm2925, %v2917, %v2922
          %v2927 = vrsqrt.pop %v2896
          %v2928 = vmul.f32 %v2927, %v2896
          %v2929 = vmul.f32 %v2928, %v2927
          %v2930 = vmul.f32 0.5, %v2929
          %v2931 = vsub.f32 1.5, %v2930
          %v2932 = vmul.f32 %v2927, %v2931
          %vm2933 = vweird.f32 %v2896
          %vm2934 = vweird.f32 %v2927
          %vm2935 = vmor %vm2933, %vm2934
          %v2936 = vsel %vm2935, %v2927, %v2932
          %v2941 = vrot.slane %v2916, 6
          %v2942 = vrot.slane %v2926, 4
          %v2943 = vrot.slane %v2936, 2
          %v2944 = vsel %vm2761, %v2906, %v2941
          %v2945 = vsel %vm2763, %v2942, %v2943
          %v2946 = vsel %vm2765, %v2944, %v2945
          %v2948 = vmul.f32 %v2849, %v2946
          %v2949 = vld [vmem:[%s335] sm:$0xf]
          %v2951 = vperm.slane %v2949, 0
          %v2952 = vperm.slane %v2949, 1
          %v2953 = vperm.slane %v2949, 2
          %v2954 = vperm.slane %v2949, 3
          %2960 = vst [vmem:[#allocation1] ss:$4 sm:$0xff] %v2948
          %v2961 = vld.sshfl [vmem:[#allocation1] sm:$0xff pattern:$0x73625140]
          %v2962 = vld.sshfl [vmem:[#allocation1 + $0x8] sm:$0xff pattern:$0x73625140]
          %v2963 = vld.sshfl [vmem:[#allocation1 + $0x10] sm:$0xff pattern:$0x73625140]
          %v2964 = vld.sshfl [vmem:[#allocation1 + $0x18] sm:$0xff pattern:$0x73625140]
          %v2969 = vmul.f32 %v2951, %v2961
          %v2970 = vmul.f32 %v2952, %v2962
          %v2971 = vmul.f32 %v2953, %v2963
          %v2972 = vmul.f32 %v2954, %v2964
          %v2973 = vld [vmem:[%s345] sm:$0xf]
          %v2975 = vperm.slane %v2973, 0
          %v2976 = vperm.slane %v2973, 1
          %v2977 = vperm.slane %v2973, 2
          %v2978 = vperm.slane %v2973, 3
          %v2983 = vadd.f32 %v2969, %v2975
          %v2984 = vadd.f32 %v2970, %v2976
          %v2985 = vadd.f32 %v2971, %v2977
          %v2986 = vadd.f32 %v2972, %v2978
          %v2987 = vmax.f32 %v2983, 0.0
          %v2988 = vmax.f32 %v2984, 0.0
          %v2989 = vmax.f32 %v2985, 0.0
          %v2990 = vmax.f32 %v2986, 0.0
          %v2995 = vrot.slane %v2988, 6
          %v2996 = vrot.slane %v2989, 4
          %v2997 = vrot.slane %v2990, 2
          %v2998 = vsel %vm2761, %v2987, %v2995
          %v2999 = vsel %vm2763, %v2996, %v2997
          %v3000 = vsel %vm2765, %v2998, %v2999
          %3002 = vst [vmem:[%s387] sm:$0xff] %v3000
        $region68: #{tpu_custom_call.1} parent=39 // pred_fallthru
          _
        %s3003 = sand.u32 %s173, 1
        %s3004 = scalar_lea.sflag [#allocation4], %s3003
        %s3005 = sand.u32 %s173, 1
        %s3006 = smul.addr %s3005, 8
        %s3007 = scalar_lea.vmem [#allocation11], %s3006
        // Predicated region
        $region69: #{tpu_custom_call.1} parent=39 // pred_check
          %p3008 = pneg %p183
        $region70: #{tpu_custom_call.1} parent=39 // pred_check_branch
          %3010 = sbr.rel (%p3008) target = $region72
        $region71: #{tpu_custom_call.1} parent=39 // pred_region
          %s3011 = smul.u32 4, %s30
          %3013 = vsyncadd %s3004, 0
          %s3014 = smul.addr %s3011, 2
          %s3015 = scalar_lea.hbm %s5, %s3014
          %s3017 = sshll.u32 %s3007, 4
          %s3018 = int_to_ptr.vmem [resolvable:$true] %s3017
          %s3019 = sshll.u32 %s3015, 4
          %s3020 = int_to_ptr.hbm [resolvable:$true] %s3019
          %3022 = dma.vmem_to_hbm [thread:$0]  %s3018, 128, %s3020, %s3004
        $region72: #{tpu_custom_call.1} parent=39 // pred_fallthru
          _
      $region40: #{tpu_custom_call.1} parent=5 // pred_fallthru
        _
      %p3023 = scmp.le.s32.totalorder 2, %s21
      // Predicated region
      $region73: #{tpu_custom_call.1} parent=5 // pred_check
        %p3024 = pneg %p3023
      $region74: #{tpu_custom_call.1} parent=5 // pred_check_branch
        %3026 = sbr.rel (%p3024) target = $region76
      $region75: #{tpu_custom_call.1} parent=5 // pred_region
        %s3027 = ssub.s32 %s21, 2
        // Predicated region
        $region77: #{tpu_custom_call.1} parent=75 // pred_check
          %p3028 = pneg %p189
        $region78: #{tpu_custom_call.1} parent=75 // pred_check_branch
          %3030 = sbr.rel (%p3028) target = $region80
        $region79: #{tpu_custom_call.1} parent=75 // pred_region
          %s3031 = sand.u32 %s174, 1
          %s3032 = scalar_lea.sflag [#allocation4], %s3031
          %s3033 = sand.u32 %s174, 1
          %s3034 = smul.addr %s3033, 8
          %s3035 = scalar_lea.vmem [#allocation11], %s3034
          %3037 = dma.done %s3032, 128
        $region80: #{tpu_custom_call.1} parent=75 // pred_fallthru
          _
      $region76: #{tpu_custom_call.1} parent=5 // pred_fallthru
        _
    $region6: #{tpu_custom_call.1} parent=1 // loop_footer
      %s25 = sadd.s32 1, %s21
    $region7: #{tpu_custom_call.1} parent=1 // loop_footer_branch
      %20 = sbr.rel target = $region3
    $region8: #{tpu_custom_call.1} parent=1 // loop_exit
      _
    %3038 = vsyncpa [#allocation3], 1
    %s3039 = scalar_lea.sflag [#allocation3], 1
    %3040 = vsyncpa %s3039, 1
    %3041 = vsyncpa [#allocation6], 1
    %s3042 = scalar_lea.sflag [#allocation6], 1
    %3043 = vsyncpa %s3042, 1
    %3044 = vsyncpa [#allocation9], 1
    %s3045 = scalar_lea.sflag [#allocation9], 1
    %3046 = vsyncpa %s3045, 1
    %3047 = vsyncpa [#allocation4], 1
    %s3048 = scalar_lea.sflag [#allocation4], 1
    %3049 = vsyncpa %s3048, 1

</llo_original>
